<compile_context>
chip_gen: v7x
topology: tpu7x:2x2x1
jax: 0.10.0
libtpu: 0.0.40
codegen_flags: <defaults>
</compile_context>

<pallas_src>
import functools

import jax
import jax.numpy as jnp
from jax import lax
from jax.experimental import pallas as pl
from jax.experimental.pallas import tpu as pltpu


LANE = 128     # TPU lane tile
SUBLANE = 8    # f32 sublane tile

PARAM_ORDER = (
    "w_r2i", "b_r2i",          # raw2input Linear (transposed) + bias
    "w_ix", "w_iu", "b_i",     # fused input-side GRU gate weights/bias, order [r|z|n], H padded
    "w_h_fused", "b_hn",       # fused hidden-side GRU gate weights (Hp, 3Hp) + b_hn (1, Hp)
    "w_r2o", "b_r2o",          # rnn2output Linear (rows padded to Hp)
    "w_o2r", "b_o2r",          # output2raw Linear
)


def _round_up(x, m):
    return ((x + m - 1) // m) * m


# ----------------------------------------------------------------------------
# Pallas kernel: one grid step == one batch block x one chunk of T time steps.
# ----------------------------------------------------------------------------
def rnn_dynamics_kernel(
    neural_ref,    # (T, Bb, Dn)  time-major chunk of neural_input
    other_ref,     # (T, Bb, Do)  time-major chunk of other_input
    w_r2i_ref,     # (Dn, Dio)    [bf16 or f32]
    b_r2i_ref,     # (1, Dio)     f32
    w_ix_ref,      # (Dio, 3Hp)   [bf16 or f32]  gate blocks at lane offsets 0/Hp/2Hp
    w_iu_ref,      # (Do, 3Hp)    [bf16 or f32]
    b_i_ref,       # (1, 3Hp)     f32  [b_ir+b_hr | b_iz+b_hz | b_in], zero-padded
    w_h_ref,       # (Hp, 3Hp)    f32  (stays f32: serial path, accuracy)
    b_hn_ref,      # (1, Hp)      f32
    w_r2o_ref,     # (Hp, Dio)    [bf16 or f32]
    b_r2o_ref,     # (1, Dio)     f32
    w_o2r_ref,     # (Dio, Dn)    [bf16 or f32]
    b_o2r_ref,     # (1, Dn)      f32
    out_ref,       # (T, Bb, Dn)
    h_ref,         # scratch (Bb, Hp): hidden-state carry across time chunks
    gx_ref,        # scratch (T, Bb, 3Hp): chunk's input-side gate pre-activations
    hs_ref,        # scratch (T, Bb, Hp): chunk's per-step hidden states
):
    T, Bb, Dn = neural_ref.shape
    Do = other_ref.shape[2]
    Hp = w_h_ref.shape[0]
    gemm_dt = w_r2i_ref.dtype   # bf16 (MXU-native) or f32

    # nn.GRU default h0 == zeros; reset at each batch block's first time chunk.
    @pl.when(pl.program_id(1) == 0)
    def _():
        h_ref[...] = jnp.zeros_like(h_ref)

    # ---------------- chunk-wide, time-parallel work (hoisted) ----------------
    # Time-major layout: (T, Bb, D) -> (T*Bb, D) is layout-trivial (Bb % 8 == 0).
    x = neural_ref[...].reshape(T * Bb, Dn)
    u = other_ref[...].reshape(T * Bb, Do)

    # raw2input (also needed for the skip connection later). f32 accumulation.
    raw2input = (
        jnp.dot(x.astype(gemm_dt), w_r2i_ref[...], preferred_element_type=jnp.float32)
        + b_r2i_ref[...]
    )  # (T*Bb, Dio)

    # Input-side GRU pre-activations for all gates & all T steps in one shot;
    # cat(raw2input, other) is folded into two GEMMs -> no lane concat anywhere.
    gx = (
        jnp.dot(raw2input.astype(gemm_dt), w_ix_ref[...], preferred_element_type=jnp.float32)
        + jnp.dot(u.astype(gemm_dt), w_iu_ref[...], preferred_element_type=jnp.float32)
        + b_i_ref[...]
    )  # (T*Bb, 3Hp)
    gx_ref[...] = gx.reshape(T, Bb, 3 * Hp)

    # --------------- sequential recurrence: only h-dependent work -------------
    w_h = w_h_ref[...]                                        # hoisted
    b_hn_b = jnp.broadcast_to(b_hn_ref[...], (Bb, Hp))        # hoisted broadcast

    def step(i, h):
        g = gx_ref[i]                                                # contiguous (Bb, 3Hp)
        gh = jnp.dot(h, w_h, preferred_element_type=jnp.float32)     # (Bb, 3Hp), f32
        # r first, then tanh (depends only on r), then z -> shorter EUP chain.
        r = jax.nn.sigmoid(g[:, :Hp] + gh[:, :Hp])
        n = jnp.tanh(g[:, 2 * Hp:] + r * (gh[:, 2 * Hp:] + b_hn_b))
        z = jax.nn.sigmoid(g[:, Hp:2 * Hp] + gh[:, Hp:2 * Hp])
        h_new = (1.0 - z) * n + z * h
        hs_ref[i] = h_new                                            # contiguous (Bb, Hp) store
        return h_new

    # Partial unroll: overlaps step-i stores with step-(i+1) matmul without a
    # giant basic block. (Sweep 4/8 for the real model.)
    h_ref[...] = lax.fori_loop(0, T, step, h_ref[...], unroll=8)
    # NOTE: if S was padded, h_ref after the last chunk keeps evolving through
    # zero inputs and is NOT the true h_S; outputs are sliced back so the
    # returned result is still correct.

    # ---------------------- chunk-wide output head -----------------------------
    hs = hs_ref[...].reshape(T * Bb, Hp)
    rnn2output = (
        jnp.dot(hs.astype(gemm_dt), w_r2o_ref[...], preferred_element_type=jnp.float32)
        + b_r2o_ref[...]
        + raw2input                                # skip connection
    )  # (T*Bb, Dio)
    out = (
        jnp.dot(rnn2output.astype(gemm_dt), w_o2r_ref[...], preferred_element_type=jnp.float32)
        + b_o2r_ref[...]
    )  # (T*Bb, Dn)
    out_ref[...] = out.reshape(T, Bb, Dn).astype(out_ref.dtype)


# ----------------------------------------------------------------------------
# Wrapper
# ----------------------------------------------------------------------------
def _pick_time_chunk(S, Bb, Hp, Dn, Do, Dio, budget_bytes=40 << 20):
    """Largest T (multiple of 8, <=128) whose VMEM working set fits the budget
    (budget leaves headroom under v7x's 64 MiB physical VMEM)."""
    cap = min(128, _round_up(max(S, 1), SUBLANE))
    per_t = Bb * (4 * Hp              # gx + hs scratch
                  + 2 * (Dn + Do)     # double-buffered input chunks
                  + 2 * Dn            # double-buffered output chunk
                  + 3 * Hp + 2 * Dio + Dn)  # in-kernel temporaries headroom
    for cand in range(cap, SUBLANE - 1, -SUBLANE):
        if 4 * (cand * per_t + Bb * Hp) <= budget_bytes:
            return cand
    return SUBLANE


@functools.partial(jax.jit, static_argnames=("time_chunk", "batch_block"))
def rnn_dynamics_forward(neural_input, other_input, params,
                         time_chunk=None, batch_block=None):
    """Pallas forward of RNNdynamics. Inputs are (B, S, D) batch-first."""
    B, S, Dn = neural_input.shape
    Do = other_input.shape[-1]
    Hp = params["w_h_fused"].shape[0]          # already padded to a multiple of 128
    Dio = params["w_r2i"].shape[1]

    # Pad batch to a full f32 sublane tile so all (B, .) slabs are unmasked.
    B_pad = _round_up(B, SUBLANE)

    # Batch blocking: with >= 2 sublane tiles of batch, split in two so v7x's
    # two TensorCores each run half the batch's recurrence ("parallel" axis).
    if batch_block is None:
        batch_block = B_pad // 2 if (B_pad % (2 * SUBLANE) == 0) else B_pad
    Bb = int(batch_block)
    assert B_pad % Bb == 0 and Bb % SUBLANE == 0
    nb = B_pad // Bb

    if time_chunk is None:
        time_chunk = _pick_time_chunk(S, Bb, Hp, Dn, Do, Dio)
    T = int(time_chunk)
    assert T % SUBLANE == 0, "time_chunk must be a multiple of 8 (f32 sublane tile)"
    S_pad = _round_up(S, T)
    nc = S_pad // T

    # Time-major layout so every per-step recurrence access is a contiguous
    # (Bb, .) slab. (Cheap XLA transposes, fully off the kernel's serial path.)
    neural = jnp.transpose(neural_input.astype(jnp.float32), (1, 0, 2))   # (S, B, Dn)
    other = jnp.transpose(other_input.astype(jnp.float32), (1, 0, 2))     # (S, B, Do)
    neural = jnp.pad(neural, ((0, S_pad - S), (0, B_pad - B), (0, 0)))
    other = jnp.pad(other, ((0, S_pad - S), (0, B_pad - B), (0, 0)))

    param_args = [params[name] for name in PARAM_ORDER]

    def chunk_spec(d):
        return pl.BlockSpec((T, Bb, d), lambda b, c: (c, b, 0))

    def const_map(*args, nd):
        return (0,) * nd

    in_specs = [chunk_spec(Dn), chunk_spec(Do)] + [
        pl.BlockSpec(p.shape, functools.partial(const_map, nd=p.ndim))
        for p in param_args
    ]

    # VMEM budget computed from the actual buffers (+2x headroom), clamped.
    scratch_bytes = 4 * (Bb * Hp + T * Bb * 4 * Hp)
    io_bytes = 2 * 4 * T * Bb * (Dn + Do) + 2 * 4 * T * Bb * Dn
    param_bytes = 2 * sum(int(p.size) * p.dtype.itemsize for p in param_args)
    tmp_bytes = 4 * T * Bb * (3 * Hp + 2 * Dio + Dn)
    vmem_limit = int(min(128 << 20,
                         max(32 << 20,
                             2 * (scratch_bytes + io_bytes + param_bytes + tmp_bytes))))

    out = pl.pallas_call(
        rnn_dynamics_kernel,
        out_shape=jax.ShapeDtypeStruct((S_pad, B_pad, Dn), jnp.float32),
        grid_spec=pltpu.PrefetchScalarGridSpec(
            num_scalar_prefetch=0,
            grid=(nb, nc),
            in_specs=in_specs,
            out_specs=pl.BlockSpec((T, Bb, Dn), lambda b, c: (c, b, 0)),
            scratch_shapes=[
                pltpu.VMEM((Bb, Hp), jnp.float32),          # hidden-state carry
                pltpu.VMEM((T, Bb, 3 * Hp), jnp.float32),   # gate pre-activations
                pltpu.VMEM((T, Bb, Hp), jnp.float32),       # chunk hidden states
            ],
        ),
        # Batch axis parallel (megacore); time axis MUST stay "arbitrary"
        # because the hidden state is carried across chunks in VMEM scratch.
        compiler_params=pltpu.CompilerParams(
            dimension_semantics=("parallel", "arbitrary"),
            vmem_limit_bytes=vmem_limit,
        ),
    )(neural, other, *param_args)

    return jnp.transpose(out[:S, :B, :], (1, 0, 2))


# ----------------------------------------------------------------------------
# Parameter construction (PyTorch layout) + fusion/padding into kernel layout
# ----------------------------------------------------------------------------
def make_raw_params(key, neural_dim, io_dim, other_dim, rnn_dim):
    keys = jax.random.split(key, 10)
    ki = iter(keys)

    def uni(k, shape, fan_in):
        bound = 1.0 / jnp.sqrt(jnp.float32(fan_in))
        return jax.random.uniform(k, shape, jnp.float32, -bound, bound)

    gru_in = io_dim + other_dim
    return {
        "r2i_w": uni(next(ki), (io_dim, neural_dim), neural_dim),
        "r2i_b": uni(next(ki), (io_dim,), neural_dim),
        # GRU weights, PyTorch layout (3H, in) / (3H, H), gate order [r, z, n]
        "w_ih": uni(next(ki), (3 * rnn_dim, gru_in), rnn_dim),
        "w_hh": uni(next(ki), (3 * rnn_dim, rnn_dim), rnn_dim),
        "b_ih": uni(next(ki), (3 * rnn_dim,), rnn_dim),
        "b_hh": uni(next(ki), (3 * rnn_dim,), rnn_dim),
        "r2o_w": uni(next(ki), (io_dim, rnn_dim), rnn_dim),
        "r2o_b": uni(next(ki), (io_dim,), rnn_dim),
        "o2r_w": uni(next(ki), (neural_dim, io_dim), io_dim),
        "o2r_b": uni(next(ki), (neural_dim,), io_dim),
    }


def fuse_params(raw, io_dim, rnn_dim, gemm_dtype=jnp.bfloat16):
    """Fuse PyTorch-layout params into the kernel layout, zero-padding the
    hidden dim to a multiple of 128 so every gate slice is lane-tile aligned.
    Padded hidden units provably stay exactly 0 through the recurrence."""
    H = rnn_dim
    Hp = _round_up(H, LANE)

    def pad_gate_cols(w):   # (rows, 3H) -> (rows, 3Hp), gate blocks at 0/Hp/2Hp
        out = jnp.zeros((w.shape[0], 3 * Hp), jnp.float32)
        for g in range(3):
            out = out.at[:, g * Hp:g * Hp + H].set(w[:, g * H:(g + 1) * H])
        return out

    def pad_gate_vec(v):    # (3H,) -> (3Hp,)
        out = jnp.zeros((3 * Hp,), jnp.float32)
        for g in range(3):
            out = out.at[g * Hp:g * Hp + H].set(v[g * H:(g + 1) * H])
        return out

    w_i = raw["w_ih"].T     # (Dio + Do, 3H), col blocks [W_ir^T | W_iz^T | W_in^T]
    w_ix = pad_gate_cols(w_i[:io_dim])
    w_iu = pad_gate_cols(w_i[io_dim:])

    # r/z columns get b_ih + b_hh folded in; n column keeps b_in only
    # (b_hn must stay inside the r * (...) term). Pad values are 0.
    b_i = pad_gate_vec(
        jnp.concatenate([raw["b_ih"][:2 * H] + raw["b_hh"][:2 * H], raw["b_ih"][2 * H:]])
    )[None, :]

    w_h = jnp.zeros((Hp, 3 * Hp), jnp.float32).at[:H].set(pad_gate_cols(raw["w_hh"].T))
    b_hn = jnp.zeros((Hp,), jnp.float32).at[:H].set(raw["b_hh"][2 * H:])[None, :]
    w_r2o = jnp.zeros((Hp, io_dim), jnp.float32).at[:H].set(raw["r2o_w"].T)

    return {
        "w_r2i": raw["r2i_w"].T.astype(gemm_dtype),
        "b_r2i": raw["r2i_b"][None, :],
        "w_ix": w_ix.astype(gemm_dtype),
        "w_iu": w_iu.astype(gemm_dtype),
        "b_i": b_i,
        "w_h_fused": w_h,                   # f32 on purpose (serial recurrence)
        "b_hn": b_hn,
        "w_r2o": w_r2o.astype(gemm_dtype),
        "b_r2o": raw["r2o_b"][None, :],
        "w_o2r": raw["o2r_w"].T.astype(gemm_dtype),
        "b_o2r": raw["o2r_b"][None, :],
    }


# ----------------------------------------------------------------------------
# Pure-JAX reference (PyTorch GRU equations, lax.scan) for validation
# ----------------------------------------------------------------------------
def reference_forward(neural_input, other_input, raw):
    H = raw["w_hh"].shape[1]
    raw2input = neural_input @ raw["r2i_w"].T + raw["r2i_b"]
    rnn_in = jnp.concatenate([raw2input, other_input], axis=-1)

    w_ih, w_hh, b_ih, b_hh = raw["w_ih"], raw["w_hh"], raw["b_ih"], raw["b_hh"]

    def step(h, x):
        gi = x @ w_ih.T + b_ih    # (B, 3H) [r|z|n]
        gh = h @ w_hh.T + b_hh
        r = jax.nn.sigmoid(gi[:, :H] + gh[:, :H])
        z = jax.nn.sigmoid(gi[:, H:2 * H] + gh[:, H:2 * H])
        n = jnp.tanh(gi[:, 2 * H:] + r * gh[:, 2 * H:])
        h_new = (1.0 - z) * n + z * h
        return h_new, h_new

    B = neural_input.shape[0]
    h0 = jnp.zeros((B, H), jnp.float32)
    _, hs = lax.scan(step, h0, jnp.transpose(rnn_in, (1, 0, 2)))
    rnn_out = jnp.transpose(hs, (1, 0, 2))  # (B, S, H)
    rnn2output = rnn_out @ raw["r2o_w"].T + raw["r2o_b"] + raw2input
    return rnn2output @ raw["o2r_w"].T + raw["o2r_b"]


if __name__ == "__main__":
    # Small shapes consistent with the module's forward.
    NEURAL_DIM = 16   # neural_activation_dim
    IO_DIM = 8        # input_output_dim
    OTHER_DIM = 4     # other_input_dim
    RNN_DIM = 32      # rnn_dim
    BATCH, SEQ = 2, 8

    key = jax.random.PRNGKey(0)
    k_params, k_neural, k_other = jax.random.split(key, 3)

    raw = make_raw_params(k_params, NEURAL_DIM, IO_DIM, OTHER_DIM, RNN_DIM)
    neural_input = jax.random.normal(k_neural, (BATCH, SEQ, NEURAL_DIM), jnp.float32)
    other_input = jax.random.normal(k_other, (BATCH, SEQ, OTHER_DIM), jnp.float32)

    ref = reference_forward(neural_input, other_input, raw)

    # 1) f32-GEMM path: tight tolerance vs. the pure-JAX reference.
    params_f32 = fuse_params(raw, IO_DIM, RNN_DIM, gemm_dtype=jnp.float32)
    out_f32 = jax.block_until_ready(
        rnn_dynamics_forward(neural_input, other_input, params_f32))
    assert out_f32.shape == (BATCH, SEQ, NEURAL_DIM)
    err32 = jnp.max(jnp.abs(out_f32 - ref))
    assert jnp.allclose(out_f32, ref, rtol=1e-3, atol=1e-3), f"f32 max abs err {err32}"

    # 2) bf16-GEMM path (MXU-native default for production): looser tolerance.
    params_bf16 = fuse_params(raw, IO_DIM, RNN_DIM, gemm_dtype=jnp.bfloat16)
    out_bf16 = jax.block_until_ready(
        rnn_dynamics_forward(neural_input, other_input, params_bf16))
    errbf = jnp.max(jnp.abs(out_bf16 - ref))
    assert jnp.allclose(out_bf16, ref, rtol=5e-2, atol=5e-2), f"bf16 max abs err {errbf}"

    # TODO(synk): the get_rnnout=True debug path (returning raw2input/rnn_out
    # intermediates) is not exposed; only the main forward output is produced.
    print("KERNEL_OK")
</pallas_src>

<mosaic_0001>
module attributes {stable_mosaic.version = 11 : i64} {
  func.func @rnn_dynamics_kernel(%arg0: i32, %arg1: i32, %arg2: memref<8x8x16xf32, #tpu.memory_space<vmem>>, %arg3: memref<8x8x4xf32, #tpu.memory_space<vmem>>, %arg4: memref<16x8xf32, #tpu.memory_space<vmem>>, %arg5: memref<1x8xf32, #tpu.memory_space<vmem>>, %arg6: memref<8x384xf32, #tpu.memory_space<vmem>>, %arg7: memref<4x384xf32, #tpu.memory_space<vmem>>, %arg8: memref<1x384xf32, #tpu.memory_space<vmem>>, %arg9: memref<128x384xf32, #tpu.memory_space<vmem>>, %arg10: memref<1x128xf32, #tpu.memory_space<vmem>>, %arg11: memref<128x8xf32, #tpu.memory_space<vmem>>, %arg12: memref<1x8xf32, #tpu.memory_space<vmem>>, %arg13: memref<8x16xf32, #tpu.memory_space<vmem>>, %arg14: memref<1x16xf32, #tpu.memory_space<vmem>>, %arg15: memref<8x8x16xf32, #tpu.memory_space<vmem>>, %arg16: memref<8x128xf32, #tpu.memory_space<vmem>>, %arg17: memref<8x8x384xf32, #tpu.memory_space<vmem>>, %arg18: memref<8x8x128xf32, #tpu.memory_space<vmem>>) attributes {dimension_semantics = [#tpu.dimension_semantics<parallel>, #tpu.dimension_semantics<arbitrary>], iteration_bounds = array<i64: 1, 1>, scalar_prefetch = 0 : i64, scratch_operands = 3 : i64, tpu.core_type = #tpu.core_type<tc>, window_params = [{transform_indices = @transform_0, window_bounds = array<i64: 8, 8, 16>}, {transform_indices = @transform_1, window_bounds = array<i64: 8, 8, 4>}, {pipeline_mode = #tpu.pipeline_mode<synchronous>, transform_indices = @transform_2, window_bounds = array<i64: 16, 8>}, {pipeline_mode = #tpu.pipeline_mode<synchronous>, transform_indices = @transform_3, window_bounds = array<i64: 1, 8>}, {pipeline_mode = #tpu.pipeline_mode<synchronous>, transform_indices = @transform_4, window_bounds = array<i64: 8, 384>}, {pipeline_mode = #tpu.pipeline_mode<synchronous>, transform_indices = @transform_5, window_bounds = array<i64: 4, 384>}, {pipeline_mode = #tpu.pipeline_mode<synchronous>, transform_indices = @transform_6, window_bounds = array<i64: 1, 384>}, {pipeline_mode = #tpu.pipeline_mode<synchronous>, transform_indices = @transform_7, window_bounds = array<i64: 128, 384>}, {pipeline_mode = #tpu.pipeline_mode<synchronous>, transform_indices = @transform_8, window_bounds = array<i64: 1, 128>}, {pipeline_mode = #tpu.pipeline_mode<synchronous>, transform_indices = @transform_9, window_bounds = array<i64: 128, 8>}, {pipeline_mode = #tpu.pipeline_mode<synchronous>, transform_indices = @transform_10, window_bounds = array<i64: 1, 8>}, {pipeline_mode = #tpu.pipeline_mode<synchronous>, transform_indices = @transform_11, window_bounds = array<i64: 8, 16>}, {pipeline_mode = #tpu.pipeline_mode<synchronous>, transform_indices = @transform_12, window_bounds = array<i64: 1, 16>}, {transform_indices = @transform_13, window_bounds = array<i64: 8, 8, 16>}]} {
    %c0_i32 = arith.constant 0 : i32
    %0 = arith.cmpi eq, %arg1, %c0_i32 : i32
    %1 = arith.extui %0 : i1 to i32
    %c0_i32_0 = arith.constant 0 : i32
    %2 = arith.cmpi ne, %1, %c0_i32_0 : i32
    scf.if %2 {
      %cst_110 = arith.constant 0.000000e+00 : f32
      %323 = vector.broadcast %cst_110 : f32 to vector<8x128xf32>
      %c0_111 = arith.constant 0 : index
      %c0_112 = arith.constant 0 : index
      %324 = vector.load %arg16[%c0_111, %c0_112] : memref<8x128xf32, #tpu.memory_space<vmem>>, vector<8x128xf32>
      tpu.vector_store %arg16[%c0_111, %c0_112], %323 {strides = array<i32>} : memref<8x128xf32, #tpu.memory_space<vmem>>, vector<8x128xf32>,
    } else {
    }
    %c0 = arith.constant 0 : index
    %c0_1 = arith.constant 0 : index
    %c0_2 = arith.constant 0 : index
    %3 = vector.load %arg2[%c0, %c0_1, %c0_2] : memref<8x8x16xf32, #tpu.memory_space<vmem>>, vector<8x8x16xf32>
    %4 = vector.shape_cast %3 : vector<8x8x16xf32> to vector<64x16xf32>
    %c0_3 = arith.constant 0 : index
    %c0_4 = arith.constant 0 : index
    %c0_5 = arith.constant 0 : index
    %5 = vector.load %arg3[%c0_3, %c0_4, %c0_5] : memref<8x8x4xf32, #tpu.memory_space<vmem>>, vector<8x8x4xf32>
    %6 = vector.shape_cast %5 : vector<8x8x4xf32> to vector<64x4xf32>
    %c0_6 = arith.constant 0 : index
    %c0_7 = arith.constant 0 : index
    %7 = vector.load %arg4[%c0_6, %c0_7] : memref<16x8xf32, #tpu.memory_space<vmem>>, vector<16x8xf32>
    %cst = arith.constant dense<0.000000e+00> : vector<64x8xf32>
    %8 = tpu.matmul %4, %7, %cst {dimension_numbers = #tpu.dot_dimension_numbers<[1], [0], [0], [1], [0, 0, 1, 1], [], []>} : vector<64x16xf32>, vector<16x8xf32>, vector<64x8xf32> -> vector<64x8xf32>
    %c0_8 = arith.constant 0 : index
    %c0_9 = arith.constant 0 : index
    %9 = vector.load %arg5[%c0_8, %c0_9] : memref<1x8xf32, #tpu.memory_space<vmem>>, vector<1x8xf32>
    %10 = vector.broadcast %9 : vector<1x8xf32> to vector<64x8xf32>
    %11 = arith.addf %8, %10 : vector<64x8xf32>
    %c0_10 = arith.constant 0 : index
    %c0_11 = arith.constant 0 : index
    %12 = vector.load %arg6[%c0_10, %c0_11] : memref<8x384xf32, #tpu.memory_space<vmem>>, vector<8x384xf32>
    %cst_12 = arith.constant dense<0.000000e+00> : vector<64x384xf32>
    %13 = tpu.matmul %11, %12, %cst_12 {dimension_numbers = #tpu.dot_dimension_numbers<[1], [0], [0], [1], [0, 0, 1, 1], [], []>} : vector<64x8xf32>, vector<8x384xf32>, vector<64x384xf32> -> vector<64x384xf32>
    %c0_13 = arith.constant 0 : index
    %c0_14 = arith.constant 0 : index
    %14 = vector.load %arg7[%c0_13, %c0_14] : memref<4x384xf32, #tpu.memory_space<vmem>>, vector<4x384xf32>
    %cst_15 = arith.constant dense<0.000000e+00> : vector<64x384xf32>
    %15 = tpu.matmul %6, %14, %cst_15 {dimension_numbers = #tpu.dot_dimension_numbers<[1], [0], [0], [1], [0, 0, 1, 1], [], []>} : vector<64x4xf32>, vector<4x384xf32>, vector<64x384xf32> -> vector<64x384xf32>
    %16 = arith.addf %13, %15 : vector<64x384xf32>
    %c0_16 = arith.constant 0 : index
    %c0_17 = arith.constant 0 : index
    %17 = vector.load %arg8[%c0_16, %c0_17] : memref<1x384xf32, #tpu.memory_space<vmem>>, vector<1x384xf32>
    %18 = vector.broadcast %17 : vector<1x384xf32> to vector<64x384xf32>
    %19 = arith.addf %16, %18 : vector<64x384xf32>
    %20 = vector.shape_cast %19 : vector<64x384xf32> to vector<8x8x384xf32>
    %c0_18 = arith.constant 0 : index
    %c0_19 = arith.constant 0 : index
    %c0_20 = arith.constant 0 : index
    %21 = vector.load %arg17[%c0_18, %c0_19, %c0_20] : memref<8x8x384xf32, #tpu.memory_space<vmem>>, vector<8x8x384xf32>
    tpu.vector_store %arg17[%c0_18, %c0_19, %c0_20], %20 {strides = array<i32>} : memref<8x8x384xf32, #tpu.memory_space<vmem>>, vector<8x8x384xf32>,
    %c0_21 = arith.constant 0 : index
    %c0_22 = arith.constant 0 : index
    %22 = vector.load %arg9[%c0_21, %c0_22] : memref<128x384xf32, #tpu.memory_space<vmem>>, vector<128x384xf32>
    %c0_23 = arith.constant 0 : index
    %c0_24 = arith.constant 0 : index
    %23 = vector.load %arg10[%c0_23, %c0_24] : memref<1x128xf32, #tpu.memory_space<vmem>>, vector<1x128xf32>
    %24 = vector.shape_cast %23 : vector<1x128xf32> to vector<1x128xf32>
    %25 = vector.broadcast %24 : vector<1x128xf32> to vector<8x128xf32>
    %c0_25 = arith.constant 0 : index
    %c0_26 = arith.constant 0 : index
    %26 = vector.load %arg16[%c0_25, %c0_26] : memref<8x128xf32, #tpu.memory_space<vmem>>, vector<8x128xf32>
    %c0_i32_27 = arith.constant 0 : i32
    %27 = arith.index_cast %c0_i32_27 : i32 to index
    %c0_28 = arith.constant 0 : index
    %c0_29 = arith.constant 0 : index
    %28 = vector.load %arg17[%27, %c0_28, %c0_29] : memref<8x8x384xf32, #tpu.memory_space<vmem>>, vector<1x8x384xf32>
    %29 = vector.shape_cast %28 : vector<1x8x384xf32> to vector<8x384xf32>
    %cst_30 = arith.constant dense<0.000000e+00> : vector<8x384xf32>
    %30 = tpu.matmul %26, %22, %cst_30 {dimension_numbers = #tpu.dot_dimension_numbers<[1], [0], [0], [1], [0, 0, 1, 1], [], []>} : vector<8x128xf32>, vector<128x384xf32>, vector<8x384xf32> -> vector<8x384xf32>
    %31 = vector.extract_strided_slice %29 {offsets = [0, 0], sizes = [8, 128], strides = [1, 1]} : vector<8x384xf32> to vector<8x128xf32>
    %32 = vector.extract_strided_slice %30 {offsets = [0, 0], sizes = [8, 128], strides = [1, 1]} : vector<8x384xf32> to vector<8x128xf32>
    %33 = arith.addf %31, %32 : vector<8x128xf32>
    %34 = arith.negf %33 : vector<8x128xf32>
    %35 = math.exp %34 : vector<8x128xf32>
    %cst_31 = arith.constant 1.000000e+00 : f32
    %36 = vector.broadcast %cst_31 : f32 to vector<8x128xf32>
    %37 = arith.addf %36, %35 : vector<8x128xf32>
    %38 = arith.divf %36, %37 : vector<8x128xf32>
    %39 = vector.extract_strided_slice %29 {offsets = [0, 256], sizes = [8, 128], strides = [1, 1]} : vector<8x384xf32> to vector<8x128xf32>
    %40 = vector.extract_strided_slice %30 {offsets = [0, 256], sizes = [8, 128], strides = [1, 1]} : vector<8x384xf32> to vector<8x128xf32>
    %41 = arith.addf %40, %25 : vector<8x128xf32>
    %42 = arith.mulf %38, %41 : vector<8x128xf32>
    %43 = arith.addf %39, %42 : vector<8x128xf32>
    %44 = math.tanh %43 : vector<8x128xf32>
    %45 = vector.extract_strided_slice %29 {offsets = [0, 128], sizes = [8, 128], strides = [1, 1]} : vector<8x384xf32> to vector<8x128xf32>
    %46 = vector.extract_strided_slice %30 {offsets = [0, 128], sizes = [8, 128], strides = [1, 1]} : vector<8x384xf32> to vector<8x128xf32>
    %47 = arith.addf %45, %46 : vector<8x128xf32>
    %48 = arith.negf %47 : vector<8x128xf32>
    %49 = math.exp %48 : vector<8x128xf32>
    %cst_32 = arith.constant 1.000000e+00 : f32
    %50 = vector.broadcast %cst_32 : f32 to vector<8x128xf32>
    %51 = arith.addf %50, %49 : vector<8x128xf32>
    %52 = arith.divf %50, %51 : vector<8x128xf32>
    %cst_33 = arith.constant 1.000000e+00 : f32
    %53 = vector.broadcast %cst_33 : f32 to vector<8x128xf32>
    %54 = arith.subf %53, %52 : vector<8x128xf32>
    %55 = arith.mulf %54, %44 : vector<8x128xf32>
    %56 = arith.mulf %52, %26 : vector<8x128xf32>
    %57 = arith.addf %55, %56 : vector<8x128xf32>
    %58 = arith.index_cast %c0_i32_27 : i32 to index
    %c0_34 = arith.constant 0 : index
    %c0_35 = arith.constant 0 : index
    %59 = vector.load %arg18[%58, %c0_34, %c0_35] : memref<8x8x128xf32, #tpu.memory_space<vmem>>, vector<1x8x128xf32>
    %60 = vector.shape_cast %59 : vector<1x8x128xf32> to vector<8x128xf32>
    %61 = vector.shape_cast %57 : vector<8x128xf32> to vector<1x8x128xf32>
    tpu.vector_store %arg18[%58, %c0_34, %c0_35], %61 {strides = array<i32>} : memref<8x8x128xf32, #tpu.memory_space<vmem>>, vector<1x8x128xf32>,
    %c1_i32 = arith.constant 1 : i32
    %62 = arith.index_cast %c1_i32 : i32 to index
    %c0_36 = arith.constant 0 : index
    %c0_37 = arith.constant 0 : index
    %63 = vector.load %arg17[%62, %c0_36, %c0_37] : memref<8x8x384xf32, #tpu.memory_space<vmem>>, vector<1x8x384xf32>
    %64 = vector.shape_cast %63 : vector<1x8x384xf32> to vector<8x384xf32>
    %cst_38 = arith.constant dense<0.000000e+00> : vector<8x384xf32>
    %65 = tpu.matmul %57, %22, %cst_38 {dimension_numbers = #tpu.dot_dimension_numbers<[1], [0], [0], [1], [0, 0, 1, 1], [], []>} : vector<8x128xf32>, vector<128x384xf32>, vector<8x384xf32> -> vector<8x384xf32>
    %66 = vector.extract_strided_slice %64 {offsets = [0, 0], sizes = [8, 128], strides = [1, 1]} : vector<8x384xf32> to vector<8x128xf32>
    %67 = vector.extract_strided_slice %65 {offsets = [0, 0], sizes = [8, 128], strides = [1, 1]} : vector<8x384xf32> to vector<8x128xf32>
    %68 = arith.addf %66, %67 : vector<8x128xf32>
    %69 = arith.negf %68 : vector<8x128xf32>
    %70 = math.exp %69 : vector<8x128xf32>
    %cst_39 = arith.constant 1.000000e+00 : f32
    %71 = vector.broadcast %cst_39 : f32 to vector<8x128xf32>
    %72 = arith.addf %71, %70 : vector<8x128xf32>
    %73 = arith.divf %71, %72 : vector<8x128xf32>
    %74 = vector.extract_strided_slice %64 {offsets = [0, 256], sizes = [8, 128], strides = [1, 1]} : vector<8x384xf32> to vector<8x128xf32>
    %75 = vector.extract_strided_slice %65 {offsets = [0, 256], sizes = [8, 128], strides = [1, 1]} : vector<8x384xf32> to vector<8x128xf32>
    %76 = arith.addf %75, %25 : vector<8x128xf32>
    %77 = arith.mulf %73, %76 : vector<8x128xf32>
    %78 = arith.addf %74, %77 : vector<8x128xf32>
    %79 = math.tanh %78 : vector<8x128xf32>
    %80 = vector.extract_strided_slice %64 {offsets = [0, 128], sizes = [8, 128], strides = [1, 1]} : vector<8x384xf32> to vector<8x128xf32>
    %81 = vector.extract_strided_slice %65 {offsets = [0, 128], sizes = [8, 128], strides = [1, 1]} : vector<8x384xf32> to vector<8x128xf32>
    %82 = arith.addf %80, %81 : vector<8x128xf32>
    %83 = arith.negf %82 : vector<8x128xf32>
    %84 = math.exp %83 : vector<8x128xf32>
    %cst_40 = arith.constant 1.000000e+00 : f32
    %85 = vector.broadcast %cst_40 : f32 to vector<8x128xf32>
    %86 = arith.addf %85, %84 : vector<8x128xf32>
    %87 = arith.divf %85, %86 : vector<8x128xf32>
    %cst_41 = arith.constant 1.000000e+00 : f32
    %88 = vector.broadcast %cst_41 : f32 to vector<8x128xf32>
    %89 = arith.subf %88, %87 : vector<8x128xf32>
    %90 = arith.mulf %89, %79 : vector<8x128xf32>
    %91 = arith.mulf %87, %57 : vector<8x128xf32>
    %92 = arith.addf %90, %91 : vector<8x128xf32>
    %93 = arith.index_cast %c1_i32 : i32 to index
    %c0_42 = arith.constant 0 : index
    %c0_43 = arith.constant 0 : index
    %94 = vector.load %arg18[%93, %c0_42, %c0_43] : memref<8x8x128xf32, #tpu.memory_space<vmem>>, vector<1x8x128xf32>
    %95 = vector.shape_cast %94 : vector<1x8x128xf32> to vector<8x128xf32>
    %96 = vector.shape_cast %92 : vector<8x128xf32> to vector<1x8x128xf32>
    tpu.vector_store %arg18[%93, %c0_42, %c0_43], %96 {strides = array<i32>} : memref<8x8x128xf32, #tpu.memory_space<vmem>>, vector<1x8x128xf32>,
    %c2_i32 = arith.constant 2 : i32
    %97 = arith.index_cast %c2_i32 : i32 to index
    %c0_44 = arith.constant 0 : index
    %c0_45 = arith.constant 0 : index
    %98 = vector.load %arg17[%97, %c0_44, %c0_45] : memref<8x8x384xf32, #tpu.memory_space<vmem>>, vector<1x8x384xf32>
    %99 = vector.shape_cast %98 : vector<1x8x384xf32> to vector<8x384xf32>
    %cst_46 = arith.constant dense<0.000000e+00> : vector<8x384xf32>
    %100 = tpu.matmul %92, %22, %cst_46 {dimension_numbers = #tpu.dot_dimension_numbers<[1], [0], [0], [1], [0, 0, 1, 1], [], []>} : vector<8x128xf32>, vector<128x384xf32>, vector<8x384xf32> -> vector<8x384xf32>
    %101 = vector.extract_strided_slice %99 {offsets = [0, 0], sizes = [8, 128], strides = [1, 1]} : vector<8x384xf32> to vector<8x128xf32>
    %102 = vector.extract_strided_slice %100 {offsets = [0, 0], sizes = [8, 128], strides = [1, 1]} : vector<8x384xf32> to vector<8x128xf32>
    %103 = arith.addf %101, %102 : vector<8x128xf32>
    %104 = arith.negf %103 : vector<8x128xf32>
    %105 = math.exp %104 : vector<8x128xf32>
    %cst_47 = arith.constant 1.000000e+00 : f32
    %106 = vector.broadcast %cst_47 : f32 to vector<8x128xf32>
    %107 = arith.addf %106, %105 : vector<8x128xf32>
    %108 = arith.divf %106, %107 : vector<8x128xf32>
    %109 = vector.extract_strided_slice %99 {offsets = [0, 256], sizes = [8, 128], strides = [1, 1]} : vector<8x384xf32> to vector<8x128xf32>
    %110 = vector.extract_strided_slice %100 {offsets = [0, 256], sizes = [8, 128], strides = [1, 1]} : vector<8x384xf32> to vector<8x128xf32>
    %111 = arith.addf %110, %25 : vector<8x128xf32>
    %112 = arith.mulf %108, %111 : vector<8x128xf32>
    %113 = arith.addf %109, %112 : vector<8x128xf32>
    %114 = math.tanh %113 : vector<8x128xf32>
    %115 = vector.extract_strided_slice %99 {offsets = [0, 128], sizes = [8, 128], strides = [1, 1]} : vector<8x384xf32> to vector<8x128xf32>
    %116 = vector.extract_strided_slice %100 {offsets = [0, 128], sizes = [8, 128], strides = [1, 1]} : vector<8x384xf32> to vector<8x128xf32>
    %117 = arith.addf %115, %116 : vector<8x128xf32>
    %118 = arith.negf %117 : vector<8x128xf32>
    %119 = math.exp %118 : vector<8x128xf32>
    %cst_48 = arith.constant 1.000000e+00 : f32
    %120 = vector.broadcast %cst_48 : f32 to vector<8x128xf32>
    %121 = arith.addf %120, %119 : vector<8x128xf32>
    %122 = arith.divf %120, %121 : vector<8x128xf32>
    %cst_49 = arith.constant 1.000000e+00 : f32
    %123 = vector.broadcast %cst_49 : f32 to vector<8x128xf32>
    %124 = arith.subf %123, %122 : vector<8x128xf32>
    %125 = arith.mulf %124, %114 : vector<8x128xf32>
    %126 = arith.mulf %122, %92 : vector<8x128xf32>
    %127 = arith.addf %125, %126 : vector<8x128xf32>
    %128 = arith.index_cast %c2_i32 : i32 to index
    %c0_50 = arith.constant 0 : index
    %c0_51 = arith.constant 0 : index
    %129 = vector.load %arg18[%128, %c0_50, %c0_51] : memref<8x8x128xf32, #tpu.memory_space<vmem>>, vector<1x8x128xf32>
    %130 = vector.shape_cast %129 : vector<1x8x128xf32> to vector<8x128xf32>
    %131 = vector.shape_cast %127 : vector<8x128xf32> to vector<1x8x128xf32>
    tpu.vector_store %arg18[%128, %c0_50, %c0_51], %131 {strides = array<i32>} : memref<8x8x128xf32, #tpu.memory_space<vmem>>, vector<1x8x128xf32>,
    %c3_i32 = arith.constant 3 : i32
    %132 = arith.index_cast %c3_i32 : i32 to index
    %c0_52 = arith.constant 0 : index
    %c0_53 = arith.constant 0 : index
    %133 = vector.load %arg17[%132, %c0_52, %c0_53] : memref<8x8x384xf32, #tpu.memory_space<vmem>>, vector<1x8x384xf32>
    %134 = vector.shape_cast %133 : vector<1x8x384xf32> to vector<8x384xf32>
    %cst_54 = arith.constant dense<0.000000e+00> : vector<8x384xf32>
    %135 = tpu.matmul %127, %22, %cst_54 {dimension_numbers = #tpu.dot_dimension_numbers<[1], [0], [0], [1], [0, 0, 1, 1], [], []>} : vector<8x128xf32>, vector<128x384xf32>, vector<8x384xf32> -> vector<8x384xf32>
    %136 = vector.extract_strided_slice %134 {offsets = [0, 0], sizes = [8, 128], strides = [1, 1]} : vector<8x384xf32> to vector<8x128xf32>
    %137 = vector.extract_strided_slice %135 {offsets = [0, 0], sizes = [8, 128], strides = [1, 1]} : vector<8x384xf32> to vector<8x128xf32>
    %138 = arith.addf %136, %137 : vector<8x128xf32>
    %139 = arith.negf %138 : vector<8x128xf32>
    %140 = math.exp %139 : vector<8x128xf32>
    %cst_55 = arith.constant 1.000000e+00 : f32
    %141 = vector.broadcast %cst_55 : f32 to vector<8x128xf32>
    %142 = arith.addf %141, %140 : vector<8x128xf32>
    %143 = arith.divf %141, %142 : vector<8x128xf32>
    %144 = vector.extract_strided_slice %134 {offsets = [0, 256], sizes = [8, 128], strides = [1, 1]} : vector<8x384xf32> to vector<8x128xf32>
    %145 = vector.extract_strided_slice %135 {offsets = [0, 256], sizes = [8, 128], strides = [1, 1]} : vector<8x384xf32> to vector<8x128xf32>
    %146 = arith.addf %145, %25 : vector<8x128xf32>
    %147 = arith.mulf %143, %146 : vector<8x128xf32>
    %148 = arith.addf %144, %147 : vector<8x128xf32>
    %149 = math.tanh %148 : vector<8x128xf32>
    %150 = vector.extract_strided_slice %134 {offsets = [0, 128], sizes = [8, 128], strides = [1, 1]} : vector<8x384xf32> to vector<8x128xf32>
    %151 = vector.extract_strided_slice %135 {offsets = [0, 128], sizes = [8, 128], strides = [1, 1]} : vector<8x384xf32> to vector<8x128xf32>
    %152 = arith.addf %150, %151 : vector<8x128xf32>
    %153 = arith.negf %152 : vector<8x128xf32>
    %154 = math.exp %153 : vector<8x128xf32>
    %cst_56 = arith.constant 1.000000e+00 : f32
    %155 = vector.broadcast %cst_56 : f32 to vector<8x128xf32>
    %156 = arith.addf %155, %154 : vector<8x128xf32>
    %157 = arith.divf %155, %156 : vector<8x128xf32>
    %cst_57 = arith.constant 1.000000e+00 : f32
    %158 = vector.broadcast %cst_57 : f32 to vector<8x128xf32>
    %159 = arith.subf %158, %157 : vector<8x128xf32>
    %160 = arith.mulf %159, %149 : vector<8x128xf32>
    %161 = arith.mulf %157, %127 : vector<8x128xf32>
    %162 = arith.addf %160, %161 : vector<8x128xf32>
    %163 = arith.index_cast %c3_i32 : i32 to index
    %c0_58 = arith.constant 0 : index
    %c0_59 = arith.constant 0 : index
    %164 = vector.load %arg18[%163, %c0_58, %c0_59] : memref<8x8x128xf32, #tpu.memory_space<vmem>>, vector<1x8x128xf32>
    %165 = vector.shape_cast %164 : vector<1x8x128xf32> to vector<8x128xf32>
    %166 = vector.shape_cast %162 : vector<8x128xf32> to vector<1x8x128xf32>
    tpu.vector_store %arg18[%163, %c0_58, %c0_59], %166 {strides = array<i32>} : memref<8x8x128xf32, #tpu.memory_space<vmem>>, vector<1x8x128xf32>,
    %c4_i32 = arith.constant 4 : i32
    %167 = arith.index_cast %c4_i32 : i32 to index
    %c0_60 = arith.constant 0 : index
    %c0_61 = arith.constant 0 : index
    %168 = vector.load %arg17[%167, %c0_60, %c0_61] : memref<8x8x384xf32, #tpu.memory_space<vmem>>, vector<1x8x384xf32>
    %169 = vector.shape_cast %168 : vector<1x8x384xf32> to vector<8x384xf32>
    %cst_62 = arith.constant dense<0.000000e+00> : vector<8x384xf32>
    %170 = tpu.matmul %162, %22, %cst_62 {dimension_numbers = #tpu.dot_dimension_numbers<[1], [0], [0], [1], [0, 0, 1, 1], [], []>} : vector<8x128xf32>, vector<128x384xf32>, vector<8x384xf32> -> vector<8x384xf32>
    %171 = vector.extract_strided_slice %169 {offsets = [0, 0], sizes = [8, 128], strides = [1, 1]} : vector<8x384xf32> to vector<8x128xf32>
    %172 = vector.extract_strided_slice %170 {offsets = [0, 0], sizes = [8, 128], strides = [1, 1]} : vector<8x384xf32> to vector<8x128xf32>
    %173 = arith.addf %171, %172 : vector<8x128xf32>
    %174 = arith.negf %173 : vector<8x128xf32>
    %175 = math.exp %174 : vector<8x128xf32>
    %cst_63 = arith.constant 1.000000e+00 : f32
    %176 = vector.broadcast %cst_63 : f32 to vector<8x128xf32>
    %177 = arith.addf %176, %175 : vector<8x128xf32>
    %178 = arith.divf %176, %177 : vector<8x128xf32>
    %179 = vector.extract_strided_slice %169 {offsets = [0, 256], sizes = [8, 128], strides = [1, 1]} : vector<8x384xf32> to vector<8x128xf32>
    %180 = vector.extract_strided_slice %170 {offsets = [0, 256], sizes = [8, 128], strides = [1, 1]} : vector<8x384xf32> to vector<8x128xf32>
    %181 = arith.addf %180, %25 : vector<8x128xf32>
    %182 = arith.mulf %178, %181 : vector<8x128xf32>
    %183 = arith.addf %179, %182 : vector<8x128xf32>
    %184 = math.tanh %183 : vector<8x128xf32>
    %185 = vector.extract_strided_slice %169 {offsets = [0, 128], sizes = [8, 128], strides = [1, 1]} : vector<8x384xf32> to vector<8x128xf32>
    %186 = vector.extract_strided_slice %170 {offsets = [0, 128], sizes = [8, 128], strides = [1, 1]} : vector<8x384xf32> to vector<8x128xf32>
    %187 = arith.addf %185, %186 : vector<8x128xf32>
    %188 = arith.negf %187 : vector<8x128xf32>
    %189 = math.exp %188 : vector<8x128xf32>
    %cst_64 = arith.constant 1.000000e+00 : f32
    %190 = vector.broadcast %cst_64 : f32 to vector<8x128xf32>
    %191 = arith.addf %190, %189 : vector<8x128xf32>
    %192 = arith.divf %190, %191 : vector<8x128xf32>
    %cst_65 = arith.constant 1.000000e+00 : f32
    %193 = vector.broadcast %cst_65 : f32 to vector<8x128xf32>
    %194 = arith.subf %193, %192 : vector<8x128xf32>
    %195 = arith.mulf %194, %184 : vector<8x128xf32>
    %196 = arith.mulf %192, %162 : vector<8x128xf32>
    %197 = arith.addf %195, %196 : vector<8x128xf32>
    %198 = arith.index_cast %c4_i32 : i32 to index
    %c0_66 = arith.constant 0 : index
    %c0_67 = arith.constant 0 : index
    %199 = vector.load %arg18[%198, %c0_66, %c0_67] : memref<8x8x128xf32, #tpu.memory_space<vmem>>, vector<1x8x128xf32>
    %200 = vector.shape_cast %199 : vector<1x8x128xf32> to vector<8x128xf32>
    %201 = vector.shape_cast %197 : vector<8x128xf32> to vector<1x8x128xf32>
    tpu.vector_store %arg18[%198, %c0_66, %c0_67], %201 {strides = array<i32>} : memref<8x8x128xf32, #tpu.memory_space<vmem>>, vector<1x8x128xf32>,
    %c5_i32 = arith.constant 5 : i32
    %202 = arith.index_cast %c5_i32 : i32 to index
    %c0_68 = arith.constant 0 : index
    %c0_69 = arith.constant 0 : index
    %203 = vector.load %arg17[%202, %c0_68, %c0_69] : memref<8x8x384xf32, #tpu.memory_space<vmem>>, vector<1x8x384xf32>
    %204 = vector.shape_cast %203 : vector<1x8x384xf32> to vector<8x384xf32>
    %cst_70 = arith.constant dense<0.000000e+00> : vector<8x384xf32>
    %205 = tpu.matmul %197, %22, %cst_70 {dimension_numbers = #tpu.dot_dimension_numbers<[1], [0], [0], [1], [0, 0, 1, 1], [], []>} : vector<8x128xf32>, vector<128x384xf32>, vector<8x384xf32> -> vector<8x384xf32>
    %206 = vector.extract_strided_slice %204 {offsets = [0, 0], sizes = [8, 128], strides = [1, 1]} : vector<8x384xf32> to vector<8x128xf32>
    %207 = vector.extract_strided_slice %205 {offsets = [0, 0], sizes = [8, 128], strides = [1, 1]} : vector<8x384xf32> to vector<8x128xf32>
    %208 = arith.addf %206, %207 : vector<8x128xf32>
    %209 = arith.negf %208 : vector<8x128xf32>
    %210 = math.exp %209 : vector<8x128xf32>
    %cst_71 = arith.constant 1.000000e+00 : f32
    %211 = vector.broadcast %cst_71 : f32 to vector<8x128xf32>
    %212 = arith.addf %211, %210 : vector<8x128xf32>
    %213 = arith.divf %211, %212 : vector<8x128xf32>
    %214 = vector.extract_strided_slice %204 {offsets = [0, 256], sizes = [8, 128], strides = [1, 1]} : vector<8x384xf32> to vector<8x128xf32>
    %215 = vector.extract_strided_slice %205 {offsets = [0, 256], sizes = [8, 128], strides = [1, 1]} : vector<8x384xf32> to vector<8x128xf32>
    %216 = arith.addf %215, %25 : vector<8x128xf32>
    %217 = arith.mulf %213, %216 : vector<8x128xf32>
    %218 = arith.addf %214, %217 : vector<8x128xf32>
    %219 = math.tanh %218 : vector<8x128xf32>
    %220 = vector.extract_strided_slice %204 {offsets = [0, 128], sizes = [8, 128], strides = [1, 1]} : vector<8x384xf32> to vector<8x128xf32>
    %221 = vector.extract_strided_slice %205 {offsets = [0, 128], sizes = [8, 128], strides = [1, 1]} : vector<8x384xf32> to vector<8x128xf32>
    %222 = arith.addf %220, %221 : vector<8x128xf32>
    %223 = arith.negf %222 : vector<8x128xf32>
    %224 = math.exp %223 : vector<8x128xf32>
    %cst_72 = arith.constant 1.000000e+00 : f32
    %225 = vector.broadcast %cst_72 : f32 to vector<8x128xf32>
    %226 = arith.addf %225, %224 : vector<8x128xf32>
    %227 = arith.divf %225, %226 : vector<8x128xf32>
    %cst_73 = arith.constant 1.000000e+00 : f32
    %228 = vector.broadcast %cst_73 : f32 to vector<8x128xf32>
    %229 = arith.subf %228, %227 : vector<8x128xf32>
    %230 = arith.mulf %229, %219 : vector<8x128xf32>
    %231 = arith.mulf %227, %197 : vector<8x128xf32>
    %232 = arith.addf %230, %231 : vector<8x128xf32>
    %233 = arith.index_cast %c5_i32 : i32 to index
    %c0_74 = arith.constant 0 : index
    %c0_75 = arith.constant 0 : index
    %234 = vector.load %arg18[%233, %c0_74, %c0_75] : memref<8x8x128xf32, #tpu.memory_space<vmem>>, vector<1x8x128xf32>
    %235 = vector.shape_cast %234 : vector<1x8x128xf32> to vector<8x128xf32>
    %236 = vector.shape_cast %232 : vector<8x128xf32> to vector<1x8x128xf32>
    tpu.vector_store %arg18[%233, %c0_74, %c0_75], %236 {strides = array<i32>} : memref<8x8x128xf32, #tpu.memory_space<vmem>>, vector<1x8x128xf32>,
    %c6_i32 = arith.constant 6 : i32
    %237 = arith.index_cast %c6_i32 : i32 to index
    %c0_76 = arith.constant 0 : index
    %c0_77 = arith.constant 0 : index
    %238 = vector.load %arg17[%237, %c0_76, %c0_77] : memref<8x8x384xf32, #tpu.memory_space<vmem>>, vector<1x8x384xf32>
    %239 = vector.shape_cast %238 : vector<1x8x384xf32> to vector<8x384xf32>
    %cst_78 = arith.constant dense<0.000000e+00> : vector<8x384xf32>
    %240 = tpu.matmul %232, %22, %cst_78 {dimension_numbers = #tpu.dot_dimension_numbers<[1], [0], [0], [1], [0, 0, 1, 1], [], []>} : vector<8x128xf32>, vector<128x384xf32>, vector<8x384xf32> -> vector<8x384xf32>
    %241 = vector.extract_strided_slice %239 {offsets = [0, 0], sizes = [8, 128], strides = [1, 1]} : vector<8x384xf32> to vector<8x128xf32>
    %242 = vector.extract_strided_slice %240 {offsets = [0, 0], sizes = [8, 128], strides = [1, 1]} : vector<8x384xf32> to vector<8x128xf32>
    %243 = arith.addf %241, %242 : vector<8x128xf32>
    %244 = arith.negf %243 : vector<8x128xf32>
    %245 = math.exp %244 : vector<8x128xf32>
    %cst_79 = arith.constant 1.000000e+00 : f32
    %246 = vector.broadcast %cst_79 : f32 to vector<8x128xf32>
    %247 = arith.addf %246, %245 : vector<8x128xf32>
    %248 = arith.divf %246, %247 : vector<8x128xf32>
    %249 = vector.extract_strided_slice %239 {offsets = [0, 256], sizes = [8, 128], strides = [1, 1]} : vector<8x384xf32> to vector<8x128xf32>
    %250 = vector.extract_strided_slice %240 {offsets = [0, 256], sizes = [8, 128], strides = [1, 1]} : vector<8x384xf32> to vector<8x128xf32>
    %251 = arith.addf %250, %25 : vector<8x128xf32>
    %252 = arith.mulf %248, %251 : vector<8x128xf32>
    %253 = arith.addf %249, %252 : vector<8x128xf32>
    %254 = math.tanh %253 : vector<8x128xf32>
    %255 = vector.extract_strided_slice %239 {offsets = [0, 128], sizes = [8, 128], strides = [1, 1]} : vector<8x384xf32> to vector<8x128xf32>
    %256 = vector.extract_strided_slice %240 {offsets = [0, 128], sizes = [8, 128], strides = [1, 1]} : vector<8x384xf32> to vector<8x128xf32>
    %257 = arith.addf %255, %256 : vector<8x128xf32>
    %258 = arith.negf %257 : vector<8x128xf32>
    %259 = math.exp %258 : vector<8x128xf32>
    %cst_80 = arith.constant 1.000000e+00 : f32
    %260 = vector.broadcast %cst_80 : f32 to vector<8x128xf32>
    %261 = arith.addf %260, %259 : vector<8x128xf32>
    %262 = arith.divf %260, %261 : vector<8x128xf32>
    %cst_81 = arith.constant 1.000000e+00 : f32
    %263 = vector.broadcast %cst_81 : f32 to vector<8x128xf32>
    %264 = arith.subf %263, %262 : vector<8x128xf32>
    %265 = arith.mulf %264, %254 : vector<8x128xf32>
    %266 = arith.mulf %262, %232 : vector<8x128xf32>
    %267 = arith.addf %265, %266 : vector<8x128xf32>
    %268 = arith.index_cast %c6_i32 : i32 to index
    %c0_82 = arith.constant 0 : index
    %c0_83 = arith.constant 0 : index
    %269 = vector.load %arg18[%268, %c0_82, %c0_83] : memref<8x8x128xf32, #tpu.memory_space<vmem>>, vector<1x8x128xf32>
    %270 = vector.shape_cast %269 : vector<1x8x128xf32> to vector<8x128xf32>
    %271 = vector.shape_cast %267 : vector<8x128xf32> to vector<1x8x128xf32>
    tpu.vector_store %arg18[%268, %c0_82, %c0_83], %271 {strides = array<i32>} : memref<8x8x128xf32, #tpu.memory_space<vmem>>, vector<1x8x128xf32>,
    %c7_i32 = arith.constant 7 : i32
    %272 = arith.index_cast %c7_i32 : i32 to index
    %c0_84 = arith.constant 0 : index
    %c0_85 = arith.constant 0 : index
    %273 = vector.load %arg17[%272, %c0_84, %c0_85] : memref<8x8x384xf32, #tpu.memory_space<vmem>>, vector<1x8x384xf32>
    %274 = vector.shape_cast %273 : vector<1x8x384xf32> to vector<8x384xf32>
    %cst_86 = arith.constant dense<0.000000e+00> : vector<8x384xf32>
    %275 = tpu.matmul %267, %22, %cst_86 {dimension_numbers = #tpu.dot_dimension_numbers<[1], [0], [0], [1], [0, 0, 1, 1], [], []>} : vector<8x128xf32>, vector<128x384xf32>, vector<8x384xf32> -> vector<8x384xf32>
    %276 = vector.extract_strided_slice %274 {offsets = [0, 0], sizes = [8, 128], strides = [1, 1]} : vector<8x384xf32> to vector<8x128xf32>
    %277 = vector.extract_strided_slice %275 {offsets = [0, 0], sizes = [8, 128], strides = [1, 1]} : vector<8x384xf32> to vector<8x128xf32>
    %278 = arith.addf %276, %277 : vector<8x128xf32>
    %279 = arith.negf %278 : vector<8x128xf32>
    %280 = math.exp %279 : vector<8x128xf32>
    %cst_87 = arith.constant 1.000000e+00 : f32
    %281 = vector.broadcast %cst_87 : f32 to vector<8x128xf32>
    %282 = arith.addf %281, %280 : vector<8x128xf32>
    %283 = arith.divf %281, %282 : vector<8x128xf32>
    %284 = vector.extract_strided_slice %274 {offsets = [0, 256], sizes = [8, 128], strides = [1, 1]} : vector<8x384xf32> to vector<8x128xf32>
    %285 = vector.extract_strided_slice %275 {offsets = [0, 256], sizes = [8, 128], strides = [1, 1]} : vector<8x384xf32> to vector<8x128xf32>
    %286 = arith.addf %285, %25 : vector<8x128xf32>
    %287 = arith.mulf %283, %286 : vector<8x128xf32>
    %288 = arith.addf %284, %287 : vector<8x128xf32>
    %289 = math.tanh %288 : vector<8x128xf32>
    %290 = vector.extract_strided_slice %274 {offsets = [0, 128], sizes = [8, 128], strides = [1, 1]} : vector<8x384xf32> to vector<8x128xf32>
    %291 = vector.extract_strided_slice %275 {offsets = [0, 128], sizes = [8, 128], strides = [1, 1]} : vector<8x384xf32> to vector<8x128xf32>
    %292 = arith.addf %290, %291 : vector<8x128xf32>
    %293 = arith.negf %292 : vector<8x128xf32>
    %294 = math.exp %293 : vector<8x128xf32>
    %cst_88 = arith.constant 1.000000e+00 : f32
    %295 = vector.broadcast %cst_88 : f32 to vector<8x128xf32>
    %296 = arith.addf %295, %294 : vector<8x128xf32>
    %297 = arith.divf %295, %296 : vector<8x128xf32>
    %cst_89 = arith.constant 1.000000e+00 : f32
    %298 = vector.broadcast %cst_89 : f32 to vector<8x128xf32>
    %299 = arith.subf %298, %297 : vector<8x128xf32>
    %300 = arith.mulf %299, %289 : vector<8x128xf32>
    %301 = arith.mulf %297, %267 : vector<8x128xf32>
    %302 = arith.addf %300, %301 : vector<8x128xf32>
    %303 = arith.index_cast %c7_i32 : i32 to index
    %c0_90 = arith.constant 0 : index
    %c0_91 = arith.constant 0 : index
    %304 = vector.load %arg18[%303, %c0_90, %c0_91] : memref<8x8x128xf32, #tpu.memory_space<vmem>>, vector<1x8x128xf32>
    %305 = vector.shape_cast %304 : vector<1x8x128xf32> to vector<8x128xf32>
    %306 = vector.shape_cast %302 : vector<8x128xf32> to vector<1x8x128xf32>
    tpu.vector_store %arg18[%303, %c0_90, %c0_91], %306 {strides = array<i32>} : memref<8x8x128xf32, #tpu.memory_space<vmem>>, vector<1x8x128xf32>,
    %c8_i32 = arith.constant 8 : i32
    %c0_92 = arith.constant 0 : index
    %c0_93 = arith.constant 0 : index
    %307 = vector.load %arg16[%c0_92, %c0_93] : memref<8x128xf32, #tpu.memory_space<vmem>>, vector<8x128xf32>
    tpu.vector_store %arg16[%c0_92, %c0_93], %302 {strides = array<i32>} : memref<8x128xf32, #tpu.memory_space<vmem>>, vector<8x128xf32>,
    %c0_94 = arith.constant 0 : index
    %c0_95 = arith.constant 0 : index
    %c0_96 = arith.constant 0 : index
    %308 = vector.load %arg18[%c0_94, %c0_95, %c0_96] : memref<8x8x128xf32, #tpu.memory_space<vmem>>, vector<8x8x128xf32>
    %309 = vector.shape_cast %308 : vector<8x8x128xf32> to vector<64x128xf32>
    %c0_97 = arith.constant 0 : index
    %c0_98 = arith.constant 0 : index
    %310 = vector.load %arg11[%c0_97, %c0_98] : memref<128x8xf32, #tpu.memory_space<vmem>>, vector<128x8xf32>
    %cst_99 = arith.constant dense<0.000000e+00> : vector<64x8xf32>
    %311 = tpu.matmul %309, %310, %cst_99 {dimension_numbers = #tpu.dot_dimension_numbers<[1], [0], [0], [1], [0, 0, 1, 1], [], []>} : vector<64x128xf32>, vector<128x8xf32>, vector<64x8xf32> -> vector<64x8xf32>
    %c0_100 = arith.constant 0 : index
    %c0_101 = arith.constant 0 : index
    %312 = vector.load %arg12[%c0_100, %c0_101] : memref<1x8xf32, #tpu.memory_space<vmem>>, vector<1x8xf32>
    %313 = vector.broadcast %312 : vector<1x8xf32> to vector<64x8xf32>
    %314 = arith.addf %311, %313 : vector<64x8xf32>
    %315 = arith.addf %314, %11 : vector<64x8xf32>
    %c0_102 = arith.constant 0 : index
    %c0_103 = arith.constant 0 : index
    %316 = vector.load %arg13[%c0_102, %c0_103] : memref<8x16xf32, #tpu.memory_space<vmem>>, vector<8x16xf32>
    %cst_104 = arith.constant dense<0.000000e+00> : vector<64x16xf32>
    %317 = tpu.matmul %315, %316, %cst_104 {dimension_numbers = #tpu.dot_dimension_numbers<[1], [0], [0], [1], [0, 0, 1, 1], [], []>} : vector<64x8xf32>, vector<8x16xf32>, vector<64x16xf32> -> vector<64x16xf32>
    %c0_105 = arith.constant 0 : index
    %c0_106 = arith.constant 0 : index
    %318 = vector.load %arg14[%c0_105, %c0_106] : memref<1x16xf32, #tpu.memory_space<vmem>>, vector<1x16xf32>
    %319 = vector.broadcast %318 : vector<1x16xf32> to vector<64x16xf32>
    %320 = arith.addf %317, %319 : vector<64x16xf32>
    %321 = vector.shape_cast %320 : vector<64x16xf32> to vector<8x8x16xf32>
    %c0_107 = arith.constant 0 : index
    %c0_108 = arith.constant 0 : index
    %c0_109 = arith.constant 0 : index
    %322 = vector.load %arg15[%c0_107, %c0_108, %c0_109] : memref<8x8x16xf32, #tpu.memory_space<vmem>>, vector<8x8x16xf32>
    tpu.vector_store %arg15[%c0_107, %c0_108, %c0_109], %321 {strides = array<i32>} : memref<8x8x16xf32, #tpu.memory_space<vmem>>, vector<8x8x16xf32>,
    return
  }
  func.func @transform_0(%arg0: i32, %arg1: i32) -> (i32, i32, i32) {
    %c0_i32 = arith.constant 0 : i32
    %c0_i32_0 = arith.constant 0 : i32
    return %arg1, %arg0, %c0_i32 : i32, i32, i32
  }
  func.func @transform_1(%arg0: i32, %arg1: i32) -> (i32, i32, i32) {
    %c0_i32 = arith.constant 0 : i32
    %c0_i32_0 = arith.constant 0 : i32
    return %arg1, %arg0, %c0_i32 : i32, i32, i32
  }
  func.func @transform_2(%arg0: i32, %arg1: i32) -> (i32, i32) {
    %c0_i32 = arith.constant 0 : i32
    %c0_i32_0 = arith.constant 0 : i32
    %c0_i32_1 = arith.constant 0 : i32
    return %c0_i32, %c0_i32_0 : i32, i32
  }
  func.func @transform_3(%arg0: i32, %arg1: i32) -> (i32, i32) {
    %c0_i32 = arith.constant 0 : i32
    %c0_i32_0 = arith.constant 0 : i32
    %c0_i32_1 = arith.constant 0 : i32
    return %c0_i32, %c0_i32_0 : i32, i32
  }
  func.func @transform_4(%arg0: i32, %arg1: i32) -> (i32, i32) {
    %c0_i32 = arith.constant 0 : i32
    %c0_i32_0 = arith.constant 0 : i32
    %c0_i32_1 = arith.constant 0 : i32
    return %c0_i32, %c0_i32_0 : i32, i32
  }
  func.func @transform_5(%arg0: i32, %arg1: i32) -> (i32, i32) {
    %c0_i32 = arith.constant 0 : i32
    %c0_i32_0 = arith.constant 0 : i32
    %c0_i32_1 = arith.constant 0 : i32
    return %c0_i32, %c0_i32_0 : i32, i32
  }
  func.func @transform_6(%arg0: i32, %arg1: i32) -> (i32, i32) {
    %c0_i32 = arith.constant 0 : i32
    %c0_i32_0 = arith.constant 0 : i32
    %c0_i32_1 = arith.constant 0 : i32
    return %c0_i32, %c0_i32_0 : i32, i32
  }
  func.func @transform_7(%arg0: i32, %arg1: i32) -> (i32, i32) {
    %c0_i32 = arith.constant 0 : i32
    %c0_i32_0 = arith.constant 0 : i32
    %c0_i32_1 = arith.constant 0 : i32
    return %c0_i32, %c0_i32_0 : i32, i32
  }
  func.func @transform_8(%arg0: i32, %arg1: i32) -> (i32, i32) {
    %c0_i32 = arith.constant 0 : i32
    %c0_i32_0 = arith.constant 0 : i32
    %c0_i32_1 = arith.constant 0 : i32
    return %c0_i32, %c0_i32_0 : i32, i32
  }
  func.func @transform_9(%arg0: i32, %arg1: i32) -> (i32, i32) {
    %c0_i32 = arith.constant 0 : i32
    %c0_i32_0 = arith.constant 0 : i32
    %c0_i32_1 = arith.constant 0 : i32
    return %c0_i32, %c0_i32_0 : i32, i32
  }
  func.func @transform_10(%arg0: i32, %arg1: i32) -> (i32, i32) {
    %c0_i32 = arith.constant 0 : i32
    %c0_i32_0 = arith.constant 0 : i32
    %c0_i32_1 = arith.constant 0 : i32
    return %c0_i32, %c0_i32_0 : i32, i32
  }
  func.func @transform_11(%arg0: i32, %arg1: i32) -> (i32, i32) {
    %c0_i32 = arith.constant 0 : i32
    %c0_i32_0 = arith.constant 0 : i32
    %c0_i32_1 = arith.constant 0 : i32
    return %c0_i32, %c0_i32_0 : i32, i32
  }
  func.func @transform_12(%arg0: i32, %arg1: i32) -> (i32, i32) {
    %c0_i32 = arith.constant 0 : i32
    %c0_i32_0 = arith.constant 0 : i32
    %c0_i32_1 = arith.constant 0 : i32
    return %c0_i32, %c0_i32_0 : i32, i32
  }
  func.func @transform_13(%arg0: i32, %arg1: i32) -> (i32, i32, i32) {
    %c0_i32 = arith.constant 0 : i32
    %c0_i32_0 = arith.constant 0 : i32
    return %arg1, %arg0, %c0_i32 : i32, i32, i32
  }
}

</mosaic_0001>

<llo_original>
// kernel: rnn_dynamics_forward.1
$region0: #{rnn_dynamics_forward.1}
  #allocation0 [shape = 'u32[]', space=smem, size = 0x4, offset = 0x4, fixed_abs, tag = 'smem constant byte address 0x4 - core index']
  #allocation1 [shape = 'u32[144,128]{1,0:T(1,128)}', space=vmem, size = 0x12000, scoped, tag = 'internal scratch']
  #allocation2 [shape = 'f32[8,128]{1,0:T(8,128)}', space=vmem, size = 0x1000, scoped, tag = 'scratch operand']
  #allocation3 [shape = 'f32[8,8,384]{2,1,0:T(8,128)}', space=vmem, size = 0x18000, scoped, tag = 'scratch operand']
  #allocation4 [shape = 'f32[8,8,128]{2,1,0:T(8,128)}', space=vmem, size = 0x8000, scoped, tag = 'scratch operand']
  %s0 = inlined_call_operand.vmem [shape: f32[8,8,16], index: 0, kind: input, shape index: {}]
  %s1 = inlined_call_operand.vmem [shape: f32[8,8,4], index: 1, kind: input, shape index: {}]
  %s2 = inlined_call_operand.vmem [shape: f32[16,8], index: 2, kind: input, shape index: {}]
  %s3 = inlined_call_operand.hbm [shape: f32[1,8], index: 3, kind: input, shape index: {}]
  %s4 = inlined_call_operand.vmem [shape: f32[8,384], index: 4, kind: input, shape index: {}]
  %s5 = inlined_call_operand.hbm [shape: f32[4,384], index: 5, kind: input, shape index: {}]
  %s6 = inlined_call_operand.hbm [shape: f32[1,384], index: 6, kind: input, shape index: {}]
  %s7 = inlined_call_operand.vmem [shape: f32[128,384], index: 7, kind: input, shape index: {}]
  %s8 = inlined_call_operand.hbm [shape: f32[1,128], index: 8, kind: input, shape index: {}]
  %s9 = inlined_call_operand.vmem [shape: f32[128,8], index: 9, kind: input, shape index: {}]
  %s10 = inlined_call_operand.hbm [shape: f32[1,8], index: 10, kind: input, shape index: {}]
  %s11 = inlined_call_operand.vmem [shape: f32[8,16], index: 11, kind: input, shape index: {}]
  %s12 = inlined_call_operand.hbm [shape: f32[1,16], index: 12, kind: input, shape index: {}]
  %s13 = inlined_call_operand.vmem [shape: f32[8,8,16], index: 13, kind: output, shape index: {}]
  %s14 = sld [smem:[#allocation0]]
  $region90: #{rnn_dynamics_forward.1} parent=0
    _
  %s16 = ssub.s32 1, %s14
  %s17 = scalar_select 0, %s16, %s14
  $region1: #{rnn_dynamics_forward.1} parent=0
    #allocation5 [shape = 'u8[512]{0}', space=vmem, size = 0x400, scoped, tag = 'input window, operand 3, single buffered']
    #allocation6 [shape = 's32[1]{0}', space=sflag, size = 0x4, scoped, tag = 'scoped memory for rnn_dynamics_forward.1']
    #allocation7 [shape = 'u8[6144]{0}', space=vmem, size = 0x1800, scoped, tag = 'input window, operand 5, single buffered']
    #allocation8 [shape = 's32[1]{0}', space=sflag, size = 0x4, scoped, tag = 'scoped memory for rnn_dynamics_forward.1']
    #allocation9 [shape = 'u8[1536]{0}', space=vmem, size = 0x800, scoped, tag = 'input window, operand 6, single buffered']
    #allocation10 [shape = 'u8[512]{0}', space=vmem, size = 0x400, scoped, tag = 'input window, operand 8, single buffered']
    #allocation11 [shape = 's32[1]{0}', space=sflag, size = 0x4, scoped, tag = 'scoped memory for rnn_dynamics_forward.1']
    #allocation12 [shape = 'u8[512]{0}', space=vmem, size = 0x400, scoped, tag = 'input window, operand 10, single buffered']
    #allocation13 [shape = 'u8[512]{0}', space=vmem, size = 0x400, scoped, tag = 'input window, operand 12, single buffered']
    #allocation14 [shape = 's32[1]{0}', space=sflag, size = 0x4, scoped, tag = 'scoped memory for rnn_dynamics_forward.1']
    %18 = vsyncpa [#allocation6], 0
    %19 = vsyncpa [#allocation8], 0
    %20 = vsyncpa [#allocation11], 0
    %21 = vsyncpa [#allocation14], 0
    // Predicated region
    $region2: #{rnn_dynamics_forward.1} parent=1 // pred_check
      _
    $region3: #{rnn_dynamics_forward.1} parent=1 // pred_check_branch
      %23 = sbr.rel (0) target = $region5
    $region4: #{rnn_dynamics_forward.1} parent=1 // pred_region
      _
    $region5: #{rnn_dynamics_forward.1} parent=1 // pred_fallthru
      _
    // Predicated region
    $region6: #{rnn_dynamics_forward.1} parent=1 // pred_check
      _
    $region7: #{rnn_dynamics_forward.1} parent=1 // pred_check_branch
      %25 = sbr.rel (0) target = $region9
    $region8: #{rnn_dynamics_forward.1} parent=1 // pred_region
      _
    $region9: #{rnn_dynamics_forward.1} parent=1 // pred_fallthru
      _
    // Predicated region
    $region10: #{rnn_dynamics_forward.1} parent=1 // pred_check
      _
    $region11: #{rnn_dynamics_forward.1} parent=1 // pred_check_branch
      %27 = sbr.rel (0) target = $region13
    $region12: #{rnn_dynamics_forward.1} parent=1 // pred_region
      _
    $region13: #{rnn_dynamics_forward.1} parent=1 // pred_fallthru
      _
    // Predicated region
    $region14: #{rnn_dynamics_forward.1} parent=1 // pred_check
      _
    $region15: #{rnn_dynamics_forward.1} parent=1 // pred_check_branch
      %29 = sbr.rel (0) target = $region17
    $region16: #{rnn_dynamics_forward.1} parent=1 // pred_region
      %s31 = ssub.s32 16, 16
      %32 = vsyncadd [#allocation6], %s31
      %s34 = sshll.u32 [#allocation5], 4
      %s35 = int_to_ptr.vmem [resolvable:$true] %s34
      %37 = dma.hbm_to_vmem [thread:$0]  %s3, 16, %s35, [#allocation6]
    $region17: #{rnn_dynamics_forward.1} parent=1 // pred_fallthru
      _
    // Predicated region
    $region18: #{rnn_dynamics_forward.1} parent=1 // pred_check
      _
    $region19: #{rnn_dynamics_forward.1} parent=1 // pred_check_branch
      %39 = sbr.rel (0) target = $region21
    $region20: #{rnn_dynamics_forward.1} parent=1 // pred_region
      _
    $region21: #{rnn_dynamics_forward.1} parent=1 // pred_fallthru
      _
    // Predicated region
    $region22: #{rnn_dynamics_forward.1} parent=1 // pred_check
      _
    $region23: #{rnn_dynamics_forward.1} parent=1 // pred_check_branch
      %41 = sbr.rel (0) target = $region25
    $region24: #{rnn_dynamics_forward.1} parent=1 // pred_region
      %s43 = ssub.s32 192, 192
      %44 = vsyncadd [#allocation8], %s43
      %s46 = sshll.u32 [#allocation7], 4
      %s47 = int_to_ptr.vmem [resolvable:$true] %s46
      %49 = dma.hbm_to_vmem [thread:$0]  %s5, 192, %s47, [#allocation8]
    $region25: #{rnn_dynamics_forward.1} parent=1 // pred_fallthru
      _
    // Predicated region
    $region26: #{rnn_dynamics_forward.1} parent=1 // pred_check
      _
    $region27: #{rnn_dynamics_forward.1} parent=1 // pred_check_branch
      %51 = sbr.rel (0) target = $region29
    $region28: #{rnn_dynamics_forward.1} parent=1 // pred_region
      %s53 = ssub.s32 48, 48
      %54 = vsyncadd [#allocation8], %s53
      %s56 = sshll.u32 [#allocation9], 4
      %s57 = int_to_ptr.vmem [resolvable:$true] %s56
      %59 = dma.hbm_to_vmem [thread:$0]  %s6, 48, %s57, [#allocation8]
    $region29: #{rnn_dynamics_forward.1} parent=1 // pred_fallthru
      _
    // Predicated region
    $region30: #{rnn_dynamics_forward.1} parent=1 // pred_check
      _
    $region31: #{rnn_dynamics_forward.1} parent=1 // pred_check_branch
      %61 = sbr.rel (0) target = $region33
    $region32: #{rnn_dynamics_forward.1} parent=1 // pred_region
      _
    $region33: #{rnn_dynamics_forward.1} parent=1 // pred_fallthru
      _
    // Predicated region
    $region34: #{rnn_dynamics_forward.1} parent=1 // pred_check
      _
    $region35: #{rnn_dynamics_forward.1} parent=1 // pred_check_branch
      %63 = sbr.rel (0) target = $region37
    $region36: #{rnn_dynamics_forward.1} parent=1 // pred_region
      %s65 = ssub.s32 16, 16
      %66 = vsyncadd [#allocation11], %s65
      %s68 = sshll.u32 [#allocation10], 4
      %s69 = int_to_ptr.vmem [resolvable:$true] %s68
      %71 = dma.hbm_to_vmem [thread:$0]  %s8, 16, %s69, [#allocation11]
    $region37: #{rnn_dynamics_forward.1} parent=1 // pred_fallthru
      _
    // Predicated region
    $region38: #{rnn_dynamics_forward.1} parent=1 // pred_check
      _
    $region39: #{rnn_dynamics_forward.1} parent=1 // pred_check_branch
      %73 = sbr.rel (0) target = $region41
    $region40: #{rnn_dynamics_forward.1} parent=1 // pred_region
      _
    $region41: #{rnn_dynamics_forward.1} parent=1 // pred_fallthru
      _
    // Predicated region
    $region42: #{rnn_dynamics_forward.1} parent=1 // pred_check
      _
    $region43: #{rnn_dynamics_forward.1} parent=1 // pred_check_branch
      %75 = sbr.rel (0) target = $region45
    $region44: #{rnn_dynamics_forward.1} parent=1 // pred_region
      %s77 = ssub.s32 16, 16
      %78 = vsyncadd [#allocation11], %s77
      %s80 = sshll.u32 [#allocation12], 4
      %s81 = int_to_ptr.vmem [resolvable:$true] %s80
      %83 = dma.hbm_to_vmem [thread:$0]  %s10, 16, %s81, [#allocation11]
    $region45: #{rnn_dynamics_forward.1} parent=1 // pred_fallthru
      _
    // Predicated region
    $region46: #{rnn_dynamics_forward.1} parent=1 // pred_check
      _
    $region47: #{rnn_dynamics_forward.1} parent=1 // pred_check_branch
      %85 = sbr.rel (0) target = $region49
    $region48: #{rnn_dynamics_forward.1} parent=1 // pred_region
      _
    $region49: #{rnn_dynamics_forward.1} parent=1 // pred_fallthru
      _
    // Predicated region
    $region50: #{rnn_dynamics_forward.1} parent=1 // pred_check
      _
    $region51: #{rnn_dynamics_forward.1} parent=1 // pred_check_branch
      %87 = sbr.rel (0) target = $region53
    $region52: #{rnn_dynamics_forward.1} parent=1 // pred_region
      %s89 = ssub.s32 16, 16
      %90 = vsyncadd [#allocation14], %s89
      %s92 = sshll.u32 [#allocation13], 4
      %s93 = int_to_ptr.vmem [resolvable:$true] %s92
      %95 = dma.hbm_to_vmem [thread:$0]  %s12, 16, %s93, [#allocation14]
    $region53: #{rnn_dynamics_forward.1} parent=1 // pred_fallthru
      _
    // Predicated region
    $region54: #{rnn_dynamics_forward.1} parent=1 // pred_check
      _
    $region55: #{rnn_dynamics_forward.1} parent=1 // pred_check_branch
      %97 = sbr.rel (0) target = $region57
    $region56: #{rnn_dynamics_forward.1} parent=1 // pred_region
      %98 = dma.done [#allocation6], 16
    $region57: #{rnn_dynamics_forward.1} parent=1 // pred_fallthru
      _
    // Predicated region
    $region58: #{rnn_dynamics_forward.1} parent=1 // pred_check
      _
    $region59: #{rnn_dynamics_forward.1} parent=1 // pred_check_branch
      %100 = sbr.rel (0) target = $region61
    $region60: #{rnn_dynamics_forward.1} parent=1 // pred_region
      %101 = dma.done [#allocation8], 192
    $region61: #{rnn_dynamics_forward.1} parent=1 // pred_fallthru
      _
    // Predicated region
    $region62: #{rnn_dynamics_forward.1} parent=1 // pred_check
      _
    $region63: #{rnn_dynamics_forward.1} parent=1 // pred_check_branch
      %103 = sbr.rel (0) target = $region65
    $region64: #{rnn_dynamics_forward.1} parent=1 // pred_region
      %104 = dma.done [#allocation8], 48
    $region65: #{rnn_dynamics_forward.1} parent=1 // pred_fallthru
      _
    // Predicated region
    $region66: #{rnn_dynamics_forward.1} parent=1 // pred_check
      _
    $region67: #{rnn_dynamics_forward.1} parent=1 // pred_check_branch
      %106 = sbr.rel (0) target = $region69
    $region68: #{rnn_dynamics_forward.1} parent=1 // pred_region
      %107 = dma.done [#allocation11], 16
    $region69: #{rnn_dynamics_forward.1} parent=1 // pred_fallthru
      _
    // Predicated region
    $region70: #{rnn_dynamics_forward.1} parent=1 // pred_check
      _
    $region71: #{rnn_dynamics_forward.1} parent=1 // pred_check_branch
      %109 = sbr.rel (0) target = $region73
    $region72: #{rnn_dynamics_forward.1} parent=1 // pred_region
      %110 = dma.done [#allocation11], 16
    $region73: #{rnn_dynamics_forward.1} parent=1 // pred_fallthru
      _
    // Predicated region
    $region74: #{rnn_dynamics_forward.1} parent=1 // pred_check
      _
    $region75: #{rnn_dynamics_forward.1} parent=1 // pred_check_branch
      %112 = sbr.rel (0) target = $region77
    $region76: #{rnn_dynamics_forward.1} parent=1 // pred_region
      %113 = dma.done [#allocation14], 16
    $region77: #{rnn_dynamics_forward.1} parent=1 // pred_fallthru
      _
    %p114 = scmp.eq.s32.totalorder 0, 0
    // Predicated region
    $region78: #{rnn_dynamics_forward.1} parent=1 // pred_check
      %p115 = pneg %p114
    $region79: #{rnn_dynamics_forward.1} parent=1 // pred_check_branch
      %117 = sbr.rel (%p115) target = $region81
    $region80: #{rnn_dynamics_forward.1} parent=1 // pred_region
      %118 = vst [vmem:[#allocation2] sm:$0xff] 0.0
    $region81: #{rnn_dynamics_forward.1} parent=1 // pred_fallthru
      _
    %v119 = vld [vmem:[%s0] sm:$0xff]
    %v120 = vld [vmem:[%s0 + $0x8] sm:$0xff]
    %v121 = vld [vmem:[%s0 + $0x10] sm:$0xff]
    %v122 = vld [vmem:[%s0 + $0x18] sm:$0xff]
    %v123 = vld [vmem:[%s0 + $0x20] sm:$0xff]
    %v124 = vld [vmem:[%s0 + $0x28] sm:$0xff]
    %v125 = vld [vmem:[%s0 + $0x30] sm:$0xff]
    %v126 = vld [vmem:[%s0 + $0x38] sm:$0xff]
    %v127 = vld [vmem:[%s1] sm:$0xff]
    %v128 = vld [vmem:[%s1 + $0x8] sm:$0xff]
    %v129 = vld [vmem:[%s1 + $0x10] sm:$0xff]
    %v130 = vld [vmem:[%s1 + $0x18] sm:$0xff]
    %v131 = vld [vmem:[%s1 + $0x20] sm:$0xff]
    %v132 = vld [vmem:[%s1 + $0x28] sm:$0xff]
    %v133 = vld [vmem:[%s1 + $0x30] sm:$0xff]
    %v134 = vld [vmem:[%s1 + $0x38] sm:$0xff]
    %v135 = vld [vmem:[%s2] sm:$0xff]
    %v136 = vld [vmem:[%s2 + $0x8] sm:$0xff]
    %v137 = vld [vmem:[#allocation5] sm:$0x1]
    %v139 = vlaneseq
    %v140 = vshrl.u32 %v139, 7
    %v141 = vsub.s32 0, %v140
    %v142 = vrot.slane %v137, %v141
    %vm144 = vcmask 130048
    %v146 = vsel %vm144, %v119, 0
    %v149 = vsel %vm144, %v120, 0
    %v152 = vsel %vm144, %v121, 0
    %v155 = vsel %vm144, %v122, 0
    %v158 = vsel %vm144, %v123, 0
    %v161 = vsel %vm144, %v124, 0
    %v164 = vsel %vm144, %v125, 0
    %v167 = vsel %vm144, %v126, 0
    %169 = vmatprep.subr.mxu0 0.0
    %170 = vmatpush1.msra.mxu0 %v135
    %171 = vmatprep.subr.mxu0 0.0
    %172 = vmatpush1.msra.mxu0 %v136
    %173 = vmatprep.subr.mxu0 0.0
    %174 = vmatpush1.msra.mxu0 0.0
    %175 = vmatprep.subr.mxu0 0.0
    %176 = vmatpush1.msra.mxu0 0.0
    %177 = vmatprep.subr.mxu0 0.0
    %178 = vmatpush1.msra.mxu0 0.0
    %179 = vmatprep.subr.mxu0 0.0
    %180 = vmatpush1.msra.mxu0 0.0
    %181 = vmatprep.subr.mxu0 0.0
    %182 = vmatpush1.msra.mxu0 0.0
    %183 = vmatprep.subr.mxu0 0.0
    %184 = vmatpush1.msra.mxu0 0.0
    %185 = vmatprep.subr.mxu0 0.0
    %186 = vmatpush1.msra.mxu0 0.0
    %187 = vmatprep.subr.mxu0 0.0
    %188 = vmatpush1.msra.mxu0 0.0
    %189 = vmatprep.subr.mxu0 0.0
    %190 = vmatpush1.msra.mxu0 0.0
    %191 = vmatprep.subr.mxu0 0.0
    %192 = vmatpush1.msra.mxu0 0.0
    %193 = vmatprep.subr.mxu0 0.0
    %194 = vmatpush1.msra.mxu0 0.0
    %195 = vmatprep.subr.mxu0 0.0
    %196 = vmatpush1.msra.mxu0 0.0
    %197 = vmatprep.subr.mxu0 0.0
    %198 = vmatpush1.msra.mxu0 0.0
    %199 = vmatprep.subr.mxu0 0.0
    %200 = vmatpush1.msra.mxu0 0.0
    %201 = vmatprep.subr.mxu0 0.0
    %202 = vmatpush1.msra.mxu0 0.0
    %203 = vmatprep.subr.mxu0 0.0
    %204 = vmatpush1.msra.mxu0 0.0
    %205 = vmatprep.subr.mxu0 0.0
    %206 = vmatpush1.msra.mxu0 0.0
    %207 = vmatprep.subr.mxu0 0.0
    %208 = vmatpush1.msra.mxu0 0.0
    %209 = vmatprep.subr.mxu0 0.0
    %210 = vmatpush1.msra.mxu0 0.0
    %211 = vmatprep.subr.mxu0 0.0
    %212 = vmatpush1.msra.mxu0 0.0
    %213 = vmatprep.subr.mxu0 0.0
    %214 = vmatpush1.msra.mxu0 0.0
    %215 = vmatprep.subr.mxu0 0.0
    %216 = vmatpush1.msra.mxu0 0.0
    %217 = vmatprep.subr.mxu0 0.0
    %218 = vmatpush1.msra.mxu0 0.0
    %219 = vmatprep.subr.mxu0 0.0
    %220 = vmatpush1.msra.mxu0 0.0
    %221 = vmatprep.subr.mxu0 0.0
    %222 = vmatpush1.msra.mxu0 0.0
    %223 = vmatprep.subr.mxu0 0.0
    %224 = vmatpush1.msra.mxu0 0.0
    %225 = vmatprep.subr.mxu0 0.0
    %226 = vmatpush1.msra.mxu0 0.0
    %227 = vmatprep.subr.mxu0 0.0
    %228 = vmatpush1.msra.mxu0 0.0
    %229 = vmatprep.subr.mxu0 0.0
    %230 = vmatpush1.msra.mxu0 0.0
    %231 = vmatprep.subr.mxu0 0.0
    %232 = vmatpush1.msra.mxu0 0.0
    %233 = vmatprep.mubr.f32.mxu0 0.0
    %234 = vmatmul.mubr.f32.gmra.mrb[0].mxu0 %v146
    %v235 = vpop.f32.mrb[0].mxu0
    %v236 = vadd.f32 %v142, %v235
    %v237 = vpop.f32.mrb[0].mxu0
    %238 = vmatprep.mubr.f32.mxu0 0.0
    %239 = vmatmul.mubr.f32.gmra.mrb[0].mxu0 %v149
    %v240 = vpop.f32.mrb[0].mxu0
    %v241 = vadd.f32 %v142, %v240
    %v242 = vpop.f32.mrb[0].mxu0
    %243 = vmatprep.mubr.f32.mxu0 0.0
    %244 = vmatmul.mubr.f32.gmra.mrb[0].mxu0 %v152
    %v245 = vpop.f32.mrb[0].mxu0
    %v246 = vadd.f32 %v142, %v245
    %v247 = vpop.f32.mrb[0].mxu0
    %248 = vmatprep.mubr.f32.mxu0 0.0
    %249 = vmatmul.mubr.f32.gmra.mrb[0].mxu0 %v155
    %v250 = vpop.f32.mrb[0].mxu0
    %v251 = vadd.f32 %v142, %v250
    %v252 = vpop.f32.mrb[0].mxu0
    %253 = vmatprep.mubr.f32.mxu0 0.0
    %254 = vmatmul.mubr.f32.gmra.mrb[0].mxu0 %v158
    %v255 = vpop.f32.mrb[0].mxu0
    %v256 = vadd.f32 %v142, %v255
    %v257 = vpop.f32.mrb[0].mxu0
    %258 = vmatprep.mubr.f32.mxu0 0.0
    %259 = vmatmul.mubr.f32.gmra.mrb[0].mxu0 %v161
    %v260 = vpop.f32.mrb[0].mxu0
    %v261 = vadd.f32 %v142, %v260
    %v262 = vpop.f32.mrb[0].mxu0
    %263 = vmatprep.mubr.f32.mxu0 0.0
    %264 = vmatmul.mubr.f32.gmra.mrb[0].mxu0 %v164
    %v265 = vpop.f32.mrb[0].mxu0
    %v266 = vadd.f32 %v142, %v265
    %v267 = vpop.f32.mrb[0].mxu0
    %268 = vmatprep.mubr.f32.mxu0 0.0
    %269 = vmatmul.mubr.f32.gmra.mrb[0].mxu0 %v167
    %v270 = vpop.f32.mrb[0].mxu0
    %v271 = vadd.f32 %v142, %v270
    %v272 = vpop.f32.mrb[0].mxu0
    %273 = vdwg.mxu0
    %v274 = vld [vmem:[%s4] sm:$0xff]
    %v275 = vld [vmem:[%s4 + $0x8] sm:$0xff]
    %v276 = vld [vmem:[%s4 + $0x10] sm:$0xff]
    %v277 = vld [vmem:[#allocation7] sm:$0xff]
    %v278 = vld [vmem:[#allocation7 + $0x8] sm:$0xf]
    %v281 = vcombine.high %v277, %v277
    %vm282 = vcmask 31744
    %v284 = vsel %vm282, %v127, 0
    %v287 = vsel %vm282, %v128, 0
    %v290 = vsel %vm282, %v129, 0
    %v293 = vsel %vm282, %v130, 0
    %v296 = vsel %vm282, %v131, 0
    %v299 = vsel %vm282, %v132, 0
    %v302 = vsel %vm282, %v133, 0
    %v305 = vsel %vm282, %v134, 0
    %vm307 = vcmask 1043456
    %v308 = vsel %vm307, %v277, 0
    %v310 = vsel %vm307, %v281, 0
    %v312 = vsel %vm307, %v278, 0
    %314 = vmatprep.subr.mxu0 %v310
    %315 = vmatpush1.msra.mxu0 %v308
    %316 = vmatprep.subr.mxu0 0.0
    %317 = vmatpush1.msra.mxu0 0.0
    %318 = vmatprep.subr.mxu0 0.0
    %319 = vmatpush1.msra.mxu0 0.0
    %320 = vmatprep.subr.mxu0 0.0
    %321 = vmatpush1.msra.mxu0 0.0
    %322 = vmatprep.subr.mxu0 0.0
    %323 = vmatpush1.msra.mxu0 0.0
    %324 = vmatprep.subr.mxu0 0.0
    %325 = vmatpush1.msra.mxu0 0.0
    %326 = vmatprep.subr.mxu0 0.0
    %327 = vmatpush1.msra.mxu0 0.0
    %328 = vmatprep.subr.mxu0 0.0
    %329 = vmatpush1.msra.mxu0 0.0
    %330 = vmatprep.subr.mxu0 0.0
    %331 = vmatpush1.msra.mxu0 0.0
    %332 = vmatprep.subr.mxu0 0.0
    %333 = vmatpush1.msra.mxu0 0.0
    %334 = vmatprep.subr.mxu0 0.0
    %335 = vmatpush1.msra.mxu0 0.0
    %336 = vmatprep.subr.mxu0 0.0
    %337 = vmatpush1.msra.mxu0 0.0
    %338 = vmatprep.subr.mxu0 0.0
    %339 = vmatpush1.msra.mxu0 0.0
    %340 = vmatprep.subr.mxu0 0.0
    %341 = vmatpush1.msra.mxu0 0.0
    %342 = vmatprep.subr.mxu0 0.0
    %343 = vmatpush1.msra.mxu0 0.0
    %344 = vmatprep.subr.mxu0 0.0
    %345 = vmatpush1.msra.mxu0 0.0
    %346 = vmatprep.subr.mxu0 0.0
    %347 = vmatpush1.msra.mxu0 0.0
    %348 = vmatprep.subr.mxu0 0.0
    %349 = vmatpush1.msra.mxu0 0.0
    %350 = vmatprep.subr.mxu0 0.0
    %351 = vmatpush1.msra.mxu0 0.0
    %352 = vmatprep.subr.mxu0 0.0
    %353 = vmatpush1.msra.mxu0 0.0
    %354 = vmatprep.subr.mxu0 0.0
    %355 = vmatpush1.msra.mxu0 0.0
    %356 = vmatprep.subr.mxu0 0.0
    %357 = vmatpush1.msra.mxu0 0.0
    %358 = vmatprep.subr.mxu0 0.0
    %359 = vmatpush1.msra.mxu0 0.0
    %360 = vmatprep.subr.mxu0 0.0
    %361 = vmatpush1.msra.mxu0 0.0
    %362 = vmatprep.subr.mxu0 0.0
    %363 = vmatpush1.msra.mxu0 0.0
    %364 = vmatprep.subr.mxu0 0.0
    %365 = vmatpush1.msra.mxu0 0.0
    %366 = vmatprep.subr.mxu0 0.0
    %367 = vmatpush1.msra.mxu0 0.0
    %368 = vmatprep.subr.mxu0 0.0
    %369 = vmatpush1.msra.mxu0 0.0
    %370 = vmatprep.subr.mxu0 0.0
    %371 = vmatpush1.msra.mxu0 0.0
    %372 = vmatprep.subr.mxu0 0.0
    %373 = vmatpush1.msra.mxu0 0.0
    %374 = vmatprep.subr.mxu0 0.0
    %375 = vmatpush1.msra.mxu0 0.0
    %376 = vmatprep.subr.mxu0 0.0
    %377 = vmatpush1.msra.mxu0 0.0
    %378 = vmatprep.mubr.f32.mxu0 0.0
    %379 = vmatmul.mubr.f32.gmra.mrb[0].mxu0 %v284
    %v380 = vpop.f32.mrb[0].mxu0
    %v381 = vadd.f32 0.0, %v380
    %v382 = vpop.f32.mrb[0].mxu0
    %v383 = vadd.f32 0.0, %v382
    %384 = vmatprep.mubr.f32.mxu0 0.0
    %385 = vmatmul.mubr.f32.gmra.mrb[0].mxu0 %v287
    %v386 = vpop.f32.mrb[0].mxu0
    %v387 = vadd.f32 0.0, %v386
    %v388 = vpop.f32.mrb[0].mxu0
    %v389 = vadd.f32 0.0, %v388
    %390 = vmatprep.mubr.f32.mxu0 0.0
    %391 = vmatmul.mubr.f32.gmra.mrb[0].mxu0 %v290
    %v392 = vpop.f32.mrb[0].mxu0
    %v393 = vadd.f32 0.0, %v392
    %v394 = vpop.f32.mrb[0].mxu0
    %v395 = vadd.f32 0.0, %v394
    %396 = vmatprep.mubr.f32.mxu0 0.0
    %397 = vmatmul.mubr.f32.gmra.mrb[0].mxu0 %v293
    %v398 = vpop.f32.mrb[0].mxu0
    %v399 = vadd.f32 0.0, %v398
    %v400 = vpop.f32.mrb[0].mxu0
    %v401 = vadd.f32 0.0, %v400
    %402 = vmatprep.mubr.f32.mxu0 0.0
    %403 = vmatmul.mubr.f32.gmra.mrb[0].mxu0 %v296
    %v404 = vpop.f32.mrb[0].mxu0
    %v405 = vadd.f32 0.0, %v404
    %v406 = vpop.f32.mrb[0].mxu0
    %v407 = vadd.f32 0.0, %v406
    %408 = vmatprep.mubr.f32.mxu0 0.0
    %409 = vmatmul.mubr.f32.gmra.mrb[0].mxu0 %v299
    %v410 = vpop.f32.mrb[0].mxu0
    %v411 = vadd.f32 0.0, %v410
    %v412 = vpop.f32.mrb[0].mxu0
    %v413 = vadd.f32 0.0, %v412
    %414 = vmatprep.mubr.f32.mxu0 0.0
    %415 = vmatmul.mubr.f32.gmra.mrb[0].mxu0 %v302
    %v416 = vpop.f32.mrb[0].mxu0
    %v417 = vadd.f32 0.0, %v416
    %v418 = vpop.f32.mrb[0].mxu0
    %v419 = vadd.f32 0.0, %v418
    %420 = vmatprep.mubr.f32.mxu0 0.0
    %421 = vmatmul.mubr.f32.gmra.mrb[0].mxu0 %v305
    %v422 = vpop.f32.mrb[0].mxu0
    %v423 = vadd.f32 0.0, %v422
    %v424 = vpop.f32.mrb[0].mxu0
    %v425 = vadd.f32 0.0, %v424
    %426 = vdwg.mxu0
    %427 = vmatprep.subr.mxu0 0.0
    %428 = vmatpush1.msra.mxu0 %v312
    %429 = vmatprep.subr.mxu0 0.0
    %430 = vmatpush1.msra.mxu0 0.0
    %431 = vmatprep.subr.mxu0 0.0
    %432 = vmatpush1.msra.mxu0 0.0
    %433 = vmatprep.subr.mxu0 0.0
    %434 = vmatpush1.msra.mxu0 0.0
    %435 = vmatprep.subr.mxu0 0.0
    %436 = vmatpush1.msra.mxu0 0.0
    %437 = vmatprep.subr.mxu0 0.0
    %438 = vmatpush1.msra.mxu0 0.0
    %439 = vmatprep.subr.mxu0 0.0
    %440 = vmatpush1.msra.mxu0 0.0
    %441 = vmatprep.subr.mxu0 0.0
    %442 = vmatpush1.msra.mxu0 0.0
    %443 = vmatprep.subr.mxu0 0.0
    %444 = vmatpush1.msra.mxu0 0.0
    %445 = vmatprep.subr.mxu0 0.0
    %446 = vmatpush1.msra.mxu0 0.0
    %447 = vmatprep.subr.mxu0 0.0
    %448 = vmatpush1.msra.mxu0 0.0
    %449 = vmatprep.subr.mxu0 0.0
    %450 = vmatpush1.msra.mxu0 0.0
    %451 = vmatprep.subr.mxu0 0.0
    %452 = vmatpush1.msra.mxu0 0.0
    %453 = vmatprep.subr.mxu0 0.0
    %454 = vmatpush1.msra.mxu0 0.0
    %455 = vmatprep.subr.mxu0 0.0
    %456 = vmatpush1.msra.mxu0 0.0
    %457 = vmatprep.subr.mxu0 0.0
    %458 = vmatpush1.msra.mxu0 0.0
    %459 = vmatprep.subr.mxu0 0.0
    %460 = vmatpush1.msra.mxu0 0.0
    %461 = vmatprep.subr.mxu0 0.0
    %462 = vmatpush1.msra.mxu0 0.0
    %463 = vmatprep.subr.mxu0 0.0
    %464 = vmatpush1.msra.mxu0 0.0
    %465 = vmatprep.subr.mxu0 0.0
    %466 = vmatpush1.msra.mxu0 0.0
    %467 = vmatprep.subr.mxu0 0.0
    %468 = vmatpush1.msra.mxu0 0.0
    %469 = vmatprep.subr.mxu0 0.0
    %470 = vmatpush1.msra.mxu0 0.0
    %471 = vmatprep.subr.mxu0 0.0
    %472 = vmatpush1.msra.mxu0 0.0
    %473 = vmatprep.subr.mxu0 0.0
    %474 = vmatpush1.msra.mxu0 0.0
    %475 = vmatprep.subr.mxu0 0.0
    %476 = vmatpush1.msra.mxu0 0.0
    %477 = vmatprep.subr.mxu0 0.0
    %478 = vmatpush1.msra.mxu0 0.0
    %479 = vmatprep.subr.mxu0 0.0
    %480 = vmatpush1.msra.mxu0 0.0
    %481 = vmatprep.subr.mxu0 0.0
    %482 = vmatpush1.msra.mxu0 0.0
    %483 = vmatprep.subr.mxu0 0.0
    %484 = vmatpush1.msra.mxu0 0.0
    %485 = vmatprep.subr.mxu0 0.0
    %486 = vmatpush1.msra.mxu0 0.0
    %487 = vmatprep.subr.mxu0 0.0
    %488 = vmatpush1.msra.mxu0 0.0
    %489 = vmatprep.subr.mxu0 0.0
    %490 = vmatpush1.msra.mxu0 0.0
    %491 = vmatprep.mubr.f32.mxu0 0.0
    %492 = vmatmul.mubr.f32.gmra.mrb[0].mxu0 %v284
    %v493 = vpop.f32.mrb[0].mxu0
    %v494 = vadd.f32 0.0, %v493
    %v495 = vpop.f32.mrb[0].mxu0
    %496 = vmatprep.mubr.f32.mxu0 0.0
    %497 = vmatmul.mubr.f32.gmra.mrb[0].mxu0 %v287
    %v498 = vpop.f32.mrb[0].mxu0
    %v499 = vadd.f32 0.0, %v498
    %v500 = vpop.f32.mrb[0].mxu0
    %501 = vmatprep.mubr.f32.mxu0 0.0
    %502 = vmatmul.mubr.f32.gmra.mrb[0].mxu0 %v290
    %v503 = vpop.f32.mrb[0].mxu0
    %v504 = vadd.f32 0.0, %v503
    %v505 = vpop.f32.mrb[0].mxu0
    %506 = vmatprep.mubr.f32.mxu0 0.0
    %507 = vmatmul.mubr.f32.gmra.mrb[0].mxu0 %v293
    %v508 = vpop.f32.mrb[0].mxu0
    %v509 = vadd.f32 0.0, %v508
    %v510 = vpop.f32.mrb[0].mxu0
    %511 = vmatprep.mubr.f32.mxu0 0.0
    %512 = vmatmul.mubr.f32.gmra.mrb[0].mxu0 %v296
    %v513 = vpop.f32.mrb[0].mxu0
    %v514 = vadd.f32 0.0, %v513
    %v515 = vpop.f32.mrb[0].mxu0
    %516 = vmatprep.mubr.f32.mxu0 0.0
    %517 = vmatmul.mubr.f32.gmra.mrb[0].mxu0 %v299
    %v518 = vpop.f32.mrb[0].mxu0
    %v519 = vadd.f32 0.0, %v518
    %v520 = vpop.f32.mrb[0].mxu0
    %521 = vmatprep.mubr.f32.mxu0 0.0
    %522 = vmatmul.mubr.f32.gmra.mrb[0].mxu0 %v302
    %v523 = vpop.f32.mrb[0].mxu0
    %v524 = vadd.f32 0.0, %v523
    %v525 = vpop.f32.mrb[0].mxu0
    %526 = vmatprep.mubr.f32.mxu0 0.0
    %527 = vmatmul.mubr.f32.gmra.mrb[0].mxu0 %v305
    %v528 = vpop.f32.mrb[0].mxu0
    %v529 = vadd.f32 0.0, %v528
    %v530 = vpop.f32.mrb[0].mxu0
    %531 = vdwg.mxu0
    %vm532 = vcmask 64512
    %v534 = vsel %vm532, %v236, 0
    %v537 = vsel %vm532, %v241, 0
    %v540 = vsel %vm532, %v246, 0
    %v543 = vsel %vm532, %v251, 0
    %v546 = vsel %vm532, %v256, 0
    %v549 = vsel %vm532, %v261, 0
    %v552 = vsel %vm532, %v266, 0
    %v555 = vsel %vm532, %v271, 0
    %557 = vmatprep.subr.mxu0 %v275
    %558 = vmatpush1.msra.mxu0 %v274
    %559 = vmatprep.subr.mxu0 0.0
    %560 = vmatpush1.msra.mxu0 0.0
    %561 = vmatprep.subr.mxu0 0.0
    %562 = vmatpush1.msra.mxu0 0.0
    %563 = vmatprep.subr.mxu0 0.0
    %564 = vmatpush1.msra.mxu0 0.0
    %565 = vmatprep.subr.mxu0 0.0
    %566 = vmatpush1.msra.mxu0 0.0
    %567 = vmatprep.subr.mxu0 0.0
    %568 = vmatpush1.msra.mxu0 0.0
    %569 = vmatprep.subr.mxu0 0.0
    %570 = vmatpush1.msra.mxu0 0.0
    %571 = vmatprep.subr.mxu0 0.0
    %572 = vmatpush1.msra.mxu0 0.0
    %573 = vmatprep.subr.mxu0 0.0
    %574 = vmatpush1.msra.mxu0 0.0
    %575 = vmatprep.subr.mxu0 0.0
    %576 = vmatpush1.msra.mxu0 0.0
    %577 = vmatprep.subr.mxu0 0.0
    %578 = vmatpush1.msra.mxu0 0.0
    %579 = vmatprep.subr.mxu0 0.0
    %580 = vmatpush1.msra.mxu0 0.0
    %581 = vmatprep.subr.mxu0 0.0
    %582 = vmatpush1.msra.mxu0 0.0
    %583 = vmatprep.subr.mxu0 0.0
    %584 = vmatpush1.msra.mxu0 0.0
    %585 = vmatprep.subr.mxu0 0.0
    %586 = vmatpush1.msra.mxu0 0.0
    %587 = vmatprep.subr.mxu0 0.0
    %588 = vmatpush1.msra.mxu0 0.0
    %589 = vmatprep.subr.mxu0 0.0
    %590 = vmatpush1.msra.mxu0 0.0
    %591 = vmatprep.subr.mxu0 0.0
    %592 = vmatpush1.msra.mxu0 0.0
    %593 = vmatprep.subr.mxu0 0.0
    %594 = vmatpush1.msra.mxu0 0.0
    %595 = vmatprep.subr.mxu0 0.0
    %596 = vmatpush1.msra.mxu0 0.0
    %597 = vmatprep.subr.mxu0 0.0
    %598 = vmatpush1.msra.mxu0 0.0
    %599 = vmatprep.subr.mxu0 0.0
    %600 = vmatpush1.msra.mxu0 0.0
    %601 = vmatprep.subr.mxu0 0.0
    %602 = vmatpush1.msra.mxu0 0.0
    %603 = vmatprep.subr.mxu0 0.0
    %604 = vmatpush1.msra.mxu0 0.0
    %605 = vmatprep.subr.mxu0 0.0
    %606 = vmatpush1.msra.mxu0 0.0
    %607 = vmatprep.subr.mxu0 0.0
    %608 = vmatpush1.msra.mxu0 0.0
    %609 = vmatprep.subr.mxu0 0.0
    %610 = vmatpush1.msra.mxu0 0.0
    %611 = vmatprep.subr.mxu0 0.0
    %612 = vmatpush1.msra.mxu0 0.0
    %613 = vmatprep.subr.mxu0 0.0
    %614 = vmatpush1.msra.mxu0 0.0
    %615 = vmatprep.subr.mxu0 0.0
    %616 = vmatpush1.msra.mxu0 0.0
    %617 = vmatprep.subr.mxu0 0.0
    %618 = vmatpush1.msra.mxu0 0.0
    %619 = vmatprep.subr.mxu0 0.0
    %620 = vmatpush1.msra.mxu0 0.0
    %621 = vmatprep.mubr.f32.mxu0 0.0
    %622 = vmatmul.mubr.f32.gmra.mrb[0].mxu0 %v534
    %v623 = vpop.f32.mrb[0].mxu0
    %v624 = vadd.f32 %v381, %v623
    %v625 = vpop.f32.mrb[0].mxu0
    %v626 = vadd.f32 %v383, %v625
    %627 = vmatprep.mubr.f32.mxu0 0.0
    %628 = vmatmul.mubr.f32.gmra.mrb[0].mxu0 %v537
    %v629 = vpop.f32.mrb[0].mxu0
    %v630 = vadd.f32 %v387, %v629
    %v631 = vpop.f32.mrb[0].mxu0
    %v632 = vadd.f32 %v389, %v631
    %633 = vmatprep.mubr.f32.mxu0 0.0
    %634 = vmatmul.mubr.f32.gmra.mrb[0].mxu0 %v540
    %v635 = vpop.f32.mrb[0].mxu0
    %v636 = vadd.f32 %v393, %v635
    %v637 = vpop.f32.mrb[0].mxu0
    %v638 = vadd.f32 %v395, %v637
    %639 = vmatprep.mubr.f32.mxu0 0.0
    %640 = vmatmul.mubr.f32.gmra.mrb[0].mxu0 %v543
    %v641 = vpop.f32.mrb[0].mxu0
    %v642 = vadd.f32 %v399, %v641
    %v643 = vpop.f32.mrb[0].mxu0
    %v644 = vadd.f32 %v401, %v643
    %645 = vmatprep.mubr.f32.mxu0 0.0
    %646 = vmatmul.mubr.f32.gmra.mrb[0].mxu0 %v546
    %v647 = vpop.f32.mrb[0].mxu0
    %v648 = vadd.f32 %v405, %v647
    %v649 = vpop.f32.mrb[0].mxu0
    %v650 = vadd.f32 %v407, %v649
    %651 = vmatprep.mubr.f32.mxu0 0.0
    %652 = vmatmul.mubr.f32.gmra.mrb[0].mxu0 %v549
    %v653 = vpop.f32.mrb[0].mxu0
    %v654 = vadd.f32 %v411, %v653
    %v655 = vpop.f32.mrb[0].mxu0
    %v656 = vadd.f32 %v413, %v655
    %657 = vmatprep.mubr.f32.mxu0 0.0
    %658 = vmatmul.mubr.f32.gmra.mrb[0].mxu0 %v552
    %v659 = vpop.f32.mrb[0].mxu0
    %v660 = vadd.f32 %v417, %v659
    %v661 = vpop.f32.mrb[0].mxu0
    %v662 = vadd.f32 %v419, %v661
    %663 = vmatprep.mubr.f32.mxu0 0.0
    %664 = vmatmul.mubr.f32.gmra.mrb[0].mxu0 %v555
    %v665 = vpop.f32.mrb[0].mxu0
    %v666 = vadd.f32 %v423, %v665
    %v667 = vpop.f32.mrb[0].mxu0
    %v668 = vadd.f32 %v425, %v667
    %669 = vdwg.mxu0
    %670 = vmatprep.subr.mxu0 0.0
    %671 = vmatpush1.msra.mxu0 %v276
    %672 = vmatprep.subr.mxu0 0.0
    %673 = vmatpush1.msra.mxu0 0.0
    %674 = vmatprep.subr.mxu0 0.0
    %675 = vmatpush1.msra.mxu0 0.0
    %676 = vmatprep.subr.mxu0 0.0
    %677 = vmatpush1.msra.mxu0 0.0
    %678 = vmatprep.subr.mxu0 0.0
    %679 = vmatpush1.msra.mxu0 0.0
    %680 = vmatprep.subr.mxu0 0.0
    %681 = vmatpush1.msra.mxu0 0.0
    %682 = vmatprep.subr.mxu0 0.0
    %683 = vmatpush1.msra.mxu0 0.0
    %684 = vmatprep.subr.mxu0 0.0
    %685 = vmatpush1.msra.mxu0 0.0
    %686 = vmatprep.subr.mxu0 0.0
    %687 = vmatpush1.msra.mxu0 0.0
    %688 = vmatprep.subr.mxu0 0.0
    %689 = vmatpush1.msra.mxu0 0.0
    %690 = vmatprep.subr.mxu0 0.0
    %691 = vmatpush1.msra.mxu0 0.0
    %692 = vmatprep.subr.mxu0 0.0
    %693 = vmatpush1.msra.mxu0 0.0
    %694 = vmatprep.subr.mxu0 0.0
    %695 = vmatpush1.msra.mxu0 0.0
    %696 = vmatprep.subr.mxu0 0.0
    %697 = vmatpush1.msra.mxu0 0.0
    %698 = vmatprep.subr.mxu0 0.0
    %699 = vmatpush1.msra.mxu0 0.0
    %700 = vmatprep.subr.mxu0 0.0
    %701 = vmatpush1.msra.mxu0 0.0
    %702 = vmatprep.subr.mxu0 0.0
    %703 = vmatpush1.msra.mxu0 0.0
    %704 = vmatprep.subr.mxu0 0.0
    %705 = vmatpush1.msra.mxu0 0.0
    %706 = vmatprep.subr.mxu0 0.0
    %707 = vmatpush1.msra.mxu0 0.0
    %708 = vmatprep.subr.mxu0 0.0
    %709 = vmatpush1.msra.mxu0 0.0
    %710 = vmatprep.subr.mxu0 0.0
    %711 = vmatpush1.msra.mxu0 0.0
    %712 = vmatprep.subr.mxu0 0.0
    %713 = vmatpush1.msra.mxu0 0.0
    %714 = vmatprep.subr.mxu0 0.0
    %715 = vmatpush1.msra.mxu0 0.0
    %716 = vmatprep.subr.mxu0 0.0
    %717 = vmatpush1.msra.mxu0 0.0
    %718 = vmatprep.subr.mxu0 0.0
    %719 = vmatpush1.msra.mxu0 0.0
    %720 = vmatprep.subr.mxu0 0.0
    %721 = vmatpush1.msra.mxu0 0.0
    %722 = vmatprep.subr.mxu0 0.0
    %723 = vmatpush1.msra.mxu0 0.0
    %724 = vmatprep.subr.mxu0 0.0
    %725 = vmatpush1.msra.mxu0 0.0
    %726 = vmatprep.subr.mxu0 0.0
    %727 = vmatpush1.msra.mxu0 0.0
    %728 = vmatprep.subr.mxu0 0.0
    %729 = vmatpush1.msra.mxu0 0.0
    %730 = vmatprep.subr.mxu0 0.0
    %731 = vmatpush1.msra.mxu0 0.0
    %732 = vmatprep.subr.mxu0 0.0
    %733 = vmatpush1.msra.mxu0 0.0
    %734 = vmatprep.mubr.f32.mxu0 0.0
    %735 = vmatmul.mubr.f32.gmra.mrb[0].mxu0 %v534
    %v736 = vpop.f32.mrb[0].mxu0
    %v737 = vadd.f32 %v494, %v736
    %v738 = vpop.f32.mrb[0].mxu0
    %739 = vmatprep.mubr.f32.mxu0 0.0
    %740 = vmatmul.mubr.f32.gmra.mrb[0].mxu0 %v537
    %v741 = vpop.f32.mrb[0].mxu0
    %v742 = vadd.f32 %v499, %v741
    %v743 = vpop.f32.mrb[0].mxu0
    %744 = vmatprep.mubr.f32.mxu0 0.0
    %745 = vmatmul.mubr.f32.gmra.mrb[0].mxu0 %v540
    %v746 = vpop.f32.mrb[0].mxu0
    %v747 = vadd.f32 %v504, %v746
    %v748 = vpop.f32.mrb[0].mxu0
    %749 = vmatprep.mubr.f32.mxu0 0.0
    %750 = vmatmul.mubr.f32.gmra.mrb[0].mxu0 %v543
    %v751 = vpop.f32.mrb[0].mxu0
    %v752 = vadd.f32 %v509, %v751
    %v753 = vpop.f32.mrb[0].mxu0
    %754 = vmatprep.mubr.f32.mxu0 0.0
    %755 = vmatmul.mubr.f32.gmra.mrb[0].mxu0 %v546
    %v756 = vpop.f32.mrb[0].mxu0
    %v757 = vadd.f32 %v514, %v756
    %v758 = vpop.f32.mrb[0].mxu0
    %759 = vmatprep.mubr.f32.mxu0 0.0
    %760 = vmatmul.mubr.f32.gmra.mrb[0].mxu0 %v549
    %v761 = vpop.f32.mrb[0].mxu0
    %v762 = vadd.f32 %v519, %v761
    %v763 = vpop.f32.mrb[0].mxu0
    %764 = vmatprep.mubr.f32.mxu0 0.0
    %765 = vmatmul.mubr.f32.gmra.mrb[0].mxu0 %v552
    %v766 = vpop.f32.mrb[0].mxu0
    %v767 = vadd.f32 %v524, %v766
    %v768 = vpop.f32.mrb[0].mxu0
    %769 = vmatprep.mubr.f32.mxu0 0.0
    %770 = vmatmul.mubr.f32.gmra.mrb[0].mxu0 %v555
    %v771 = vpop.f32.mrb[0].mxu0
    %v772 = vadd.f32 %v529, %v771
    %v773 = vpop.f32.mrb[0].mxu0
    %774 = vdwg.mxu0
    %v775 = vld [vmem:[#allocation9] sm:$0x7]
    %v777 = vlaneseq
    %v778 = vshrl.u32 %v777, 7
    %v779 = vsub.s32 0, %v778
    %v780 = vrot.slane %v775, %v779
    %v781 = vlaneseq
    %v782 = vshrl.u32 %v781, 7
    %v783 = vsub.s32 1, %v782
    %v784 = vrot.slane %v775, %v783
    %v785 = vlaneseq
    %v786 = vshrl.u32 %v785, 7
    %v787 = vsub.s32 2, %v786
    %v788 = vrot.slane %v775, %v787
    %v792 = vadd.f32 %v624, %v780
    %v793 = vadd.f32 %v626, %v784
    %v794 = vadd.f32 %v737, %v788
    %v795 = vadd.f32 %v630, %v780
    %v796 = vadd.f32 %v632, %v784
    %v797 = vadd.f32 %v742, %v788
    %v798 = vadd.f32 %v636, %v780
    %v799 = vadd.f32 %v638, %v784
    %v800 = vadd.f32 %v747, %v788
    %v801 = vadd.f32 %v642, %v780
    %v802 = vadd.f32 %v644, %v784
    %v803 = vadd.f32 %v752, %v788
    %v804 = vadd.f32 %v648, %v780
    %v805 = vadd.f32 %v650, %v784
    %v806 = vadd.f32 %v757, %v788
    %v807 = vadd.f32 %v654, %v780
    %v808 = vadd.f32 %v656, %v784
    %v809 = vadd.f32 %v762, %v788
    %v810 = vadd.f32 %v660, %v780
    %v811 = vadd.f32 %v662, %v784
    %v812 = vadd.f32 %v767, %v788
    %v813 = vadd.f32 %v666, %v780
    %v814 = vadd.f32 %v668, %v784
    %v815 = vadd.f32 %v772, %v788
    %816 = vst [vmem:[#allocation3] sm:$0xff] %v792
    %817 = vst [vmem:[#allocation3 + $0x8] sm:$0xff] %v793
    %818 = vst [vmem:[#allocation3 + $0x10] sm:$0xff] %v794
    %819 = vst [vmem:[#allocation3 + $0x18] sm:$0xff] %v795
    %820 = vst [vmem:[#allocation3 + $0x20] sm:$0xff] %v796
    %821 = vst [vmem:[#allocation3 + $0x28] sm:$0xff] %v797
    %822 = vst [vmem:[#allocation3 + $0x30] sm:$0xff] %v798
    %823 = vst [vmem:[#allocation3 + $0x38] sm:$0xff] %v799
    %824 = vst [vmem:[#allocation3 + $0x40] sm:$0xff] %v800
    %825 = vst [vmem:[#allocation3 + $0x48] sm:$0xff] %v801
    %826 = vst [vmem:[#allocation3 + $0x50] sm:$0xff] %v802
    %827 = vst [vmem:[#allocation3 + $0x58] sm:$0xff] %v803
    %828 = vst [vmem:[#allocation3 + $0x60] sm:$0xff] %v804
    %829 = vst [vmem:[#allocation3 + $0x68] sm:$0xff] %v805
    %830 = vst [vmem:[#allocation3 + $0x70] sm:$0xff] %v806
    %831 = vst [vmem:[#allocation3 + $0x78] sm:$0xff] %v807
    %832 = vst [vmem:[#allocation3 + $0x80] sm:$0xff] %v808
    %833 = vst [vmem:[#allocation3 + $0x88] sm:$0xff] %v809
    %834 = vst [vmem:[#allocation3 + $0x90] sm:$0xff] %v810
    %835 = vst [vmem:[#allocation3 + $0x98] sm:$0xff] %v811
    %836 = vst [vmem:[#allocation3 + $0xa0] sm:$0xff] %v812
    %837 = vst [vmem:[#allocation3 + $0xa8] sm:$0xff] %v813
    %838 = vst [vmem:[#allocation3 + $0xb0] sm:$0xff] %v814
    %839 = vst [vmem:[#allocation3 + $0xb8] sm:$0xff] %v815
    %v840 = vld [vmem:[%s7] sm:$0xff]
    %v841 = vld [vmem:[%s7 + $0x8] sm:$0xff]
    %v842 = vld [vmem:[%s7 + $0x10] sm:$0xff]
    %v843 = vld [vmem:[%s7 + $0x18] sm:$0xff]
    %v844 = vld [vmem:[%s7 + $0x20] sm:$0xff]
    %v845 = vld [vmem:[%s7 + $0x28] sm:$0xff]
    %v846 = vld [vmem:[%s7 + $0x30] sm:$0xff]
    %v847 = vld [vmem:[%s7 + $0x38] sm:$0xff]
    %v848 = vld [vmem:[%s7 + $0x40] sm:$0xff]
    %v849 = vld [vmem:[%s7 + $0x48] sm:$0xff]
    %v850 = vld [vmem:[%s7 + $0x50] sm:$0xff]
    %v851 = vld [vmem:[%s7 + $0x58] sm:$0xff]
    %v852 = vld [vmem:[%s7 + $0x60] sm:$0xff]
    %v853 = vld [vmem:[%s7 + $0x68] sm:$0xff]
    %v854 = vld [vmem:[%s7 + $0x70] sm:$0xff]
    %v855 = vld [vmem:[%s7 + $0x78] sm:$0xff]
    %v856 = vld [vmem:[%s7 + $0x80] sm:$0xff]
    %v857 = vld [vmem:[%s7 + $0x88] sm:$0xff]
    %v858 = vld [vmem:[%s7 + $0x90] sm:$0xff]
    %v859 = vld [vmem:[%s7 + $0x98] sm:$0xff]
    %v860 = vld [vmem:[%s7 + $0xa0] sm:$0xff]
    %v861 = vld [vmem:[%s7 + $0xa8] sm:$0xff]
    %v862 = vld [vmem:[%s7 + $0xb0] sm:$0xff]
    %v863 = vld [vmem:[%s7 + $0xb8] sm:$0xff]
    %v864 = vld [vmem:[%s7 + $0xc0] sm:$0xff]
    %v865 = vld [vmem:[%s7 + $0xc8] sm:$0xff]
    %v866 = vld [vmem:[%s7 + $0xd0] sm:$0xff]
    %v867 = vld [vmem:[%s7 + $0xd8] sm:$0xff]
    %v868 = vld [vmem:[%s7 + $0xe0] sm:$0xff]
    %v869 = vld [vmem:[%s7 + $0xe8] sm:$0xff]
    %v870 = vld [vmem:[%s7 + $0xf0] sm:$0xff]
    %v871 = vld [vmem:[%s7 + $0xf8] sm:$0xff]
    %v872 = vld [vmem:[%s7 + $0x100] sm:$0xff]
    %v873 = vld [vmem:[%s7 + $0x108] sm:$0xff]
    %v874 = vld [vmem:[%s7 + $0x110] sm:$0xff]
    %v875 = vld [vmem:[%s7 + $0x118] sm:$0xff]
    %v876 = vld [vmem:[%s7 + $0x120] sm:$0xff]
    %v877 = vld [vmem:[%s7 + $0x128] sm:$0xff]
    %v878 = vld [vmem:[%s7 + $0x130] sm:$0xff]
    %v879 = vld [vmem:[%s7 + $0x138] sm:$0xff]
    %v880 = vld [vmem:[%s7 + $0x140] sm:$0xff]
    %v881 = vld [vmem:[%s7 + $0x148] sm:$0xff]
    %v882 = vld [vmem:[%s7 + $0x150] sm:$0xff]
    %v883 = vld [vmem:[%s7 + $0x158] sm:$0xff]
    %v884 = vld [vmem:[%s7 + $0x160] sm:$0xff]
    %v885 = vld [vmem:[%s7 + $0x168] sm:$0xff]
    %v886 = vld [vmem:[%s7 + $0x170] sm:$0xff]
    %v887 = vld [vmem:[%s7 + $0x178] sm:$0xff]
    %v888 = vld [vmem:[#allocation10] sm:$0x1]
    %v890 = vlaneseq
    %v891 = vshrl.u32 %v890, 7
    %v892 = vsub.s32 0, %v891
    %v893 = vrot.slane %v888, %v892
    %v895 = vld [vmem:[#allocation2] sm:$0xff]
    %v896 = vld [vmem:[#allocation3] sm:$0xff]
    %v897 = vld [vmem:[#allocation3 + $0x8] sm:$0xff]
    %v898 = vld [vmem:[#allocation3 + $0x10] sm:$0xff]
    %899 = vmatprep.subr.mxu0 %v841
    %900 = vmatpush1.msra.mxu0 %v840
    %901 = vmatprep.subr.mxu0 %v844
    %902 = vmatpush1.msra.mxu0 %v843
    %903 = vmatprep.subr.mxu0 %v847
    %904 = vmatpush1.msra.mxu0 %v846
    %905 = vmatprep.subr.mxu0 %v850
    %906 = vmatpush1.msra.mxu0 %v849
    %907 = vmatprep.subr.mxu0 %v853
    %908 = vmatpush1.msra.mxu0 %v852
    %909 = vmatprep.subr.mxu0 %v856
    %910 = vmatpush1.msra.mxu0 %v855
    %911 = vmatprep.subr.mxu0 %v859
    %912 = vmatpush1.msra.mxu0 %v858
    %913 = vmatprep.subr.mxu0 %v862
    %914 = vmatpush1.msra.mxu0 %v861
    %915 = vmatprep.subr.mxu0 %v865
    %916 = vmatpush1.msra.mxu0 %v864
    %917 = vmatprep.subr.mxu0 %v868
    %918 = vmatpush1.msra.mxu0 %v867
    %919 = vmatprep.subr.mxu0 %v871
    %920 = vmatpush1.msra.mxu0 %v870
    %921 = vmatprep.subr.mxu0 %v874
    %922 = vmatpush1.msra.mxu0 %v873
    %923 = vmatprep.subr.mxu0 %v877
    %924 = vmatpush1.msra.mxu0 %v876
    %925 = vmatprep.subr.mxu0 %v880
    %926 = vmatpush1.msra.mxu0 %v879
    %927 = vmatprep.subr.mxu0 %v883
    %928 = vmatpush1.msra.mxu0 %v882
    %929 = vmatprep.subr.mxu0 %v886
    %930 = vmatpush1.msra.mxu0 %v885
    %931 = vmatprep.subr.mxu0 0.0
    %932 = vmatpush1.msra.mxu0 0.0
    %933 = vmatprep.subr.mxu0 0.0
    %934 = vmatpush1.msra.mxu0 0.0
    %935 = vmatprep.subr.mxu0 0.0
    %936 = vmatpush1.msra.mxu0 0.0
    %937 = vmatprep.subr.mxu0 0.0
    %938 = vmatpush1.msra.mxu0 0.0
    %939 = vmatprep.subr.mxu0 0.0
    %940 = vmatpush1.msra.mxu0 0.0
    %941 = vmatprep.subr.mxu0 0.0
    %942 = vmatpush1.msra.mxu0 0.0
    %943 = vmatprep.subr.mxu0 0.0
    %944 = vmatpush1.msra.mxu0 0.0
    %945 = vmatprep.subr.mxu0 0.0
    %946 = vmatpush1.msra.mxu0 0.0
    %947 = vmatprep.subr.mxu0 0.0
    %948 = vmatpush1.msra.mxu0 0.0
    %949 = vmatprep.subr.mxu0 0.0
    %950 = vmatpush1.msra.mxu0 0.0
    %951 = vmatprep.subr.mxu0 0.0
    %952 = vmatpush1.msra.mxu0 0.0
    %953 = vmatprep.subr.mxu0 0.0
    %954 = vmatpush1.msra.mxu0 0.0
    %955 = vmatprep.subr.mxu0 0.0
    %956 = vmatpush1.msra.mxu0 0.0
    %957 = vmatprep.subr.mxu0 0.0
    %958 = vmatpush1.msra.mxu0 0.0
    %959 = vmatprep.subr.mxu0 0.0
    %960 = vmatpush1.msra.mxu0 0.0
    %961 = vmatprep.subr.mxu0 0.0
    %962 = vmatpush1.msra.mxu0 0.0
    %963 = vmatprep.mubr.f32.mxu0 0.0
    %964 = vmatmul.mubr.f32.gmra.mrb[0].mxu0 %v895
    %v965 = vpop.f32.mrb[0].mxu0
    %v966 = vadd.f32 0.0, %v965
    %v967 = vpop.f32.mrb[0].mxu0
    %v968 = vadd.f32 0.0, %v967
    %969 = vdwg.mxu0
    %970 = vmatprep.subr.mxu0 0.0
    %971 = vmatpush1.msra.mxu0 %v842
    %972 = vmatprep.subr.mxu0 0.0
    %973 = vmatpush1.msra.mxu0 %v845
    %974 = vmatprep.subr.mxu0 0.0
    %975 = vmatpush1.msra.mxu0 %v848
    %976 = vmatprep.subr.mxu0 0.0
    %977 = vmatpush1.msra.mxu0 %v851
    %978 = vmatprep.subr.mxu0 0.0
    %979 = vmatpush1.msra.mxu0 %v854
    %980 = vmatprep.subr.mxu0 0.0
    %981 = vmatpush1.msra.mxu0 %v857
    %982 = vmatprep.subr.mxu0 0.0
    %983 = vmatpush1.msra.mxu0 %v860
    %984 = vmatprep.subr.mxu0 0.0
    %985 = vmatpush1.msra.mxu0 %v863
    %986 = vmatprep.subr.mxu0 0.0
    %987 = vmatpush1.msra.mxu0 %v866
    %988 = vmatprep.subr.mxu0 0.0
    %989 = vmatpush1.msra.mxu0 %v869
    %990 = vmatprep.subr.mxu0 0.0
    %991 = vmatpush1.msra.mxu0 %v872
    %992 = vmatprep.subr.mxu0 0.0
    %993 = vmatpush1.msra.mxu0 %v875
    %994 = vmatprep.subr.mxu0 0.0
    %995 = vmatpush1.msra.mxu0 %v878
    %996 = vmatprep.subr.mxu0 0.0
    %997 = vmatpush1.msra.mxu0 %v881
    %998 = vmatprep.subr.mxu0 0.0
    %999 = vmatpush1.msra.mxu0 %v884
    %1000 = vmatprep.subr.mxu0 0.0
    %1001 = vmatpush1.msra.mxu0 %v887
    %1002 = vmatprep.subr.mxu0 0.0
    %1003 = vmatpush1.msra.mxu0 0.0
    %1004 = vmatprep.subr.mxu0 0.0
    %1005 = vmatpush1.msra.mxu0 0.0
    %1006 = vmatprep.subr.mxu0 0.0
    %1007 = vmatpush1.msra.mxu0 0.0
    %1008 = vmatprep.subr.mxu0 0.0
    %1009 = vmatpush1.msra.mxu0 0.0
    %1010 = vmatprep.subr.mxu0 0.0
    %1011 = vmatpush1.msra.mxu0 0.0
    %1012 = vmatprep.subr.mxu0 0.0
    %1013 = vmatpush1.msra.mxu0 0.0
    %1014 = vmatprep.subr.mxu0 0.0
    %1015 = vmatpush1.msra.mxu0 0.0
    %1016 = vmatprep.subr.mxu0 0.0
    %1017 = vmatpush1.msra.mxu0 0.0
    %1018 = vmatprep.subr.mxu0 0.0
    %1019 = vmatpush1.msra.mxu0 0.0
    %1020 = vmatprep.subr.mxu0 0.0
    %1021 = vmatpush1.msra.mxu0 0.0
    %1022 = vmatprep.subr.mxu0 0.0
    %1023 = vmatpush1.msra.mxu0 0.0
    %1024 = vmatprep.subr.mxu0 0.0
    %1025 = vmatpush1.msra.mxu0 0.0
    %1026 = vmatprep.subr.mxu0 0.0
    %1027 = vmatpush1.msra.mxu0 0.0
    %1028 = vmatprep.subr.mxu0 0.0
    %1029 = vmatpush1.msra.mxu0 0.0
    %1030 = vmatprep.subr.mxu0 0.0
    %1031 = vmatpush1.msra.mxu0 0.0
    %1032 = vmatprep.subr.mxu0 0.0
    %1033 = vmatpush1.msra.mxu0 0.0
    %1034 = vmatprep.mubr.f32.mxu0 0.0
    %1035 = vmatmul.mubr.f32.gmra.mrb[0].mxu0 %v895
    %v1036 = vpop.f32.mrb[0].mxu0
    %v1037 = vadd.f32 0.0, %v1036
    %v1038 = vpop.f32.mrb[0].mxu0
    %1039 = vdwg.mxu0
    %v1040 = vadd.f32 %v896, %v966
    %v1041 = vxor.u32 %v1040, 2147483648
    %v1042 = vmul.f32 %v1041, 1.442695
    %v1043 = vpow.pop %v1042
    %v1044 = vadd.f32 %v1043, 1.0
    %v1045 = vrcp.pop %v1044
    %v1046 = vmul.f32 1.0, %v1045
    %v1047 = vadd.f32 %v1037, %v893
    %v1048 = vmul.f32 %v1046, %v1047
    %v1049 = vadd.f32 %v898, %v1048
    %v1050 = vtanh.pop %v1049
    %v1051 = vadd.f32 %v897, %v968
    %v1052 = vxor.u32 %v1051, 2147483648
    %v1053 = vmul.f32 %v1052, 1.442695
    %v1054 = vpow.pop %v1053
    %v1055 = vadd.f32 %v1054, 1.0
    %v1056 = vrcp.pop %v1055
    %v1057 = vmul.f32 1.0, %v1056
    %v1058 = vsub.f32 1.0, %v1057
    %v1059 = vmul.f32 %v1058, %v1050
    %v1060 = vmul.f32 %v1057, %v895
    %v1061 = vadd.f32 %v1059, %v1060
    %1062 = vst [vmem:[#allocation4] sm:$0xff] %v1061
    %s1063 = scalar_lea.vmem [#allocation3], 24
    %v1064 = vld [vmem:[%s1063] sm:$0xff]
    %v1065 = vld [vmem:[%s1063 + $0x8] sm:$0xff]
    %v1066 = vld [vmem:[%s1063 + $0x10] sm:$0xff]
    %1067 = vmatprep.subr.mxu0 %v841
    %1068 = vmatpush1.msra.mxu0 %v840
    %1069 = vmatprep.subr.mxu0 %v844
    %1070 = vmatpush1.msra.mxu0 %v843
    %1071 = vmatprep.subr.mxu0 %v847
    %1072 = vmatpush1.msra.mxu0 %v846
    %1073 = vmatprep.subr.mxu0 %v850
    %1074 = vmatpush1.msra.mxu0 %v849
    %1075 = vmatprep.subr.mxu0 %v853
    %1076 = vmatpush1.msra.mxu0 %v852
    %1077 = vmatprep.subr.mxu0 %v856
    %1078 = vmatpush1.msra.mxu0 %v855
    %1079 = vmatprep.subr.mxu0 %v859
    %1080 = vmatpush1.msra.mxu0 %v858
    %1081 = vmatprep.subr.mxu0 %v862
    %1082 = vmatpush1.msra.mxu0 %v861
    %1083 = vmatprep.subr.mxu0 %v865
    %1084 = vmatpush1.msra.mxu0 %v864
    %1085 = vmatprep.subr.mxu0 %v868
    %1086 = vmatpush1.msra.mxu0 %v867
    %1087 = vmatprep.subr.mxu0 %v871
    %1088 = vmatpush1.msra.mxu0 %v870
    %1089 = vmatprep.subr.mxu0 %v874
    %1090 = vmatpush1.msra.mxu0 %v873
    %1091 = vmatprep.subr.mxu0 %v877
    %1092 = vmatpush1.msra.mxu0 %v876
    %1093 = vmatprep.subr.mxu0 %v880
    %1094 = vmatpush1.msra.mxu0 %v879
    %1095 = vmatprep.subr.mxu0 %v883
    %1096 = vmatpush1.msra.mxu0 %v882
    %1097 = vmatprep.subr.mxu0 %v886
    %1098 = vmatpush1.msra.mxu0 %v885
    %1099 = vmatprep.subr.mxu0 0.0
    %1100 = vmatpush1.msra.mxu0 0.0
    %1101 = vmatprep.subr.mxu0 0.0
    %1102 = vmatpush1.msra.mxu0 0.0
    %1103 = vmatprep.subr.mxu0 0.0
    %1104 = vmatpush1.msra.mxu0 0.0
    %1105 = vmatprep.subr.mxu0 0.0
    %1106 = vmatpush1.msra.mxu0 0.0
    %1107 = vmatprep.subr.mxu0 0.0
    %1108 = vmatpush1.msra.mxu0 0.0
    %1109 = vmatprep.subr.mxu0 0.0
    %1110 = vmatpush1.msra.mxu0 0.0
    %1111 = vmatprep.subr.mxu0 0.0
    %1112 = vmatpush1.msra.mxu0 0.0
    %1113 = vmatprep.subr.mxu0 0.0
    %1114 = vmatpush1.msra.mxu0 0.0
    %1115 = vmatprep.subr.mxu0 0.0
    %1116 = vmatpush1.msra.mxu0 0.0
    %1117 = vmatprep.subr.mxu0 0.0
    %1118 = vmatpush1.msra.mxu0 0.0
    %1119 = vmatprep.subr.mxu0 0.0
    %1120 = vmatpush1.msra.mxu0 0.0
    %1121 = vmatprep.subr.mxu0 0.0
    %1122 = vmatpush1.msra.mxu0 0.0
    %1123 = vmatprep.subr.mxu0 0.0
    %1124 = vmatpush1.msra.mxu0 0.0
    %1125 = vmatprep.subr.mxu0 0.0
    %1126 = vmatpush1.msra.mxu0 0.0
    %1127 = vmatprep.subr.mxu0 0.0
    %1128 = vmatpush1.msra.mxu0 0.0
    %1129 = vmatprep.subr.mxu0 0.0
    %1130 = vmatpush1.msra.mxu0 0.0
    %1131 = vmatprep.mubr.f32.mxu0 0.0
    %1132 = vmatmul.mubr.f32.gmra.mrb[0].mxu0 %v1061
    %v1133 = vpop.f32.mrb[0].mxu0
    %v1134 = vadd.f32 0.0, %v1133
    %v1135 = vpop.f32.mrb[0].mxu0
    %v1136 = vadd.f32 0.0, %v1135
    %1137 = vdwg.mxu0
    %1138 = vmatprep.subr.mxu0 0.0
    %1139 = vmatpush1.msra.mxu0 %v842
    %1140 = vmatprep.subr.mxu0 0.0
    %1141 = vmatpush1.msra.mxu0 %v845
    %1142 = vmatprep.subr.mxu0 0.0
    %1143 = vmatpush1.msra.mxu0 %v848
    %1144 = vmatprep.subr.mxu0 0.0
    %1145 = vmatpush1.msra.mxu0 %v851
    %1146 = vmatprep.subr.mxu0 0.0
    %1147 = vmatpush1.msra.mxu0 %v854
    %1148 = vmatprep.subr.mxu0 0.0
    %1149 = vmatpush1.msra.mxu0 %v857
    %1150 = vmatprep.subr.mxu0 0.0
    %1151 = vmatpush1.msra.mxu0 %v860
    %1152 = vmatprep.subr.mxu0 0.0
    %1153 = vmatpush1.msra.mxu0 %v863
    %1154 = vmatprep.subr.mxu0 0.0
    %1155 = vmatpush1.msra.mxu0 %v866
    %1156 = vmatprep.subr.mxu0 0.0
    %1157 = vmatpush1.msra.mxu0 %v869
    %1158 = vmatprep.subr.mxu0 0.0
    %1159 = vmatpush1.msra.mxu0 %v872
    %1160 = vmatprep.subr.mxu0 0.0
    %1161 = vmatpush1.msra.mxu0 %v875
    %1162 = vmatprep.subr.mxu0 0.0
    %1163 = vmatpush1.msra.mxu0 %v878
    %1164 = vmatprep.subr.mxu0 0.0
    %1165 = vmatpush1.msra.mxu0 %v881
    %1166 = vmatprep.subr.mxu0 0.0
    %1167 = vmatpush1.msra.mxu0 %v884
    %1168 = vmatprep.subr.mxu0 0.0
    %1169 = vmatpush1.msra.mxu0 %v887
    %1170 = vmatprep.subr.mxu0 0.0
    %1171 = vmatpush1.msra.mxu0 0.0
    %1172 = vmatprep.subr.mxu0 0.0
    %1173 = vmatpush1.msra.mxu0 0.0
    %1174 = vmatprep.subr.mxu0 0.0
    %1175 = vmatpush1.msra.mxu0 0.0
    %1176 = vmatprep.subr.mxu0 0.0
    %1177 = vmatpush1.msra.mxu0 0.0
    %1178 = vmatprep.subr.mxu0 0.0
    %1179 = vmatpush1.msra.mxu0 0.0
    %1180 = vmatprep.subr.mxu0 0.0
    %1181 = vmatpush1.msra.mxu0 0.0
    %1182 = vmatprep.subr.mxu0 0.0
    %1183 = vmatpush1.msra.mxu0 0.0
    %1184 = vmatprep.subr.mxu0 0.0
    %1185 = vmatpush1.msra.mxu0 0.0
    %1186 = vmatprep.subr.mxu0 0.0
    %1187 = vmatpush1.msra.mxu0 0.0
    %1188 = vmatprep.subr.mxu0 0.0
    %1189 = vmatpush1.msra.mxu0 0.0
    %1190 = vmatprep.subr.mxu0 0.0
    %1191 = vmatpush1.msra.mxu0 0.0
    %1192 = vmatprep.subr.mxu0 0.0
    %1193 = vmatpush1.msra.mxu0 0.0
    %1194 = vmatprep.subr.mxu0 0.0
    %1195 = vmatpush1.msra.mxu0 0.0
    %1196 = vmatprep.subr.mxu0 0.0
    %1197 = vmatpush1.msra.mxu0 0.0
    %1198 = vmatprep.subr.mxu0 0.0
    %1199 = vmatpush1.msra.mxu0 0.0
    %1200 = vmatprep.subr.mxu0 0.0
    %1201 = vmatpush1.msra.mxu0 0.0
    %1202 = vmatprep.mubr.f32.mxu0 0.0
    %1203 = vmatmul.mubr.f32.gmra.mrb[0].mxu0 %v1061
    %v1204 = vpop.f32.mrb[0].mxu0
    %v1205 = vadd.f32 0.0, %v1204
    %v1206 = vpop.f32.mrb[0].mxu0
    %1207 = vdwg.mxu0
    %v1208 = vadd.f32 %v1064, %v1134
    %v1209 = vxor.u32 %v1208, 2147483648
    %v1210 = vmul.f32 %v1209, 1.442695
    %v1211 = vpow.pop %v1210
    %v1212 = vadd.f32 %v1211, 1.0
    %v1213 = vrcp.pop %v1212
    %v1214 = vmul.f32 1.0, %v1213
    %v1215 = vadd.f32 %v1205, %v893
    %v1216 = vmul.f32 %v1214, %v1215
    %v1217 = vadd.f32 %v1066, %v1216
    %v1218 = vtanh.pop %v1217
    %v1219 = vadd.f32 %v1065, %v1136
    %v1220 = vxor.u32 %v1219, 2147483648
    %v1221 = vmul.f32 %v1220, 1.442695
    %v1222 = vpow.pop %v1221
    %v1223 = vadd.f32 %v1222, 1.0
    %v1224 = vrcp.pop %v1223
    %v1225 = vmul.f32 1.0, %v1224
    %v1226 = vsub.f32 1.0, %v1225
    %v1227 = vmul.f32 %v1226, %v1218
    %v1228 = vmul.f32 %v1225, %v1061
    %v1229 = vadd.f32 %v1227, %v1228
    %s1230 = scalar_lea.vmem [#allocation4], 8
    %1231 = vst [vmem:[%s1230] sm:$0xff] %v1229
    %s1232 = scalar_lea.vmem [#allocation3], 48
    %v1233 = vld [vmem:[%s1232] sm:$0xff]
    %v1234 = vld [vmem:[%s1232 + $0x8] sm:$0xff]
    %v1235 = vld [vmem:[%s1232 + $0x10] sm:$0xff]
    %1236 = vmatprep.subr.mxu0 %v841
    %1237 = vmatpush1.msra.mxu0 %v840
    %1238 = vmatprep.subr.mxu0 %v844
    %1239 = vmatpush1.msra.mxu0 %v843
    %1240 = vmatprep.subr.mxu0 %v847
    %1241 = vmatpush1.msra.mxu0 %v846
    %1242 = vmatprep.subr.mxu0 %v850
    %1243 = vmatpush1.msra.mxu0 %v849
    %1244 = vmatprep.subr.mxu0 %v853
    %1245 = vmatpush1.msra.mxu0 %v852
    %1246 = vmatprep.subr.mxu0 %v856
    %1247 = vmatpush1.msra.mxu0 %v855
    %1248 = vmatprep.subr.mxu0 %v859
    %1249 = vmatpush1.msra.mxu0 %v858
    %1250 = vmatprep.subr.mxu0 %v862
    %1251 = vmatpush1.msra.mxu0 %v861
    %1252 = vmatprep.subr.mxu0 %v865
    %1253 = vmatpush1.msra.mxu0 %v864
    %1254 = vmatprep.subr.mxu0 %v868
    %1255 = vmatpush1.msra.mxu0 %v867
    %1256 = vmatprep.subr.mxu0 %v871
    %1257 = vmatpush1.msra.mxu0 %v870
    %1258 = vmatprep.subr.mxu0 %v874
    %1259 = vmatpush1.msra.mxu0 %v873
    %1260 = vmatprep.subr.mxu0 %v877
    %1261 = vmatpush1.msra.mxu0 %v876
    %1262 = vmatprep.subr.mxu0 %v880
    %1263 = vmatpush1.msra.mxu0 %v879
    %1264 = vmatprep.subr.mxu0 %v883
    %1265 = vmatpush1.msra.mxu0 %v882
    %1266 = vmatprep.subr.mxu0 %v886
    %1267 = vmatpush1.msra.mxu0 %v885
    %1268 = vmatprep.subr.mxu0 0.0
    %1269 = vmatpush1.msra.mxu0 0.0
    %1270 = vmatprep.subr.mxu0 0.0
    %1271 = vmatpush1.msra.mxu0 0.0
    %1272 = vmatprep.subr.mxu0 0.0
    %1273 = vmatpush1.msra.mxu0 0.0
    %1274 = vmatprep.subr.mxu0 0.0
    %1275 = vmatpush1.msra.mxu0 0.0
    %1276 = vmatprep.subr.mxu0 0.0
    %1277 = vmatpush1.msra.mxu0 0.0
    %1278 = vmatprep.subr.mxu0 0.0
    %1279 = vmatpush1.msra.mxu0 0.0
    %1280 = vmatprep.subr.mxu0 0.0
    %1281 = vmatpush1.msra.mxu0 0.0
    %1282 = vmatprep.subr.mxu0 0.0
    %1283 = vmatpush1.msra.mxu0 0.0
    %1284 = vmatprep.subr.mxu0 0.0
    %1285 = vmatpush1.msra.mxu0 0.0
    %1286 = vmatprep.subr.mxu0 0.0
    %1287 = vmatpush1.msra.mxu0 0.0
    %1288 = vmatprep.subr.mxu0 0.0
    %1289 = vmatpush1.msra.mxu0 0.0
    %1290 = vmatprep.subr.mxu0 0.0
    %1291 = vmatpush1.msra.mxu0 0.0
    %1292 = vmatprep.subr.mxu0 0.0
    %1293 = vmatpush1.msra.mxu0 0.0
    %1294 = vmatprep.subr.mxu0 0.0
    %1295 = vmatpush1.msra.mxu0 0.0
    %1296 = vmatprep.subr.mxu0 0.0
    %1297 = vmatpush1.msra.mxu0 0.0
    %1298 = vmatprep.subr.mxu0 0.0
    %1299 = vmatpush1.msra.mxu0 0.0
    %1300 = vmatprep.mubr.f32.mxu0 0.0
    %1301 = vmatmul.mubr.f32.gmra.mrb[0].mxu0 %v1229
    %v1302 = vpop.f32.mrb[0].mxu0
    %v1303 = vadd.f32 0.0, %v1302
    %v1304 = vpop.f32.mrb[0].mxu0
    %v1305 = vadd.f32 0.0, %v1304
    %1306 = vdwg.mxu0
    %1307 = vmatprep.subr.mxu0 0.0
    %1308 = vmatpush1.msra.mxu0 %v842
    %1309 = vmatprep.subr.mxu0 0.0
    %1310 = vmatpush1.msra.mxu0 %v845
    %1311 = vmatprep.subr.mxu0 0.0
    %1312 = vmatpush1.msra.mxu0 %v848
    %1313 = vmatprep.subr.mxu0 0.0
    %1314 = vmatpush1.msra.mxu0 %v851
    %1315 = vmatprep.subr.mxu0 0.0
    %1316 = vmatpush1.msra.mxu0 %v854
    %1317 = vmatprep.subr.mxu0 0.0
    %1318 = vmatpush1.msra.mxu0 %v857
    %1319 = vmatprep.subr.mxu0 0.0
    %1320 = vmatpush1.msra.mxu0 %v860
    %1321 = vmatprep.subr.mxu0 0.0
    %1322 = vmatpush1.msra.mxu0 %v863
    %1323 = vmatprep.subr.mxu0 0.0
    %1324 = vmatpush1.msra.mxu0 %v866
    %1325 = vmatprep.subr.mxu0 0.0
    %1326 = vmatpush1.msra.mxu0 %v869
    %1327 = vmatprep.subr.mxu0 0.0
    %1328 = vmatpush1.msra.mxu0 %v872
    %1329 = vmatprep.subr.mxu0 0.0
    %1330 = vmatpush1.msra.mxu0 %v875
    %1331 = vmatprep.subr.mxu0 0.0
    %1332 = vmatpush1.msra.mxu0 %v878
    %1333 = vmatprep.subr.mxu0 0.0
    %1334 = vmatpush1.msra.mxu0 %v881
    %1335 = vmatprep.subr.mxu0 0.0
    %1336 = vmatpush1.msra.mxu0 %v884
    %1337 = vmatprep.subr.mxu0 0.0
    %1338 = vmatpush1.msra.mxu0 %v887
    %1339 = vmatprep.subr.mxu0 0.0
    %1340 = vmatpush1.msra.mxu0 0.0
    %1341 = vmatprep.subr.mxu0 0.0
    %1342 = vmatpush1.msra.mxu0 0.0
    %1343 = vmatprep.subr.mxu0 0.0
    %1344 = vmatpush1.msra.mxu0 0.0
    %1345 = vmatprep.subr.mxu0 0.0
    %1346 = vmatpush1.msra.mxu0 0.0
    %1347 = vmatprep.subr.mxu0 0.0
    %1348 = vmatpush1.msra.mxu0 0.0
    %1349 = vmatprep.subr.mxu0 0.0
    %1350 = vmatpush1.msra.mxu0 0.0
    %1351 = vmatprep.subr.mxu0 0.0
    %1352 = vmatpush1.msra.mxu0 0.0
    %1353 = vmatprep.subr.mxu0 0.0
    %1354 = vmatpush1.msra.mxu0 0.0
    %1355 = vmatprep.subr.mxu0 0.0
    %1356 = vmatpush1.msra.mxu0 0.0
    %1357 = vmatprep.subr.mxu0 0.0
    %1358 = vmatpush1.msra.mxu0 0.0
    %1359 = vmatprep.subr.mxu0 0.0
    %1360 = vmatpush1.msra.mxu0 0.0
    %1361 = vmatprep.subr.mxu0 0.0
    %1362 = vmatpush1.msra.mxu0 0.0
    %1363 = vmatprep.subr.mxu0 0.0
    %1364 = vmatpush1.msra.mxu0 0.0
    %1365 = vmatprep.subr.mxu0 0.0
    %1366 = vmatpush1.msra.mxu0 0.0
    %1367 = vmatprep.subr.mxu0 0.0
    %1368 = vmatpush1.msra.mxu0 0.0
    %1369 = vmatprep.subr.mxu0 0.0
    %1370 = vmatpush1.msra.mxu0 0.0
    %1371 = vmatprep.mubr.f32.mxu0 0.0
    %1372 = vmatmul.mubr.f32.gmra.mrb[0].mxu0 %v1229
    %v1373 = vpop.f32.mrb[0].mxu0
    %v1374 = vadd.f32 0.0, %v1373
    %v1375 = vpop.f32.mrb[0].mxu0
    %1376 = vdwg.mxu0
    %v1377 = vadd.f32 %v1233, %v1303
    %v1378 = vxor.u32 %v1377, 2147483648
    %v1379 = vmul.f32 %v1378, 1.442695
    %v1380 = vpow.pop %v1379
    %v1381 = vadd.f32 %v1380, 1.0
    %v1382 = vrcp.pop %v1381
    %v1383 = vmul.f32 1.0, %v1382
    %v1384 = vadd.f32 %v1374, %v893
    %v1385 = vmul.f32 %v1383, %v1384
    %v1386 = vadd.f32 %v1235, %v1385
    %v1387 = vtanh.pop %v1386
    %v1388 = vadd.f32 %v1234, %v1305
    %v1389 = vxor.u32 %v1388, 2147483648
    %v1390 = vmul.f32 %v1389, 1.442695
    %v1391 = vpow.pop %v1390
    %v1392 = vadd.f32 %v1391, 1.0
    %v1393 = vrcp.pop %v1392
    %v1394 = vmul.f32 1.0, %v1393
    %v1395 = vsub.f32 1.0, %v1394
    %v1396 = vmul.f32 %v1395, %v1387
    %v1397 = vmul.f32 %v1394, %v1229
    %v1398 = vadd.f32 %v1396, %v1397
    %s1399 = scalar_lea.vmem [#allocation4], 16
    %1400 = vst [vmem:[%s1399] sm:$0xff] %v1398
    %s1401 = scalar_lea.vmem [#allocation3], 72
    %v1402 = vld [vmem:[%s1401] sm:$0xff]
    %v1403 = vld [vmem:[%s1401 + $0x8] sm:$0xff]
    %v1404 = vld [vmem:[%s1401 + $0x10] sm:$0xff]
    %1405 = vmatprep.subr.mxu0 %v841
    %1406 = vmatpush1.msra.mxu0 %v840
    %1407 = vmatprep.subr.mxu0 %v844
    %1408 = vmatpush1.msra.mxu0 %v843
    %1409 = vmatprep.subr.mxu0 %v847
    %1410 = vmatpush1.msra.mxu0 %v846
    %1411 = vmatprep.subr.mxu0 %v850
    %1412 = vmatpush1.msra.mxu0 %v849
    %1413 = vmatprep.subr.mxu0 %v853
    %1414 = vmatpush1.msra.mxu0 %v852
    %1415 = vmatprep.subr.mxu0 %v856
    %1416 = vmatpush1.msra.mxu0 %v855
    %1417 = vmatprep.subr.mxu0 %v859
    %1418 = vmatpush1.msra.mxu0 %v858
    %1419 = vmatprep.subr.mxu0 %v862
    %1420 = vmatpush1.msra.mxu0 %v861
    %1421 = vmatprep.subr.mxu0 %v865
    %1422 = vmatpush1.msra.mxu0 %v864
    %1423 = vmatprep.subr.mxu0 %v868
    %1424 = vmatpush1.msra.mxu0 %v867
    %1425 = vmatprep.subr.mxu0 %v871
    %1426 = vmatpush1.msra.mxu0 %v870
    %1427 = vmatprep.subr.mxu0 %v874
    %1428 = vmatpush1.msra.mxu0 %v873
    %1429 = vmatprep.subr.mxu0 %v877
    %1430 = vmatpush1.msra.mxu0 %v876
    %1431 = vmatprep.subr.mxu0 %v880
    %1432 = vmatpush1.msra.mxu0 %v879
    %1433 = vmatprep.subr.mxu0 %v883
    %1434 = vmatpush1.msra.mxu0 %v882
    %1435 = vmatprep.subr.mxu0 %v886
    %1436 = vmatpush1.msra.mxu0 %v885
    %1437 = vmatprep.subr.mxu0 0.0
    %1438 = vmatpush1.msra.mxu0 0.0
    %1439 = vmatprep.subr.mxu0 0.0
    %1440 = vmatpush1.msra.mxu0 0.0
    %1441 = vmatprep.subr.mxu0 0.0
    %1442 = vmatpush1.msra.mxu0 0.0
    %1443 = vmatprep.subr.mxu0 0.0
    %1444 = vmatpush1.msra.mxu0 0.0
    %1445 = vmatprep.subr.mxu0 0.0
    %1446 = vmatpush1.msra.mxu0 0.0
    %1447 = vmatprep.subr.mxu0 0.0
    %1448 = vmatpush1.msra.mxu0 0.0
    %1449 = vmatprep.subr.mxu0 0.0
    %1450 = vmatpush1.msra.mxu0 0.0
    %1451 = vmatprep.subr.mxu0 0.0
    %1452 = vmatpush1.msra.mxu0 0.0
    %1453 = vmatprep.subr.mxu0 0.0
    %1454 = vmatpush1.msra.mxu0 0.0
    %1455 = vmatprep.subr.mxu0 0.0
    %1456 = vmatpush1.msra.mxu0 0.0
    %1457 = vmatprep.subr.mxu0 0.0
    %1458 = vmatpush1.msra.mxu0 0.0
    %1459 = vmatprep.subr.mxu0 0.0
    %1460 = vmatpush1.msra.mxu0 0.0
    %1461 = vmatprep.subr.mxu0 0.0
    %1462 = vmatpush1.msra.mxu0 0.0
    %1463 = vmatprep.subr.mxu0 0.0
    %1464 = vmatpush1.msra.mxu0 0.0
    %1465 = vmatprep.subr.mxu0 0.0
    %1466 = vmatpush1.msra.mxu0 0.0
    %1467 = vmatprep.subr.mxu0 0.0
    %1468 = vmatpush1.msra.mxu0 0.0
    %1469 = vmatprep.mubr.f32.mxu0 0.0
    %1470 = vmatmul.mubr.f32.gmra.mrb[0].mxu0 %v1398
    %v1471 = vpop.f32.mrb[0].mxu0
    %v1472 = vadd.f32 0.0, %v1471
    %v1473 = vpop.f32.mrb[0].mxu0
    %v1474 = vadd.f32 0.0, %v1473
    %1475 = vdwg.mxu0
    %1476 = vmatprep.subr.mxu0 0.0
    %1477 = vmatpush1.msra.mxu0 %v842
    %1478 = vmatprep.subr.mxu0 0.0
    %1479 = vmatpush1.msra.mxu0 %v845
    %1480 = vmatprep.subr.mxu0 0.0
    %1481 = vmatpush1.msra.mxu0 %v848
    %1482 = vmatprep.subr.mxu0 0.0
    %1483 = vmatpush1.msra.mxu0 %v851
    %1484 = vmatprep.subr.mxu0 0.0
    %1485 = vmatpush1.msra.mxu0 %v854
    %1486 = vmatprep.subr.mxu0 0.0
    %1487 = vmatpush1.msra.mxu0 %v857
    %1488 = vmatprep.subr.mxu0 0.0
    %1489 = vmatpush1.msra.mxu0 %v860
    %1490 = vmatprep.subr.mxu0 0.0
    %1491 = vmatpush1.msra.mxu0 %v863
    %1492 = vmatprep.subr.mxu0 0.0
    %1493 = vmatpush1.msra.mxu0 %v866
    %1494 = vmatprep.subr.mxu0 0.0
    %1495 = vmatpush1.msra.mxu0 %v869
    %1496 = vmatprep.subr.mxu0 0.0
    %1497 = vmatpush1.msra.mxu0 %v872
    %1498 = vmatprep.subr.mxu0 0.0
    %1499 = vmatpush1.msra.mxu0 %v875
    %1500 = vmatprep.subr.mxu0 0.0
    %1501 = vmatpush1.msra.mxu0 %v878
    %1502 = vmatprep.subr.mxu0 0.0
    %1503 = vmatpush1.msra.mxu0 %v881
    %1504 = vmatprep.subr.mxu0 0.0
    %1505 = vmatpush1.msra.mxu0 %v884
    %1506 = vmatprep.subr.mxu0 0.0
    %1507 = vmatpush1.msra.mxu0 %v887
    %1508 = vmatprep.subr.mxu0 0.0
    %1509 = vmatpush1.msra.mxu0 0.0
    %1510 = vmatprep.subr.mxu0 0.0
    %1511 = vmatpush1.msra.mxu0 0.0
    %1512 = vmatprep.subr.mxu0 0.0
    %1513 = vmatpush1.msra.mxu0 0.0
    %1514 = vmatprep.subr.mxu0 0.0
    %1515 = vmatpush1.msra.mxu0 0.0
    %1516 = vmatprep.subr.mxu0 0.0
    %1517 = vmatpush1.msra.mxu0 0.0
    %1518 = vmatprep.subr.mxu0 0.0
    %1519 = vmatpush1.msra.mxu0 0.0
    %1520 = vmatprep.subr.mxu0 0.0
    %1521 = vmatpush1.msra.mxu0 0.0
    %1522 = vmatprep.subr.mxu0 0.0
    %1523 = vmatpush1.msra.mxu0 0.0
    %1524 = vmatprep.subr.mxu0 0.0
    %1525 = vmatpush1.msra.mxu0 0.0
    %1526 = vmatprep.subr.mxu0 0.0
    %1527 = vmatpush1.msra.mxu0 0.0
    %1528 = vmatprep.subr.mxu0 0.0
    %1529 = vmatpush1.msra.mxu0 0.0
    %1530 = vmatprep.subr.mxu0 0.0
    %1531 = vmatpush1.msra.mxu0 0.0
    %1532 = vmatprep.subr.mxu0 0.0
    %1533 = vmatpush1.msra.mxu0 0.0
    %1534 = vmatprep.subr.mxu0 0.0
    %1535 = vmatpush1.msra.mxu0 0.0
    %1536 = vmatprep.subr.mxu0 0.0
    %1537 = vmatpush1.msra.mxu0 0.0
    %1538 = vmatprep.subr.mxu0 0.0
    %1539 = vmatpush1.msra.mxu0 0.0
    %1540 = vmatprep.mubr.f32.mxu0 0.0
    %1541 = vmatmul.mubr.f32.gmra.mrb[0].mxu0 %v1398
    %v1542 = vpop.f32.mrb[0].mxu0
    %v1543 = vadd.f32 0.0, %v1542
    %v1544 = vpop.f32.mrb[0].mxu0
    %1545 = vdwg.mxu0
    %v1546 = vadd.f32 %v1402, %v1472
    %v1547 = vxor.u32 %v1546, 2147483648
    %v1548 = vmul.f32 %v1547, 1.442695
    %v1549 = vpow.pop %v1548
    %v1550 = vadd.f32 %v1549, 1.0
    %v1551 = vrcp.pop %v1550
    %v1552 = vmul.f32 1.0, %v1551
    %v1553 = vadd.f32 %v1543, %v893
    %v1554 = vmul.f32 %v1552, %v1553
    %v1555 = vadd.f32 %v1404, %v1554
    %v1556 = vtanh.pop %v1555
    %v1557 = vadd.f32 %v1403, %v1474
    %v1558 = vxor.u32 %v1557, 2147483648
    %v1559 = vmul.f32 %v1558, 1.442695
    %v1560 = vpow.pop %v1559
    %v1561 = vadd.f32 %v1560, 1.0
    %v1562 = vrcp.pop %v1561
    %v1563 = vmul.f32 1.0, %v1562
    %v1564 = vsub.f32 1.0, %v1563
    %v1565 = vmul.f32 %v1564, %v1556
    %v1566 = vmul.f32 %v1563, %v1398
    %v1567 = vadd.f32 %v1565, %v1566
    %s1568 = scalar_lea.vmem [#allocation4], 24
    %1569 = vst [vmem:[%s1568] sm:$0xff] %v1567
    %s1570 = scalar_lea.vmem [#allocation3], 96
    %v1571 = vld [vmem:[%s1570] sm:$0xff]
    %v1572 = vld [vmem:[%s1570 + $0x8] sm:$0xff]
    %v1573 = vld [vmem:[%s1570 + $0x10] sm:$0xff]
    %1574 = vmatprep.subr.mxu0 %v841
    %1575 = vmatpush1.msra.mxu0 %v840
    %1576 = vmatprep.subr.mxu0 %v844
    %1577 = vmatpush1.msra.mxu0 %v843
    %1578 = vmatprep.subr.mxu0 %v847
    %1579 = vmatpush1.msra.mxu0 %v846
    %1580 = vmatprep.subr.mxu0 %v850
    %1581 = vmatpush1.msra.mxu0 %v849
    %1582 = vmatprep.subr.mxu0 %v853
    %1583 = vmatpush1.msra.mxu0 %v852
    %1584 = vmatprep.subr.mxu0 %v856
    %1585 = vmatpush1.msra.mxu0 %v855
    %1586 = vmatprep.subr.mxu0 %v859
    %1587 = vmatpush1.msra.mxu0 %v858
    %1588 = vmatprep.subr.mxu0 %v862
    %1589 = vmatpush1.msra.mxu0 %v861
    %1590 = vmatprep.subr.mxu0 %v865
    %1591 = vmatpush1.msra.mxu0 %v864
    %1592 = vmatprep.subr.mxu0 %v868
    %1593 = vmatpush1.msra.mxu0 %v867
    %1594 = vmatprep.subr.mxu0 %v871
    %1595 = vmatpush1.msra.mxu0 %v870
    %1596 = vmatprep.subr.mxu0 %v874
    %1597 = vmatpush1.msra.mxu0 %v873
    %1598 = vmatprep.subr.mxu0 %v877
    %1599 = vmatpush1.msra.mxu0 %v876
    %1600 = vmatprep.subr.mxu0 %v880
    %1601 = vmatpush1.msra.mxu0 %v879
    %1602 = vmatprep.subr.mxu0 %v883
    %1603 = vmatpush1.msra.mxu0 %v882
    %1604 = vmatprep.subr.mxu0 %v886
    %1605 = vmatpush1.msra.mxu0 %v885
    %1606 = vmatprep.subr.mxu0 0.0
    %1607 = vmatpush1.msra.mxu0 0.0
    %1608 = vmatprep.subr.mxu0 0.0
    %1609 = vmatpush1.msra.mxu0 0.0
    %1610 = vmatprep.subr.mxu0 0.0
    %1611 = vmatpush1.msra.mxu0 0.0
    %1612 = vmatprep.subr.mxu0 0.0
    %1613 = vmatpush1.msra.mxu0 0.0
    %1614 = vmatprep.subr.mxu0 0.0
    %1615 = vmatpush1.msra.mxu0 0.0
    %1616 = vmatprep.subr.mxu0 0.0
    %1617 = vmatpush1.msra.mxu0 0.0
    %1618 = vmatprep.subr.mxu0 0.0
    %1619 = vmatpush1.msra.mxu0 0.0
    %1620 = vmatprep.subr.mxu0 0.0
    %1621 = vmatpush1.msra.mxu0 0.0
    %1622 = vmatprep.subr.mxu0 0.0
    %1623 = vmatpush1.msra.mxu0 0.0
    %1624 = vmatprep.subr.mxu0 0.0
    %1625 = vmatpush1.msra.mxu0 0.0
    %1626 = vmatprep.subr.mxu0 0.0
    %1627 = vmatpush1.msra.mxu0 0.0
    %1628 = vmatprep.subr.mxu0 0.0
    %1629 = vmatpush1.msra.mxu0 0.0
    %1630 = vmatprep.subr.mxu0 0.0
    %1631 = vmatpush1.msra.mxu0 0.0
    %1632 = vmatprep.subr.mxu0 0.0
    %1633 = vmatpush1.msra.mxu0 0.0
    %1634 = vmatprep.subr.mxu0 0.0
    %1635 = vmatpush1.msra.mxu0 0.0
    %1636 = vmatprep.subr.mxu0 0.0
    %1637 = vmatpush1.msra.mxu0 0.0
    %1638 = vmatprep.mubr.f32.mxu0 0.0
    %1639 = vmatmul.mubr.f32.gmra.mrb[0].mxu0 %v1567
    %v1640 = vpop.f32.mrb[0].mxu0
    %v1641 = vadd.f32 0.0, %v1640
    %v1642 = vpop.f32.mrb[0].mxu0
    %v1643 = vadd.f32 0.0, %v1642
    %1644 = vdwg.mxu0
    %1645 = vmatprep.subr.mxu0 0.0
    %1646 = vmatpush1.msra.mxu0 %v842
    %1647 = vmatprep.subr.mxu0 0.0
    %1648 = vmatpush1.msra.mxu0 %v845
    %1649 = vmatprep.subr.mxu0 0.0
    %1650 = vmatpush1.msra.mxu0 %v848
    %1651 = vmatprep.subr.mxu0 0.0
    %1652 = vmatpush1.msra.mxu0 %v851
    %1653 = vmatprep.subr.mxu0 0.0
    %1654 = vmatpush1.msra.mxu0 %v854
    %1655 = vmatprep.subr.mxu0 0.0
    %1656 = vmatpush1.msra.mxu0 %v857
    %1657 = vmatprep.subr.mxu0 0.0
    %1658 = vmatpush1.msra.mxu0 %v860
    %1659 = vmatprep.subr.mxu0 0.0
    %1660 = vmatpush1.msra.mxu0 %v863
    %1661 = vmatprep.subr.mxu0 0.0
    %1662 = vmatpush1.msra.mxu0 %v866
    %1663 = vmatprep.subr.mxu0 0.0
    %1664 = vmatpush1.msra.mxu0 %v869
    %1665 = vmatprep.subr.mxu0 0.0
    %1666 = vmatpush1.msra.mxu0 %v872
    %1667 = vmatprep.subr.mxu0 0.0
    %1668 = vmatpush1.msra.mxu0 %v875
    %1669 = vmatprep.subr.mxu0 0.0
    %1670 = vmatpush1.msra.mxu0 %v878
    %1671 = vmatprep.subr.mxu0 0.0
    %1672 = vmatpush1.msra.mxu0 %v881
    %1673 = vmatprep.subr.mxu0 0.0
    %1674 = vmatpush1.msra.mxu0 %v884
    %1675 = vmatprep.subr.mxu0 0.0
    %1676 = vmatpush1.msra.mxu0 %v887
    %1677 = vmatprep.subr.mxu0 0.0
    %1678 = vmatpush1.msra.mxu0 0.0
    %1679 = vmatprep.subr.mxu0 0.0
    %1680 = vmatpush1.msra.mxu0 0.0
    %1681 = vmatprep.subr.mxu0 0.0
    %1682 = vmatpush1.msra.mxu0 0.0
    %1683 = vmatprep.subr.mxu0 0.0
    %1684 = vmatpush1.msra.mxu0 0.0
    %1685 = vmatprep.subr.mxu0 0.0
    %1686 = vmatpush1.msra.mxu0 0.0
    %1687 = vmatprep.subr.mxu0 0.0
    %1688 = vmatpush1.msra.mxu0 0.0
    %1689 = vmatprep.subr.mxu0 0.0
    %1690 = vmatpush1.msra.mxu0 0.0
    %1691 = vmatprep.subr.mxu0 0.0
    %1692 = vmatpush1.msra.mxu0 0.0
    %1693 = vmatprep.subr.mxu0 0.0
    %1694 = vmatpush1.msra.mxu0 0.0
    %1695 = vmatprep.subr.mxu0 0.0
    %1696 = vmatpush1.msra.mxu0 0.0
    %1697 = vmatprep.subr.mxu0 0.0
    %1698 = vmatpush1.msra.mxu0 0.0
    %1699 = vmatprep.subr.mxu0 0.0
    %1700 = vmatpush1.msra.mxu0 0.0
    %1701 = vmatprep.subr.mxu0 0.0
    %1702 = vmatpush1.msra.mxu0 0.0
    %1703 = vmatprep.subr.mxu0 0.0
    %1704 = vmatpush1.msra.mxu0 0.0
    %1705 = vmatprep.subr.mxu0 0.0
    %1706 = vmatpush1.msra.mxu0 0.0
    %1707 = vmatprep.subr.mxu0 0.0
    %1708 = vmatpush1.msra.mxu0 0.0
    %1709 = vmatprep.mubr.f32.mxu0 0.0
    %1710 = vmatmul.mubr.f32.gmra.mrb[0].mxu0 %v1567
    %v1711 = vpop.f32.mrb[0].mxu0
    %v1712 = vadd.f32 0.0, %v1711
    %v1713 = vpop.f32.mrb[0].mxu0
    %1714 = vdwg.mxu0
    %v1715 = vadd.f32 %v1571, %v1641
    %v1716 = vxor.u32 %v1715, 2147483648
    %v1717 = vmul.f32 %v1716, 1.442695
    %v1718 = vpow.pop %v1717
    %v1719 = vadd.f32 %v1718, 1.0
    %v1720 = vrcp.pop %v1719
    %v1721 = vmul.f32 1.0, %v1720
    %v1722 = vadd.f32 %v1712, %v893
    %v1723 = vmul.f32 %v1721, %v1722
    %v1724 = vadd.f32 %v1573, %v1723
    %v1725 = vtanh.pop %v1724
    %v1726 = vadd.f32 %v1572, %v1643
    %v1727 = vxor.u32 %v1726, 2147483648
    %v1728 = vmul.f32 %v1727, 1.442695
    %v1729 = vpow.pop %v1728
    %v1730 = vadd.f32 %v1729, 1.0
    %v1731 = vrcp.pop %v1730
    %v1732 = vmul.f32 1.0, %v1731
    %v1733 = vsub.f32 1.0, %v1732
    %v1734 = vmul.f32 %v1733, %v1725
    %v1735 = vmul.f32 %v1732, %v1567
    %v1736 = vadd.f32 %v1734, %v1735
    %s1737 = scalar_lea.vmem [#allocation4], 32
    %1738 = vst [vmem:[%s1737] sm:$0xff] %v1736
    %s1739 = scalar_lea.vmem [#allocation3], 120
    %v1740 = vld [vmem:[%s1739] sm:$0xff]
    %v1741 = vld [vmem:[%s1739 + $0x8] sm:$0xff]
    %v1742 = vld [vmem:[%s1739 + $0x10] sm:$0xff]
    %1743 = vmatprep.subr.mxu0 %v841
    %1744 = vmatpush1.msra.mxu0 %v840
    %1745 = vmatprep.subr.mxu0 %v844
    %1746 = vmatpush1.msra.mxu0 %v843
    %1747 = vmatprep.subr.mxu0 %v847
    %1748 = vmatpush1.msra.mxu0 %v846
    %1749 = vmatprep.subr.mxu0 %v850
    %1750 = vmatpush1.msra.mxu0 %v849
    %1751 = vmatprep.subr.mxu0 %v853
    %1752 = vmatpush1.msra.mxu0 %v852
    %1753 = vmatprep.subr.mxu0 %v856
    %1754 = vmatpush1.msra.mxu0 %v855
    %1755 = vmatprep.subr.mxu0 %v859
    %1756 = vmatpush1.msra.mxu0 %v858
    %1757 = vmatprep.subr.mxu0 %v862
    %1758 = vmatpush1.msra.mxu0 %v861
    %1759 = vmatprep.subr.mxu0 %v865
    %1760 = vmatpush1.msra.mxu0 %v864
    %1761 = vmatprep.subr.mxu0 %v868
    %1762 = vmatpush1.msra.mxu0 %v867
    %1763 = vmatprep.subr.mxu0 %v871
    %1764 = vmatpush1.msra.mxu0 %v870
    %1765 = vmatprep.subr.mxu0 %v874
    %1766 = vmatpush1.msra.mxu0 %v873
    %1767 = vmatprep.subr.mxu0 %v877
    %1768 = vmatpush1.msra.mxu0 %v876
    %1769 = vmatprep.subr.mxu0 %v880
    %1770 = vmatpush1.msra.mxu0 %v879
    %1771 = vmatprep.subr.mxu0 %v883
    %1772 = vmatpush1.msra.mxu0 %v882
    %1773 = vmatprep.subr.mxu0 %v886
    %1774 = vmatpush1.msra.mxu0 %v885
    %1775 = vmatprep.subr.mxu0 0.0
    %1776 = vmatpush1.msra.mxu0 0.0
    %1777 = vmatprep.subr.mxu0 0.0
    %1778 = vmatpush1.msra.mxu0 0.0
    %1779 = vmatprep.subr.mxu0 0.0
    %1780 = vmatpush1.msra.mxu0 0.0
    %1781 = vmatprep.subr.mxu0 0.0
    %1782 = vmatpush1.msra.mxu0 0.0
    %1783 = vmatprep.subr.mxu0 0.0
    %1784 = vmatpush1.msra.mxu0 0.0
    %1785 = vmatprep.subr.mxu0 0.0
    %1786 = vmatpush1.msra.mxu0 0.0
    %1787 = vmatprep.subr.mxu0 0.0
    %1788 = vmatpush1.msra.mxu0 0.0
    %1789 = vmatprep.subr.mxu0 0.0
    %1790 = vmatpush1.msra.mxu0 0.0
    %1791 = vmatprep.subr.mxu0 0.0
    %1792 = vmatpush1.msra.mxu0 0.0
    %1793 = vmatprep.subr.mxu0 0.0
    %1794 = vmatpush1.msra.mxu0 0.0
    %1795 = vmatprep.subr.mxu0 0.0
    %1796 = vmatpush1.msra.mxu0 0.0
    %1797 = vmatprep.subr.mxu0 0.0
    %1798 = vmatpush1.msra.mxu0 0.0
    %1799 = vmatprep.subr.mxu0 0.0
    %1800 = vmatpush1.msra.mxu0 0.0
    %1801 = vmatprep.subr.mxu0 0.0
    %1802 = vmatpush1.msra.mxu0 0.0
    %1803 = vmatprep.subr.mxu0 0.0
    %1804 = vmatpush1.msra.mxu0 0.0
    %1805 = vmatprep.subr.mxu0 0.0
    %1806 = vmatpush1.msra.mxu0 0.0
    %1807 = vmatprep.mubr.f32.mxu0 0.0
    %1808 = vmatmul.mubr.f32.gmra.mrb[0].mxu0 %v1736
    %v1809 = vpop.f32.mrb[0].mxu0
    %v1810 = vadd.f32 0.0, %v1809
    %v1811 = vpop.f32.mrb[0].mxu0
    %v1812 = vadd.f32 0.0, %v1811
    %1813 = vdwg.mxu0
    %1814 = vmatprep.subr.mxu0 0.0
    %1815 = vmatpush1.msra.mxu0 %v842
    %1816 = vmatprep.subr.mxu0 0.0
    %1817 = vmatpush1.msra.mxu0 %v845
    %1818 = vmatprep.subr.mxu0 0.0
    %1819 = vmatpush1.msra.mxu0 %v848
    %1820 = vmatprep.subr.mxu0 0.0
    %1821 = vmatpush1.msra.mxu0 %v851
    %1822 = vmatprep.subr.mxu0 0.0
    %1823 = vmatpush1.msra.mxu0 %v854
    %1824 = vmatprep.subr.mxu0 0.0
    %1825 = vmatpush1.msra.mxu0 %v857
    %1826 = vmatprep.subr.mxu0 0.0
    %1827 = vmatpush1.msra.mxu0 %v860
    %1828 = vmatprep.subr.mxu0 0.0
    %1829 = vmatpush1.msra.mxu0 %v863
    %1830 = vmatprep.subr.mxu0 0.0
    %1831 = vmatpush1.msra.mxu0 %v866
    %1832 = vmatprep.subr.mxu0 0.0
    %1833 = vmatpush1.msra.mxu0 %v869
    %1834 = vmatprep.subr.mxu0 0.0
    %1835 = vmatpush1.msra.mxu0 %v872
    %1836 = vmatprep.subr.mxu0 0.0
    %1837 = vmatpush1.msra.mxu0 %v875
    %1838 = vmatprep.subr.mxu0 0.0
    %1839 = vmatpush1.msra.mxu0 %v878
    %1840 = vmatprep.subr.mxu0 0.0
    %1841 = vmatpush1.msra.mxu0 %v881
    %1842 = vmatprep.subr.mxu0 0.0
    %1843 = vmatpush1.msra.mxu0 %v884
    %1844 = vmatprep.subr.mxu0 0.0
    %1845 = vmatpush1.msra.mxu0 %v887
    %1846 = vmatprep.subr.mxu0 0.0
    %1847 = vmatpush1.msra.mxu0 0.0
    %1848 = vmatprep.subr.mxu0 0.0
    %1849 = vmatpush1.msra.mxu0 0.0
    %1850 = vmatprep.subr.mxu0 0.0
    %1851 = vmatpush1.msra.mxu0 0.0
    %1852 = vmatprep.subr.mxu0 0.0
    %1853 = vmatpush1.msra.mxu0 0.0
    %1854 = vmatprep.subr.mxu0 0.0
    %1855 = vmatpush1.msra.mxu0 0.0
    %1856 = vmatprep.subr.mxu0 0.0
    %1857 = vmatpush1.msra.mxu0 0.0
    %1858 = vmatprep.subr.mxu0 0.0
    %1859 = vmatpush1.msra.mxu0 0.0
    %1860 = vmatprep.subr.mxu0 0.0
    %1861 = vmatpush1.msra.mxu0 0.0
    %1862 = vmatprep.subr.mxu0 0.0
    %1863 = vmatpush1.msra.mxu0 0.0
    %1864 = vmatprep.subr.mxu0 0.0
    %1865 = vmatpush1.msra.mxu0 0.0
    %1866 = vmatprep.subr.mxu0 0.0
    %1867 = vmatpush1.msra.mxu0 0.0
    %1868 = vmatprep.subr.mxu0 0.0
    %1869 = vmatpush1.msra.mxu0 0.0
    %1870 = vmatprep.subr.mxu0 0.0
    %1871 = vmatpush1.msra.mxu0 0.0
    %1872 = vmatprep.subr.mxu0 0.0
    %1873 = vmatpush1.msra.mxu0 0.0
    %1874 = vmatprep.subr.mxu0 0.0
    %1875 = vmatpush1.msra.mxu0 0.0
    %1876 = vmatprep.subr.mxu0 0.0
    %1877 = vmatpush1.msra.mxu0 0.0
    %1878 = vmatprep.mubr.f32.mxu0 0.0
    %1879 = vmatmul.mubr.f32.gmra.mrb[0].mxu0 %v1736
    %v1880 = vpop.f32.mrb[0].mxu0
    %v1881 = vadd.f32 0.0, %v1880
    %v1882 = vpop.f32.mrb[0].mxu0
    %1883 = vdwg.mxu0
    %v1884 = vadd.f32 %v1740, %v1810
    %v1885 = vxor.u32 %v1884, 2147483648
    %v1886 = vmul.f32 %v1885, 1.442695
    %v1887 = vpow.pop %v1886
    %v1888 = vadd.f32 %v1887, 1.0
    %v1889 = vrcp.pop %v1888
    %v1890 = vmul.f32 1.0, %v1889
    %v1891 = vadd.f32 %v1881, %v893
    %v1892 = vmul.f32 %v1890, %v1891
    %v1893 = vadd.f32 %v1742, %v1892
    %v1894 = vtanh.pop %v1893
    %v1895 = vadd.f32 %v1741, %v1812
    %v1896 = vxor.u32 %v1895, 2147483648
    %v1897 = vmul.f32 %v1896, 1.442695
    %v1898 = vpow.pop %v1897
    %v1899 = vadd.f32 %v1898, 1.0
    %v1900 = vrcp.pop %v1899
    %v1901 = vmul.f32 1.0, %v1900
    %v1902 = vsub.f32 1.0, %v1901
    %v1903 = vmul.f32 %v1902, %v1894
    %v1904 = vmul.f32 %v1901, %v1736
    %v1905 = vadd.f32 %v1903, %v1904
    %s1906 = scalar_lea.vmem [#allocation4], 40
    %1907 = vst [vmem:[%s1906] sm:$0xff] %v1905
    %s1908 = scalar_lea.vmem [#allocation3], 144
    %v1909 = vld [vmem:[%s1908] sm:$0xff]
    %v1910 = vld [vmem:[%s1908 + $0x8] sm:$0xff]
    %v1911 = vld [vmem:[%s1908 + $0x10] sm:$0xff]
    %1912 = vmatprep.subr.mxu0 %v841
    %1913 = vmatpush1.msra.mxu0 %v840
    %1914 = vmatprep.subr.mxu0 %v844
    %1915 = vmatpush1.msra.mxu0 %v843
    %1916 = vmatprep.subr.mxu0 %v847
    %1917 = vmatpush1.msra.mxu0 %v846
    %1918 = vmatprep.subr.mxu0 %v850
    %1919 = vmatpush1.msra.mxu0 %v849
    %1920 = vmatprep.subr.mxu0 %v853
    %1921 = vmatpush1.msra.mxu0 %v852
    %1922 = vmatprep.subr.mxu0 %v856
    %1923 = vmatpush1.msra.mxu0 %v855
    %1924 = vmatprep.subr.mxu0 %v859
    %1925 = vmatpush1.msra.mxu0 %v858
    %1926 = vmatprep.subr.mxu0 %v862
    %1927 = vmatpush1.msra.mxu0 %v861
    %1928 = vmatprep.subr.mxu0 %v865
    %1929 = vmatpush1.msra.mxu0 %v864
    %1930 = vmatprep.subr.mxu0 %v868
    %1931 = vmatpush1.msra.mxu0 %v867
    %1932 = vmatprep.subr.mxu0 %v871
    %1933 = vmatpush1.msra.mxu0 %v870
    %1934 = vmatprep.subr.mxu0 %v874
    %1935 = vmatpush1.msra.mxu0 %v873
    %1936 = vmatprep.subr.mxu0 %v877
    %1937 = vmatpush1.msra.mxu0 %v876
    %1938 = vmatprep.subr.mxu0 %v880
    %1939 = vmatpush1.msra.mxu0 %v879
    %1940 = vmatprep.subr.mxu0 %v883
    %1941 = vmatpush1.msra.mxu0 %v882
    %1942 = vmatprep.subr.mxu0 %v886
    %1943 = vmatpush1.msra.mxu0 %v885
    %1944 = vmatprep.subr.mxu0 0.0
    %1945 = vmatpush1.msra.mxu0 0.0
    %1946 = vmatprep.subr.mxu0 0.0
    %1947 = vmatpush1.msra.mxu0 0.0
    %1948 = vmatprep.subr.mxu0 0.0
    %1949 = vmatpush1.msra.mxu0 0.0
    %1950 = vmatprep.subr.mxu0 0.0
    %1951 = vmatpush1.msra.mxu0 0.0
    %1952 = vmatprep.subr.mxu0 0.0
    %1953 = vmatpush1.msra.mxu0 0.0
    %1954 = vmatprep.subr.mxu0 0.0
    %1955 = vmatpush1.msra.mxu0 0.0
    %1956 = vmatprep.subr.mxu0 0.0
    %1957 = vmatpush1.msra.mxu0 0.0
    %1958 = vmatprep.subr.mxu0 0.0
    %1959 = vmatpush1.msra.mxu0 0.0
    %1960 = vmatprep.subr.mxu0 0.0
    %1961 = vmatpush1.msra.mxu0 0.0
    %1962 = vmatprep.subr.mxu0 0.0
    %1963 = vmatpush1.msra.mxu0 0.0
    %1964 = vmatprep.subr.mxu0 0.0
    %1965 = vmatpush1.msra.mxu0 0.0
    %1966 = vmatprep.subr.mxu0 0.0
    %1967 = vmatpush1.msra.mxu0 0.0
    %1968 = vmatprep.subr.mxu0 0.0
    %1969 = vmatpush1.msra.mxu0 0.0
    %1970 = vmatprep.subr.mxu0 0.0
    %1971 = vmatpush1.msra.mxu0 0.0
    %1972 = vmatprep.subr.mxu0 0.0
    %1973 = vmatpush1.msra.mxu0 0.0
    %1974 = vmatprep.subr.mxu0 0.0
    %1975 = vmatpush1.msra.mxu0 0.0
    %1976 = vmatprep.mubr.f32.mxu0 0.0
    %1977 = vmatmul.mubr.f32.gmra.mrb[0].mxu0 %v1905
    %v1978 = vpop.f32.mrb[0].mxu0
    %v1979 = vadd.f32 0.0, %v1978
    %v1980 = vpop.f32.mrb[0].mxu0
    %v1981 = vadd.f32 0.0, %v1980
    %1982 = vdwg.mxu0
    %1983 = vmatprep.subr.mxu0 0.0
    %1984 = vmatpush1.msra.mxu0 %v842
    %1985 = vmatprep.subr.mxu0 0.0
    %1986 = vmatpush1.msra.mxu0 %v845
    %1987 = vmatprep.subr.mxu0 0.0
    %1988 = vmatpush1.msra.mxu0 %v848
    %1989 = vmatprep.subr.mxu0 0.0
    %1990 = vmatpush1.msra.mxu0 %v851
    %1991 = vmatprep.subr.mxu0 0.0
    %1992 = vmatpush1.msra.mxu0 %v854
    %1993 = vmatprep.subr.mxu0 0.0
    %1994 = vmatpush1.msra.mxu0 %v857
    %1995 = vmatprep.subr.mxu0 0.0
    %1996 = vmatpush1.msra.mxu0 %v860
    %1997 = vmatprep.subr.mxu0 0.0
    %1998 = vmatpush1.msra.mxu0 %v863
    %1999 = vmatprep.subr.mxu0 0.0
    %2000 = vmatpush1.msra.mxu0 %v866
    %2001 = vmatprep.subr.mxu0 0.0
    %2002 = vmatpush1.msra.mxu0 %v869
    %2003 = vmatprep.subr.mxu0 0.0
    %2004 = vmatpush1.msra.mxu0 %v872
    %2005 = vmatprep.subr.mxu0 0.0
    %2006 = vmatpush1.msra.mxu0 %v875
    %2007 = vmatprep.subr.mxu0 0.0
    %2008 = vmatpush1.msra.mxu0 %v878
    %2009 = vmatprep.subr.mxu0 0.0
    %2010 = vmatpush1.msra.mxu0 %v881
    %2011 = vmatprep.subr.mxu0 0.0
    %2012 = vmatpush1.msra.mxu0 %v884
    %2013 = vmatprep.subr.mxu0 0.0
    %2014 = vmatpush1.msra.mxu0 %v887
    %2015 = vmatprep.subr.mxu0 0.0
    %2016 = vmatpush1.msra.mxu0 0.0
    %2017 = vmatprep.subr.mxu0 0.0
    %2018 = vmatpush1.msra.mxu0 0.0
    %2019 = vmatprep.subr.mxu0 0.0
    %2020 = vmatpush1.msra.mxu0 0.0
    %2021 = vmatprep.subr.mxu0 0.0
    %2022 = vmatpush1.msra.mxu0 0.0
    %2023 = vmatprep.subr.mxu0 0.0
    %2024 = vmatpush1.msra.mxu0 0.0
    %2025 = vmatprep.subr.mxu0 0.0
    %2026 = vmatpush1.msra.mxu0 0.0
    %2027 = vmatprep.subr.mxu0 0.0
    %2028 = vmatpush1.msra.mxu0 0.0
    %2029 = vmatprep.subr.mxu0 0.0
    %2030 = vmatpush1.msra.mxu0 0.0
    %2031 = vmatprep.subr.mxu0 0.0
    %2032 = vmatpush1.msra.mxu0 0.0
    %2033 = vmatprep.subr.mxu0 0.0
    %2034 = vmatpush1.msra.mxu0 0.0
    %2035 = vmatprep.subr.mxu0 0.0
    %2036 = vmatpush1.msra.mxu0 0.0
    %2037 = vmatprep.subr.mxu0 0.0
    %2038 = vmatpush1.msra.mxu0 0.0
    %2039 = vmatprep.subr.mxu0 0.0
    %2040 = vmatpush1.msra.mxu0 0.0
    %2041 = vmatprep.subr.mxu0 0.0
    %2042 = vmatpush1.msra.mxu0 0.0
    %2043 = vmatprep.subr.mxu0 0.0
    %2044 = vmatpush1.msra.mxu0 0.0
    %2045 = vmatprep.subr.mxu0 0.0
    %2046 = vmatpush1.msra.mxu0 0.0
    %2047 = vmatprep.mubr.f32.mxu0 0.0
    %2048 = vmatmul.mubr.f32.gmra.mrb[0].mxu0 %v1905
    %v2049 = vpop.f32.mrb[0].mxu0
    %v2050 = vadd.f32 0.0, %v2049
    %v2051 = vpop.f32.mrb[0].mxu0
    %2052 = vdwg.mxu0
    %v2053 = vadd.f32 %v1909, %v1979
    %v2054 = vxor.u32 %v2053, 2147483648
    %v2055 = vmul.f32 %v2054, 1.442695
    %v2056 = vpow.pop %v2055
    %v2057 = vadd.f32 %v2056, 1.0
    %v2058 = vrcp.pop %v2057
    %v2059 = vmul.f32 1.0, %v2058
    %v2060 = vadd.f32 %v2050, %v893
    %v2061 = vmul.f32 %v2059, %v2060
    %v2062 = vadd.f32 %v1911, %v2061
    %v2063 = vtanh.pop %v2062
    %v2064 = vadd.f32 %v1910, %v1981
    %v2065 = vxor.u32 %v2064, 2147483648
    %v2066 = vmul.f32 %v2065, 1.442695
    %v2067 = vpow.pop %v2066
    %v2068 = vadd.f32 %v2067, 1.0
    %v2069 = vrcp.pop %v2068
    %v2070 = vmul.f32 1.0, %v2069
    %v2071 = vsub.f32 1.0, %v2070
    %v2072 = vmul.f32 %v2071, %v2063
    %v2073 = vmul.f32 %v2070, %v1905
    %v2074 = vadd.f32 %v2072, %v2073
    %s2075 = scalar_lea.vmem [#allocation4], 48
    %2076 = vst [vmem:[%s2075] sm:$0xff] %v2074
    %s2077 = scalar_lea.vmem [#allocation3], 168
    %v2078 = vld [vmem:[%s2077] sm:$0xff]
    %v2079 = vld [vmem:[%s2077 + $0x8] sm:$0xff]
    %v2080 = vld [vmem:[%s2077 + $0x10] sm:$0xff]
    %2081 = vmatprep.subr.mxu0 %v841
    %2082 = vmatpush1.msra.mxu0 %v840
    %2083 = vmatprep.subr.mxu0 %v844
    %2084 = vmatpush1.msra.mxu0 %v843
    %2085 = vmatprep.subr.mxu0 %v847
    %2086 = vmatpush1.msra.mxu0 %v846
    %2087 = vmatprep.subr.mxu0 %v850
    %2088 = vmatpush1.msra.mxu0 %v849
    %2089 = vmatprep.subr.mxu0 %v853
    %2090 = vmatpush1.msra.mxu0 %v852
    %2091 = vmatprep.subr.mxu0 %v856
    %2092 = vmatpush1.msra.mxu0 %v855
    %2093 = vmatprep.subr.mxu0 %v859
    %2094 = vmatpush1.msra.mxu0 %v858
    %2095 = vmatprep.subr.mxu0 %v862
    %2096 = vmatpush1.msra.mxu0 %v861
    %2097 = vmatprep.subr.mxu0 %v865
    %2098 = vmatpush1.msra.mxu0 %v864
    %2099 = vmatprep.subr.mxu0 %v868
    %2100 = vmatpush1.msra.mxu0 %v867
    %2101 = vmatprep.subr.mxu0 %v871
    %2102 = vmatpush1.msra.mxu0 %v870
    %2103 = vmatprep.subr.mxu0 %v874
    %2104 = vmatpush1.msra.mxu0 %v873
    %2105 = vmatprep.subr.mxu0 %v877
    %2106 = vmatpush1.msra.mxu0 %v876
    %2107 = vmatprep.subr.mxu0 %v880
    %2108 = vmatpush1.msra.mxu0 %v879
    %2109 = vmatprep.subr.mxu0 %v883
    %2110 = vmatpush1.msra.mxu0 %v882
    %2111 = vmatprep.subr.mxu0 %v886
    %2112 = vmatpush1.msra.mxu0 %v885
    %2113 = vmatprep.subr.mxu0 0.0
    %2114 = vmatpush1.msra.mxu0 0.0
    %2115 = vmatprep.subr.mxu0 0.0
    %2116 = vmatpush1.msra.mxu0 0.0
    %2117 = vmatprep.subr.mxu0 0.0
    %2118 = vmatpush1.msra.mxu0 0.0
    %2119 = vmatprep.subr.mxu0 0.0
    %2120 = vmatpush1.msra.mxu0 0.0
    %2121 = vmatprep.subr.mxu0 0.0
    %2122 = vmatpush1.msra.mxu0 0.0
    %2123 = vmatprep.subr.mxu0 0.0
    %2124 = vmatpush1.msra.mxu0 0.0
    %2125 = vmatprep.subr.mxu0 0.0
    %2126 = vmatpush1.msra.mxu0 0.0
    %2127 = vmatprep.subr.mxu0 0.0
    %2128 = vmatpush1.msra.mxu0 0.0
    %2129 = vmatprep.subr.mxu0 0.0
    %2130 = vmatpush1.msra.mxu0 0.0
    %2131 = vmatprep.subr.mxu0 0.0
    %2132 = vmatpush1.msra.mxu0 0.0
    %2133 = vmatprep.subr.mxu0 0.0
    %2134 = vmatpush1.msra.mxu0 0.0
    %2135 = vmatprep.subr.mxu0 0.0
    %2136 = vmatpush1.msra.mxu0 0.0
    %2137 = vmatprep.subr.mxu0 0.0
    %2138 = vmatpush1.msra.mxu0 0.0
    %2139 = vmatprep.subr.mxu0 0.0
    %2140 = vmatpush1.msra.mxu0 0.0
    %2141 = vmatprep.subr.mxu0 0.0
    %2142 = vmatpush1.msra.mxu0 0.0
    %2143 = vmatprep.subr.mxu0 0.0
    %2144 = vmatpush1.msra.mxu0 0.0
    %2145 = vmatprep.mubr.f32.mxu0 0.0
    %2146 = vmatmul.mubr.f32.gmra.mrb[0].mxu0 %v2074
    %v2147 = vpop.f32.mrb[0].mxu0
    %v2148 = vadd.f32 0.0, %v2147
    %v2149 = vpop.f32.mrb[0].mxu0
    %v2150 = vadd.f32 0.0, %v2149
    %2151 = vdwg.mxu0
    %2152 = vmatprep.subr.mxu0 0.0
    %2153 = vmatpush1.msra.mxu0 %v842
    %2154 = vmatprep.subr.mxu0 0.0
    %2155 = vmatpush1.msra.mxu0 %v845
    %2156 = vmatprep.subr.mxu0 0.0
    %2157 = vmatpush1.msra.mxu0 %v848
    %2158 = vmatprep.subr.mxu0 0.0
    %2159 = vmatpush1.msra.mxu0 %v851
    %2160 = vmatprep.subr.mxu0 0.0
    %2161 = vmatpush1.msra.mxu0 %v854
    %2162 = vmatprep.subr.mxu0 0.0
    %2163 = vmatpush1.msra.mxu0 %v857
    %2164 = vmatprep.subr.mxu0 0.0
    %2165 = vmatpush1.msra.mxu0 %v860
    %2166 = vmatprep.subr.mxu0 0.0
    %2167 = vmatpush1.msra.mxu0 %v863
    %2168 = vmatprep.subr.mxu0 0.0
    %2169 = vmatpush1.msra.mxu0 %v866
    %2170 = vmatprep.subr.mxu0 0.0
    %2171 = vmatpush1.msra.mxu0 %v869
    %2172 = vmatprep.subr.mxu0 0.0
    %2173 = vmatpush1.msra.mxu0 %v872
    %2174 = vmatprep.subr.mxu0 0.0
    %2175 = vmatpush1.msra.mxu0 %v875
    %2176 = vmatprep.subr.mxu0 0.0
    %2177 = vmatpush1.msra.mxu0 %v878
    %2178 = vmatprep.subr.mxu0 0.0
    %2179 = vmatpush1.msra.mxu0 %v881
    %2180 = vmatprep.subr.mxu0 0.0
    %2181 = vmatpush1.msra.mxu0 %v884
    %2182 = vmatprep.subr.mxu0 0.0
    %2183 = vmatpush1.msra.mxu0 %v887
    %2184 = vmatprep.subr.mxu0 0.0
    %2185 = vmatpush1.msra.mxu0 0.0
    %2186 = vmatprep.subr.mxu0 0.0
    %2187 = vmatpush1.msra.mxu0 0.0
    %2188 = vmatprep.subr.mxu0 0.0
    %2189 = vmatpush1.msra.mxu0 0.0
    %2190 = vmatprep.subr.mxu0 0.0
    %2191 = vmatpush1.msra.mxu0 0.0
    %2192 = vmatprep.subr.mxu0 0.0
    %2193 = vmatpush1.msra.mxu0 0.0
    %2194 = vmatprep.subr.mxu0 0.0
    %2195 = vmatpush1.msra.mxu0 0.0
    %2196 = vmatprep.subr.mxu0 0.0
    %2197 = vmatpush1.msra.mxu0 0.0
    %2198 = vmatprep.subr.mxu0 0.0
    %2199 = vmatpush1.msra.mxu0 0.0
    %2200 = vmatprep.subr.mxu0 0.0
    %2201 = vmatpush1.msra.mxu0 0.0
    %2202 = vmatprep.subr.mxu0 0.0
    %2203 = vmatpush1.msra.mxu0 0.0
    %2204 = vmatprep.subr.mxu0 0.0
    %2205 = vmatpush1.msra.mxu0 0.0
    %2206 = vmatprep.subr.mxu0 0.0
    %2207 = vmatpush1.msra.mxu0 0.0
    %2208 = vmatprep.subr.mxu0 0.0
    %2209 = vmatpush1.msra.mxu0 0.0
    %2210 = vmatprep.subr.mxu0 0.0
    %2211 = vmatpush1.msra.mxu0 0.0
    %2212 = vmatprep.subr.mxu0 0.0
    %2213 = vmatpush1.msra.mxu0 0.0
    %2214 = vmatprep.subr.mxu0 0.0
    %2215 = vmatpush1.msra.mxu0 0.0
    %2216 = vmatprep.mubr.f32.mxu0 0.0
    %2217 = vmatmul.mubr.f32.gmra.mrb[0].mxu0 %v2074
    %v2218 = vpop.f32.mrb[0].mxu0
    %v2219 = vadd.f32 0.0, %v2218
    %v2220 = vpop.f32.mrb[0].mxu0
    %2221 = vdwg.mxu0
    %v2222 = vadd.f32 %v2078, %v2148
    %v2223 = vxor.u32 %v2222, 2147483648
    %v2224 = vmul.f32 %v2223, 1.442695
    %v2225 = vpow.pop %v2224
    %v2226 = vadd.f32 %v2225, 1.0
    %v2227 = vrcp.pop %v2226
    %v2228 = vmul.f32 1.0, %v2227
    %v2229 = vadd.f32 %v2219, %v893
    %v2230 = vmul.f32 %v2228, %v2229
    %v2231 = vadd.f32 %v2080, %v2230
    %v2232 = vtanh.pop %v2231
    %v2233 = vadd.f32 %v2079, %v2150
    %v2234 = vxor.u32 %v2233, 2147483648
    %v2235 = vmul.f32 %v2234, 1.442695
    %v2236 = vpow.pop %v2235
    %v2237 = vadd.f32 %v2236, 1.0
    %v2238 = vrcp.pop %v2237
    %v2239 = vmul.f32 1.0, %v2238
    %v2240 = vsub.f32 1.0, %v2239
    %v2241 = vmul.f32 %v2240, %v2232
    %v2242 = vmul.f32 %v2239, %v2074
    %v2243 = vadd.f32 %v2241, %v2242
    %s2244 = scalar_lea.vmem [#allocation4], 56
    %2245 = vst [vmem:[%s2244] sm:$0xff] %v2243
    %2246 = vst [vmem:[#allocation2] sm:$0xff] %v2243
    %v2247 = vld [vmem:[#allocation4] sm:$0xff]
    %v2248 = vld [vmem:[#allocation4 + $0x8] sm:$0xff]
    %v2249 = vld [vmem:[#allocation4 + $0x10] sm:$0xff]
    %v2250 = vld [vmem:[#allocation4 + $0x18] sm:$0xff]
    %v2251 = vld [vmem:[#allocation4 + $0x20] sm:$0xff]
    %v2252 = vld [vmem:[#allocation4 + $0x28] sm:$0xff]
    %v2253 = vld [vmem:[#allocation4 + $0x30] sm:$0xff]
    %v2254 = vld [vmem:[#allocation4 + $0x38] sm:$0xff]
    %v2255 = vld [vmem:[%s9] sm:$0xff]
    %v2256 = vld [vmem:[%s9 + $0x8] sm:$0xff]
    %v2257 = vld [vmem:[%s9 + $0x10] sm:$0xff]
    %v2258 = vld [vmem:[%s9 + $0x18] sm:$0xff]
    %v2259 = vld [vmem:[%s9 + $0x20] sm:$0xff]
    %v2260 = vld [vmem:[%s9 + $0x28] sm:$0xff]
    %v2261 = vld [vmem:[%s9 + $0x30] sm:$0xff]
    %v2262 = vld [vmem:[%s9 + $0x38] sm:$0xff]
    %v2263 = vld [vmem:[%s9 + $0x40] sm:$0xff]
    %v2264 = vld [vmem:[%s9 + $0x48] sm:$0xff]
    %v2265 = vld [vmem:[%s9 + $0x50] sm:$0xff]
    %v2266 = vld [vmem:[%s9 + $0x58] sm:$0xff]
    %v2267 = vld [vmem:[%s9 + $0x60] sm:$0xff]
    %v2268 = vld [vmem:[%s9 + $0x68] sm:$0xff]
    %v2269 = vld [vmem:[%s9 + $0x70] sm:$0xff]
    %v2270 = vld [vmem:[%s9 + $0x78] sm:$0xff]
    %v2271 = vld [vmem:[#allocation12] sm:$0x1]
    %v2273 = vlaneseq
    %v2274 = vshrl.u32 %v2273, 7
    %v2275 = vsub.s32 0, %v2274
    %v2276 = vrot.slane %v2271, %v2275
    %2278 = vmatprep.subr.mxu0 0.0
    %2279 = vmatpush1.msra.mxu0 %v2255
    %2280 = vmatprep.subr.mxu0 0.0
    %2281 = vmatpush1.msra.mxu0 %v2256
    %2282 = vmatprep.subr.mxu0 0.0
    %2283 = vmatpush1.msra.mxu0 %v2257
    %2284 = vmatprep.subr.mxu0 0.0
    %2285 = vmatpush1.msra.mxu0 %v2258
    %2286 = vmatprep.subr.mxu0 0.0
    %2287 = vmatpush1.msra.mxu0 %v2259
    %2288 = vmatprep.subr.mxu0 0.0
    %2289 = vmatpush1.msra.mxu0 %v2260
    %2290 = vmatprep.subr.mxu0 0.0
    %2291 = vmatpush1.msra.mxu0 %v2261
    %2292 = vmatprep.subr.mxu0 0.0
    %2293 = vmatpush1.msra.mxu0 %v2262
    %2294 = vmatprep.subr.mxu0 0.0
    %2295 = vmatpush1.msra.mxu0 %v2263
    %2296 = vmatprep.subr.mxu0 0.0
    %2297 = vmatpush1.msra.mxu0 %v2264
    %2298 = vmatprep.subr.mxu0 0.0
    %2299 = vmatpush1.msra.mxu0 %v2265
    %2300 = vmatprep.subr.mxu0 0.0
    %2301 = vmatpush1.msra.mxu0 %v2266
    %2302 = vmatprep.subr.mxu0 0.0
    %2303 = vmatpush1.msra.mxu0 %v2267
    %2304 = vmatprep.subr.mxu0 0.0
    %2305 = vmatpush1.msra.mxu0 %v2268
    %2306 = vmatprep.subr.mxu0 0.0
    %2307 = vmatpush1.msra.mxu0 %v2269
    %2308 = vmatprep.subr.mxu0 0.0
    %2309 = vmatpush1.msra.mxu0 %v2270
    %2310 = vmatprep.subr.mxu0 0.0
    %2311 = vmatpush1.msra.mxu0 0.0
    %2312 = vmatprep.subr.mxu0 0.0
    %2313 = vmatpush1.msra.mxu0 0.0
    %2314 = vmatprep.subr.mxu0 0.0
    %2315 = vmatpush1.msra.mxu0 0.0
    %2316 = vmatprep.subr.mxu0 0.0
    %2317 = vmatpush1.msra.mxu0 0.0
    %2318 = vmatprep.subr.mxu0 0.0
    %2319 = vmatpush1.msra.mxu0 0.0
    %2320 = vmatprep.subr.mxu0 0.0
    %2321 = vmatpush1.msra.mxu0 0.0
    %2322 = vmatprep.subr.mxu0 0.0
    %2323 = vmatpush1.msra.mxu0 0.0
    %2324 = vmatprep.subr.mxu0 0.0
    %2325 = vmatpush1.msra.mxu0 0.0
    %2326 = vmatprep.subr.mxu0 0.0
    %2327 = vmatpush1.msra.mxu0 0.0
    %2328 = vmatprep.subr.mxu0 0.0
    %2329 = vmatpush1.msra.mxu0 0.0
    %2330 = vmatprep.subr.mxu0 0.0
    %2331 = vmatpush1.msra.mxu0 0.0
    %2332 = vmatprep.subr.mxu0 0.0
    %2333 = vmatpush1.msra.mxu0 0.0
    %2334 = vmatprep.subr.mxu0 0.0
    %2335 = vmatpush1.msra.mxu0 0.0
    %2336 = vmatprep.subr.mxu0 0.0
    %2337 = vmatpush1.msra.mxu0 0.0
    %2338 = vmatprep.subr.mxu0 0.0
    %2339 = vmatpush1.msra.mxu0 0.0
    %2340 = vmatprep.subr.mxu0 0.0
    %2341 = vmatpush1.msra.mxu0 0.0
    %2342 = vmatprep.mubr.f32.mxu0 0.0
    %2343 = vmatmul.mubr.f32.gmra.mrb[0].mxu0 %v2247
    %v2344 = vpop.f32.mrb[0].mxu0
    %v2345 = vadd.f32 %v2276, %v2344
    %v2346 = vpop.f32.mrb[0].mxu0
    %2347 = vmatprep.mubr.f32.mxu0 0.0
    %2348 = vmatmul.mubr.f32.gmra.mrb[0].mxu0 %v2248
    %v2349 = vpop.f32.mrb[0].mxu0
    %v2350 = vadd.f32 %v2276, %v2349
    %v2351 = vpop.f32.mrb[0].mxu0
    %2352 = vmatprep.mubr.f32.mxu0 0.0
    %2353 = vmatmul.mubr.f32.gmra.mrb[0].mxu0 %v2249
    %v2354 = vpop.f32.mrb[0].mxu0
    %v2355 = vadd.f32 %v2276, %v2354
    %v2356 = vpop.f32.mrb[0].mxu0
    %2357 = vmatprep.mubr.f32.mxu0 0.0
    %2358 = vmatmul.mubr.f32.gmra.mrb[0].mxu0 %v2250
    %v2359 = vpop.f32.mrb[0].mxu0
    %v2360 = vadd.f32 %v2276, %v2359
    %v2361 = vpop.f32.mrb[0].mxu0
    %2362 = vmatprep.mubr.f32.mxu0 0.0
    %2363 = vmatmul.mubr.f32.gmra.mrb[0].mxu0 %v2251
    %v2364 = vpop.f32.mrb[0].mxu0
    %v2365 = vadd.f32 %v2276, %v2364
    %v2366 = vpop.f32.mrb[0].mxu0
    %2367 = vmatprep.mubr.f32.mxu0 0.0
    %2368 = vmatmul.mubr.f32.gmra.mrb[0].mxu0 %v2252
    %v2369 = vpop.f32.mrb[0].mxu0
    %v2370 = vadd.f32 %v2276, %v2369
    %v2371 = vpop.f32.mrb[0].mxu0
    %2372 = vmatprep.mubr.f32.mxu0 0.0
    %2373 = vmatmul.mubr.f32.gmra.mrb[0].mxu0 %v2253
    %v2374 = vpop.f32.mrb[0].mxu0
    %v2375 = vadd.f32 %v2276, %v2374
    %v2376 = vpop.f32.mrb[0].mxu0
    %2377 = vmatprep.mubr.f32.mxu0 0.0
    %2378 = vmatmul.mubr.f32.gmra.mrb[0].mxu0 %v2254
    %v2379 = vpop.f32.mrb[0].mxu0
    %v2380 = vadd.f32 %v2276, %v2379
    %v2381 = vpop.f32.mrb[0].mxu0
    %2382 = vdwg.mxu0
    %v2383 = vadd.f32 %v2345, %v236
    %v2384 = vadd.f32 %v2350, %v241
    %v2385 = vadd.f32 %v2355, %v246
    %v2386 = vadd.f32 %v2360, %v251
    %v2387 = vadd.f32 %v2365, %v256
    %v2388 = vadd.f32 %v2370, %v261
    %v2389 = vadd.f32 %v2375, %v266
    %v2390 = vadd.f32 %v2380, %v271
    %v2391 = vld [vmem:[%s11] sm:$0xff]
    %v2392 = vld [vmem:[#allocation13] sm:$0x1]
    %v2394 = vlaneseq
    %v2395 = vshrl.u32 %v2394, 7
    %v2396 = vsub.s32 0, %v2395
    %v2397 = vrot.slane %v2392, %v2396
    %v2400 = vsel %vm532, %v2383, 0
    %v2403 = vsel %vm532, %v2384, 0
    %v2406 = vsel %vm532, %v2385, 0
    %v2409 = vsel %vm532, %v2386, 0
    %v2412 = vsel %vm532, %v2387, 0
    %v2415 = vsel %vm532, %v2388, 0
    %v2418 = vsel %vm532, %v2389, 0
    %v2421 = vsel %vm532, %v2390, 0
    %2423 = vmatprep.subr.mxu0 0.0
    %2424 = vmatpush1.msra.mxu0 %v2391
    %2425 = vmatprep.subr.mxu0 0.0
    %2426 = vmatpush1.msra.mxu0 0.0
    %2427 = vmatprep.subr.mxu0 0.0
    %2428 = vmatpush1.msra.mxu0 0.0
    %2429 = vmatprep.subr.mxu0 0.0
    %2430 = vmatpush1.msra.mxu0 0.0
    %2431 = vmatprep.subr.mxu0 0.0
    %2432 = vmatpush1.msra.mxu0 0.0
    %2433 = vmatprep.subr.mxu0 0.0
    %2434 = vmatpush1.msra.mxu0 0.0
    %2435 = vmatprep.subr.mxu0 0.0
    %2436 = vmatpush1.msra.mxu0 0.0
    %2437 = vmatprep.subr.mxu0 0.0
    %2438 = vmatpush1.msra.mxu0 0.0
    %2439 = vmatprep.subr.mxu0 0.0
    %2440 = vmatpush1.msra.mxu0 0.0
    %2441 = vmatprep.subr.mxu0 0.0
    %2442 = vmatpush1.msra.mxu0 0.0
    %2443 = vmatprep.subr.mxu0 0.0
    %2444 = vmatpush1.msra.mxu0 0.0
    %2445 = vmatprep.subr.mxu0 0.0
    %2446 = vmatpush1.msra.mxu0 0.0
    %2447 = vmatprep.subr.mxu0 0.0
    %2448 = vmatpush1.msra.mxu0 0.0
    %2449 = vmatprep.subr.mxu0 0.0
    %2450 = vmatpush1.msra.mxu0 0.0
    %2451 = vmatprep.subr.mxu0 0.0
    %2452 = vmatpush1.msra.mxu0 0.0
    %2453 = vmatprep.subr.mxu0 0.0
    %2454 = vmatpush1.msra.mxu0 0.0
    %2455 = vmatprep.subr.mxu0 0.0
    %2456 = vmatpush1.msra.mxu0 0.0
    %2457 = vmatprep.subr.mxu0 0.0
    %2458 = vmatpush1.msra.mxu0 0.0
    %2459 = vmatprep.subr.mxu0 0.0
    %2460 = vmatpush1.msra.mxu0 0.0
    %2461 = vmatprep.subr.mxu0 0.0
    %2462 = vmatpush1.msra.mxu0 0.0
    %2463 = vmatprep.subr.mxu0 0.0
    %2464 = vmatpush1.msra.mxu0 0.0
    %2465 = vmatprep.subr.mxu0 0.0
    %2466 = vmatpush1.msra.mxu0 0.0
    %2467 = vmatprep.subr.mxu0 0.0
    %2468 = vmatpush1.msra.mxu0 0.0
    %2469 = vmatprep.subr.mxu0 0.0
    %2470 = vmatpush1.msra.mxu0 0.0
    %2471 = vmatprep.subr.mxu0 0.0
    %2472 = vmatpush1.msra.mxu0 0.0
    %2473 = vmatprep.subr.mxu0 0.0
    %2474 = vmatpush1.msra.mxu0 0.0
    %2475 = vmatprep.subr.mxu0 0.0
    %2476 = vmatpush1.msra.mxu0 0.0
    %2477 = vmatprep.subr.mxu0 0.0
    %2478 = vmatpush1.msra.mxu0 0.0
    %2479 = vmatprep.subr.mxu0 0.0
    %2480 = vmatpush1.msra.mxu0 0.0
    %2481 = vmatprep.subr.mxu0 0.0
    %2482 = vmatpush1.msra.mxu0 0.0
    %2483 = vmatprep.subr.mxu0 0.0
    %2484 = vmatpush1.msra.mxu0 0.0
    %2485 = vmatprep.subr.mxu0 0.0
    %2486 = vmatpush1.msra.mxu0 0.0
    %2487 = vmatprep.mubr.f32.mxu0 0.0
    %2488 = vmatmul.mubr.f32.gmra.mrb[0].mxu0 %v2400
    %v2489 = vpop.f32.mrb[0].mxu0
    %v2490 = vadd.f32 %v2397, %v2489
    %v2491 = vpop.f32.mrb[0].mxu0
    %2492 = vmatprep.mubr.f32.mxu0 0.0
    %2493 = vmatmul.mubr.f32.gmra.mrb[0].mxu0 %v2403
    %v2494 = vpop.f32.mrb[0].mxu0
    %v2495 = vadd.f32 %v2397, %v2494
    %v2496 = vpop.f32.mrb[0].mxu0
    %2497 = vmatprep.mubr.f32.mxu0 0.0
    %2498 = vmatmul.mubr.f32.gmra.mrb[0].mxu0 %v2406
    %v2499 = vpop.f32.mrb[0].mxu0
    %v2500 = vadd.f32 %v2397, %v2499
    %v2501 = vpop.f32.mrb[0].mxu0
    %2502 = vmatprep.mubr.f32.mxu0 0.0
    %2503 = vmatmul.mubr.f32.gmra.mrb[0].mxu0 %v2409
    %v2504 = vpop.f32.mrb[0].mxu0
    %v2505 = vadd.f32 %v2397, %v2504
    %v2506 = vpop.f32.mrb[0].mxu0
    %2507 = vmatprep.mubr.f32.mxu0 0.0
    %2508 = vmatmul.mubr.f32.gmra.mrb[0].mxu0 %v2412
    %v2509 = vpop.f32.mrb[0].mxu0
    %v2510 = vadd.f32 %v2397, %v2509
    %v2511 = vpop.f32.mrb[0].mxu0
    %2512 = vmatprep.mubr.f32.mxu0 0.0
    %2513 = vmatmul.mubr.f32.gmra.mrb[0].mxu0 %v2415
    %v2514 = vpop.f32.mrb[0].mxu0
    %v2515 = vadd.f32 %v2397, %v2514
    %v2516 = vpop.f32.mrb[0].mxu0
    %2517 = vmatprep.mubr.f32.mxu0 0.0
    %2518 = vmatmul.mubr.f32.gmra.mrb[0].mxu0 %v2418
    %v2519 = vpop.f32.mrb[0].mxu0
    %v2520 = vadd.f32 %v2397, %v2519
    %v2521 = vpop.f32.mrb[0].mxu0
    %2522 = vmatprep.mubr.f32.mxu0 0.0
    %2523 = vmatmul.mubr.f32.gmra.mrb[0].mxu0 %v2421
    %v2524 = vpop.f32.mrb[0].mxu0
    %v2525 = vadd.f32 %v2397, %v2524
    %v2526 = vpop.f32.mrb[0].mxu0
    %2527 = vdwg.mxu0
    %2528 = vst.msk [vmem:[%s13] sm:$0xff] %vm144, %v2490
    %2529 = vst.msk [vmem:[%s13 + $0x8] sm:$0xff] %vm144, %v2495
    %2530 = vst.msk [vmem:[%s13 + $0x10] sm:$0xff] %vm144, %v2500
    %2531 = vst.msk [vmem:[%s13 + $0x18] sm:$0xff] %vm144, %v2505
    %2532 = vst.msk [vmem:[%s13 + $0x20] sm:$0xff] %vm144, %v2510
    %2533 = vst.msk [vmem:[%s13 + $0x28] sm:$0xff] %vm144, %v2515
    %2534 = vst.msk [vmem:[%s13 + $0x30] sm:$0xff] %vm144, %v2520
    %2535 = vst.msk [vmem:[%s13 + $0x38] sm:$0xff] %vm144, %v2525
    // Predicated region
    $region82: #{rnn_dynamics_forward.1} parent=1 // pred_check
      _
    $region83: #{rnn_dynamics_forward.1} parent=1 // pred_check_branch
      %2537 = sbr.rel (0) target = $region85
    $region84: #{rnn_dynamics_forward.1} parent=1 // pred_region
      _
    $region85: #{rnn_dynamics_forward.1} parent=1 // pred_fallthru
      _
    // Predicated region
    $region86: #{rnn_dynamics_forward.1} parent=1 // pred_check
      _
    $region87: #{rnn_dynamics_forward.1} parent=1 // pred_check_branch
      %2539 = sbr.rel (0) target = $region89
    $region88: #{rnn_dynamics_forward.1} parent=1 // pred_region
      _
    $region89: #{rnn_dynamics_forward.1} parent=1 // pred_fallthru
      _
    %2540 = vsyncpa [#allocation6], 1
    %2541 = vsyncpa [#allocation8], 1
    %2542 = vsyncpa [#allocation11], 1
    %2543 = vsyncpa [#allocation14], 1

</llo_original>
